<compile_context>
chip_gen: v6e
topology: v6e:2x2x1
jax: 0.10.0
libtpu: 0.0.40
codegen_flags: <defaults>
</compile_context>

<pallas_src>
import math
import functools
import numpy as np

import jax
import jax.numpy as jnp
from jax.experimental import pallas as pl
from jax.experimental.pallas import tpu as pltpu

PAD_INDEX = 1
EOS_INDEX = 0

# Matmul operand dtype.  float32 keeps the forward numerically faithful to the
# fp32 PyTorch reference; set to jnp.bfloat16 on v6e/v7x for ~2-4x MXU
# throughput (accumulation stays fp32 via preferred_element_type).
MXU_DTYPE = jnp.float32


def _mm(a, b):
    return jnp.dot(a.astype(MXU_DTYPE), b.astype(MXU_DTYPE),
                   preferred_element_type=jnp.float32)


def _mm_t(a, b):
    # a @ b.T without materializing a transpose (contract last dims).
    return jax.lax.dot_general(a.astype(MXU_DTYPE), b.astype(MXU_DTYPE),
                               (((1,), (1,)), ((), ())),
                               preferred_element_type=jnp.float32)


# ----------------------------------------------------------------------------
# In-kernel exact GELU: erf via Abramowitz & Stegun 7.1.26 (max abs err ~1.5e-7),
# built only from ops guaranteed to lower in Mosaic (exp, mul, where).
# All VPU math stays fp32 (important on v5e: no bf16 VPU/EUP path).
# ----------------------------------------------------------------------------
def _erf(x):
    a1, a2, a3, a4, a5 = 0.254829592, -0.284496736, 1.421413741, -1.453152027, 1.061405429
    p = 0.3275911
    s = jnp.where(x >= 0.0, 1.0, -1.0)
    ax = jnp.abs(x)
    t = 1.0 / (1.0 + p * ax)
    poly = ((((a5 * t + a4) * t + a3) * t + a2) * t + a1) * t
    return s * (1.0 - poly * jnp.exp(-ax * ax))


def _gelu_exact(x):
    return 0.5 * x * (1.0 + _erf(x * 0.7071067811865476))


def _layernorm(x, g, b, eps):
    mu = jnp.mean(x, axis=-1, keepdims=True)
    xc = x - mu
    var = jnp.mean(xc * xc, axis=-1, keepdims=True)
    return xc * jax.lax.rsqrt(var + eps) * g + b


# ----------------------------------------------------------------------------
# Fused encoder-layer kernel: one grid step = one batch element, all heads.
# ----------------------------------------------------------------------------
def _encoder_layer_kernel(x_ref, pos_ref, mask_ref,
                          g1_ref, b1_ref, wqkv_ref, bqkv_ref, wo_ref, bo_ref,
                          g2_ref, b2_ref, w1_ref, bf1_ref, w2_ref, bf2_ref,
                          o_ref, *, H, dh, add_pos, eps):
    D = H * dh
    x = x_ref[0]                          # (S, D) residual stream of this batch
    if add_pos:                           # positional encoding fused into layer 0
        x = x + pos_ref[...]
    mask = mask_ref[0]                    # (S, S) additive mask (causal + key pad)

    # ---- multi-head self-attention block (norm_first) ----
    h = _layernorm(x, g1_ref[...], b1_ref[...], eps)
    qkv = _mm(h, wqkv_ref[...]) + bqkv_ref[...]          # (S, 3D), stays in VMEM
    wo = wo_ref[...]                                     # (D, D)
    scale = 1.0 / math.sqrt(dh)

    attn_proj = jnp.zeros_like(x)
    for hd in range(H):                                  # static unroll over heads
        lo = hd * dh
        q = qkv[:, lo:lo + dh] * scale                   # (S, dh) lane slices
        k = qkv[:, D + lo:D + lo + dh]
        v = qkv[:, 2 * D + lo:2 * D + lo + dh]
        s = _mm_t(q, k) + mask                           # (S, S)
        m = jnp.maximum(jnp.max(s, axis=-1, keepdims=True), -1e30)
        p = jnp.exp(s - m)
        denom = jnp.maximum(jnp.sum(p, axis=-1, keepdims=True), 1e-30)
        inv = pl.reciprocal(denom, approx=True)          # EUP slot (otherwise idle)
        o_h = _mm(p, v) * inv                            # (S, dh)
        # out-projection accumulated per head -> no concat / no HBM transpose
        attn_proj = attn_proj + _mm(o_h, wo[lo:lo + dh, :])
    x = x + attn_proj + bo_ref[...]

    # ---- feed-forward block (norm_first) ----
    h2 = _layernorm(x, g2_ref[...], b2_ref[...], eps)
    f = _gelu_exact(_mm(h2, w1_ref[...]) + bf1_ref[...])
    x = x + _mm(f, w2_ref[...]) + bf2_ref[...]

    o_ref[0] = x


def encoder_layer_call(x, pos, mask, lp, *, H, dh, add_pos, eps=1e-5):
    # x: (B, S, D), pos: (S, D), mask: (B, S, S)
    B, S, D = x.shape
    d_hid = lp["lin1_w_t"].shape[1]
    kernel = functools.partial(_encoder_layer_kernel, H=H, dh=dh,
                               add_pos=add_pos, eps=eps)
    return pl.pallas_call(
        kernel,
        out_shape=jax.ShapeDtypeStruct((B, S, D), jnp.float32),
        grid=(B,),
        in_specs=[
            pl.BlockSpec((1, S, D), lambda b: (b, 0, 0)),   # x (this batch)
            pl.BlockSpec((S, D), lambda b: (0, 0)),         # positional encoding
            pl.BlockSpec((1, S, S), lambda b: (b, 0, 0)),   # mask (per batch, not per head)
            pl.BlockSpec((1, D), lambda b: (0, 0)),         # ln1 gamma
            pl.BlockSpec((1, D), lambda b: (0, 0)),         # ln1 beta
            pl.BlockSpec((D, 3 * D), lambda b: (0, 0)),     # in_proj W^T
            pl.BlockSpec((1, 3 * D), lambda b: (0, 0)),     # in_proj bias
            pl.BlockSpec((D, D), lambda b: (0, 0)),         # out_proj W^T
            pl.BlockSpec((1, D), lambda b: (0, 0)),         # out_proj bias
            pl.BlockSpec((1, D), lambda b: (0, 0)),         # ln2 gamma
            pl.BlockSpec((1, D), lambda b: (0, 0)),         # ln2 beta
            pl.BlockSpec((D, d_hid), lambda b: (0, 0)),     # lin1 W^T
            pl.BlockSpec((1, d_hid), lambda b: (0, 0)),     # lin1 bias
            pl.BlockSpec((d_hid, D), lambda b: (0, 0)),     # lin2 W^T
            pl.BlockSpec((1, D), lambda b: (0, 0)),         # lin2 bias
        ],
        out_specs=pl.BlockSpec((1, S, D), lambda b: (b, 0, 0)),
        compiler_params=pltpu.CompilerParams(dimension_semantics=("parallel",)),
    )(x, pos, mask,
      lp["ln1_g"].reshape(1, D), lp["ln1_b"].reshape(1, D),
      lp["in_proj_w_t"], lp["in_proj_b"].reshape(1, 3 * D),
      lp["out_proj_w_t"], lp["out_proj_b"].reshape(1, D),
      lp["ln2_g"].reshape(1, D), lp["ln2_b"].reshape(1, D),
      lp["lin1_w_t"], lp["lin1_b"].reshape(1, d_hid),
      lp["lin2_w_t"], lp["lin2_b"].reshape(1, D))


# ----------------------------------------------------------------------------
# Fused output head: final Linear + log_softmax in one kernel (logits never
# round-trip to HBM), tiled over rows with a parallel grid axis.
# ----------------------------------------------------------------------------
def _out_logsoftmax_kernel(x_ref, w_ref, b_ref, o_ref):
    logits = _mm(x_ref[...], w_ref[...]) + b_ref[...]
    m = jnp.max(logits, axis=-1, keepdims=True)
    lse = jnp.log(jnp.sum(jnp.exp(logits - m), axis=-1, keepdims=True)) + m
    o_ref[...] = logits - lse


def _row_tile(M):
    # largest row tile (<=512) giving >=2 blocks (pipelining + v7x 2nd core)
    for cand in (512, 256, 128, 64, 32, 16, 8):
        if M % cand == 0 and M // cand >= 2:
            return cand
    return M


def output_head(x, w_t, b):
    # x: (M, D), w_t: (D, V), b: (V,)
    M, D = x.shape
    V = w_t.shape[1]
    TM = _row_tile(M)
    # TODO(synk): for realistic vocabularies tile the V axis in >=512-lane chunks
    # with an fp32 accumulator so the weight block fits v7x's 64 MiB VMEM.
    return pl.pallas_call(
        _out_logsoftmax_kernel,
        out_shape=jax.ShapeDtypeStruct((M, V), jnp.float32),
        grid=(M // TM,),
        in_specs=[pl.BlockSpec((TM, D), lambda i: (i, 0)),
                  pl.BlockSpec((D, V), lambda i: (0, 0)),
                  pl.BlockSpec((1, V), lambda i: (0, 0))],
        out_specs=pl.BlockSpec((TM, V), lambda i: (i, 0)),
        compiler_params=pltpu.CompilerParams(dimension_semantics=("parallel",)),
    )(x, w_t, b.reshape(1, V))


# ----------------------------------------------------------------------------
# Parameters (deterministic, synthetic — shapes match the nn.Module __init__).
# Weights are stored pre-transposed ((K, N) layout) and the embedding table is
# pre-scaled by sqrt(D) so the scale costs nothing at runtime.
# ----------------------------------------------------------------------------
def init_params(key, num_tokens, D, d_hid, num_layers, n_positions):
    keys = jax.random.split(key, 4 + num_layers)

    def xavier(k, shape):
        fan_out, fan_in = shape
        bound = math.sqrt(6.0 / (fan_in + fan_out))
        return jax.random.uniform(k, shape, jnp.float32, -bound, bound)

    params = {}
    params["emb_scaled"] = xavier(keys[0], (num_tokens, D)) * math.sqrt(D)

    pe = np.zeros((n_positions, D), np.float32)
    positions = np.arange(n_positions, dtype=np.float32)[:, None]
    div = np.exp(np.arange(0, D, 2, dtype=np.float32) * (-math.log(10000.0) / D))
    pe[:, 0::2] = np.sin(positions * div)
    pe[:, 1::2] = np.cos(positions * div)
    params["pos"] = jnp.asarray(pe)

    layers = []
    for l in range(num_layers):
        lk = jax.random.split(keys[4 + l], 8)
        layers.append({
            "in_proj_w_t": xavier(lk[0], (3 * D, D)).T,
            "in_proj_b": jax.random.uniform(lk[1], (3 * D,), jnp.float32, -0.02, 0.02),
            "out_proj_w_t": xavier(lk[2], (D, D)).T,
            "out_proj_b": jax.random.uniform(lk[3], (D,), jnp.float32, -0.02, 0.02),
            "lin1_w_t": xavier(lk[4], (d_hid, D)).T,
            "lin1_b": jax.random.uniform(lk[5], (d_hid,), jnp.float32, -0.02, 0.02),
            "lin2_w_t": xavier(lk[6], (D, d_hid)).T,
            "lin2_b": jax.random.uniform(lk[7], (D,), jnp.float32, -0.02, 0.02),
            "ln1_g": jnp.ones((D,), jnp.float32),
            "ln1_b": jnp.zeros((D,), jnp.float32),
            "ln2_g": jnp.ones((D,), jnp.float32),
            "ln2_b": jnp.zeros((D,), jnp.float32),
        })
    params["layers"] = layers
    params["out_w_t"] = xavier(keys[1], (num_tokens, D)).T
    params["out_b"] = jax.random.uniform(keys[2], (num_tokens,), jnp.float32, -0.02, 0.02)
    return params


# ----------------------------------------------------------------------------
# Forward pass (glue = embedding gather / mask build / final transpose;
#               compute = 1 fused Pallas kernel per layer + 1 output kernel).
# ----------------------------------------------------------------------------
def transformer_forward(params, src, src_mask, src_pad_mask, *, num_heads):
    S, B = src.shape
    D = params["emb_scaled"].shape[1]
    H = num_heads
    dh = D // H

    # Embedding gather directly in batch-major (B, S, D); sqrt(D) already folded
    # into the table.  Dropout is identity (eval mode).
    x = jnp.take(params["emb_scaled"], src.T, axis=0)                   # (B, S, D)

    # Combined additive mask, per batch only (heads share it): (B, S, S)
    add_mask = jnp.zeros((S, S), jnp.float32) if src_mask is None else src_mask.astype(jnp.float32)
    mask = jnp.broadcast_to(add_mask[None], (B, S, S))
    if src_pad_mask is not None:
        mask = jnp.where(src_pad_mask[:, None, :], jnp.float32(-jnp.inf), mask)

    pos = params["pos"][:S]                                             # (S, D)

    if not params["layers"]:
        x = x + pos[None, :, :]
    for li, lp in enumerate(params["layers"]):
        x = encoder_layer_call(x, pos, mask, lp, H=H, dh=dh, add_pos=(li == 0))

    logp = output_head(x.reshape(B * S, D), params["out_w_t"], params["out_b"])
    return logp.reshape(B, S, -1).transpose(1, 0, 2)                    # (S, B, V)


# ----------------------------------------------------------------------------
if __name__ == "__main__":
    # small, module-consistent shapes (seq-first, PyTorch batch_first=False)
    S, B = 8, 2
    num_tokens, dim_model, num_heads = 64, 32, 4
    d_hid, num_layers, n_positions = 64, 2, 16

    key = jax.random.PRNGKey(0)
    pkey, skey = jax.random.split(key)
    params = init_params(pkey, num_tokens, dim_model, d_hid, num_layers, n_positions)

    src = jax.random.randint(skey, (S, B), 2, num_tokens, dtype=jnp.int32)
    src = src.at[S - 1, 0].set(PAD_INDEX)   # one pad token to exercise pad masking

    # get_src_mask: -inf strictly above the diagonal
    src_mask = jnp.where(jnp.triu(jnp.ones((S, S), jnp.float32), k=1) > 0,
                         jnp.float32(-jnp.inf), jnp.float32(0.0))
    # get_pad_mask: (src == PAD).T -> (B, S)
    src_pad_mask = (src == PAD_INDEX).T

    fwd = jax.jit(functools.partial(transformer_forward, num_heads=num_heads))
    out = jax.block_until_ready(fwd(params, src, src_mask, src_pad_mask))

    assert out.shape == (S, B, num_tokens), out.shape
    assert bool(jnp.all(jnp.isfinite(out)))
    # log_softmax rows should sum (in prob space) to ~1
    assert bool(jnp.allclose(jnp.sum(jnp.exp(out), axis=-1), 1.0, atol=1e-4))
    print("KERNEL_OK")
</pallas_src>

<mosaic_0001>
module attributes {stable_mosaic.version = 11 : i64} {
  func.func @_out_logsoftmax_kernel(%arg0: i32, %arg1: memref<8x32xf32, #tpu.memory_space<vmem>>, %arg2: memref<32x64xf32, #tpu.memory_space<vmem>>, %arg3: memref<1x64xf32, #tpu.memory_space<vmem>>, %arg4: memref<8x64xf32, #tpu.memory_space<vmem>>) attributes {dimension_semantics = [#tpu.dimension_semantics<parallel>], iteration_bounds = array<i64: 2>, scalar_prefetch = 0 : i64, scratch_operands = 0 : i64, tpu.core_type = #tpu.core_type<tc>, window_params = [{transform_indices = @transform_0, window_bounds = array<i64: 8, 32>}, {pipeline_mode = #tpu.pipeline_mode<synchronous>, transform_indices = @transform_1, window_bounds = array<i64: 32, 64>}, {pipeline_mode = #tpu.pipeline_mode<synchronous>, transform_indices = @transform_2, window_bounds = array<i64: 1, 64>}, {transform_indices = @transform_3, window_bounds = array<i64: 8, 64>}]} {
    %c0 = arith.constant 0 : index
    %c0_0 = arith.constant 0 : index
    %0 = vector.load %arg1[%c0, %c0_0] : memref<8x32xf32, #tpu.memory_space<vmem>>, vector<8x32xf32>
    %c0_1 = arith.constant 0 : index
    %c0_2 = arith.constant 0 : index
    %1 = vector.load %arg2[%c0_1, %c0_2] : memref<32x64xf32, #tpu.memory_space<vmem>>, vector<32x64xf32>
    %cst = arith.constant dense<0.000000e+00> : vector<8x64xf32>
    %2 = tpu.matmul %0, %1, %cst {dimension_numbers = #tpu.dot_dimension_numbers<[1], [0], [0], [1], [0, 0, 1, 1], [], []>} : vector<8x32xf32>, vector<32x64xf32>, vector<8x64xf32> -> vector<8x64xf32>
    %c0_3 = arith.constant 0 : index
    %c0_4 = arith.constant 0 : index
    %3 = vector.load %arg3[%c0_3, %c0_4] : memref<1x64xf32, #tpu.memory_space<vmem>>, vector<1x64xf32>
    %4 = vector.broadcast %3 : vector<1x64xf32> to vector<8x64xf32>
    %5 = arith.addf %2, %4 : vector<8x64xf32>
    %cst_5 = arith.constant dense<0xFF800000> : vector<8xf32>
    %6 = vector.multi_reduction <maximumf>, %5, %cst_5 [1] : vector<8x64xf32> to vector<8xf32>
    %7 = vector.shape_cast %6 : vector<8xf32> to vector<8x1xf32>
    %8 = vector.broadcast %7 : vector<8x1xf32> to vector<8x64xf32>
    %9 = arith.subf %5, %8 : vector<8x64xf32>
    %10 = math.exp %9 : vector<8x64xf32>
    %cst_6 = arith.constant dense<0.000000e+00> : vector<8xf32>
    %11 = vector.multi_reduction <add>, %10, %cst_6 [1] : vector<8x64xf32> to vector<8xf32>
    %12 = vector.shape_cast %11 : vector<8xf32> to vector<8x1xf32>
    %13 = math.log %12 : vector<8x1xf32>
    %14 = arith.addf %13, %7 : vector<8x1xf32>
    %15 = vector.broadcast %14 : vector<8x1xf32> to vector<8x64xf32>
    %16 = arith.subf %5, %15 : vector<8x64xf32>
    %c0_7 = arith.constant 0 : index
    %c0_8 = arith.constant 0 : index
    %17 = vector.load %arg4[%c0_7, %c0_8] : memref<8x64xf32, #tpu.memory_space<vmem>>, vector<8x64xf32>
    tpu.vector_store %arg4[%c0_7, %c0_8], %16 {strides = array<i32>} : memref<8x64xf32, #tpu.memory_space<vmem>>, vector<8x64xf32>,
    return
  }
  func.func @transform_0(%arg0: i32) -> (i32, i32) {
    %c0_i32 = arith.constant 0 : i32
    %c0_i32_0 = arith.constant 0 : i32
    return %arg0, %c0_i32 : i32, i32
  }
  func.func @transform_1(%arg0: i32) -> (i32, i32) {
    %c0_i32 = arith.constant 0 : i32
    %c0_i32_0 = arith.constant 0 : i32
    %c0_i32_1 = arith.constant 0 : i32
    return %c0_i32, %c0_i32_0 : i32, i32
  }
  func.func @transform_2(%arg0: i32) -> (i32, i32) {
    %c0_i32 = arith.constant 0 : i32
    %c0_i32_0 = arith.constant 0 : i32
    %c0_i32_1 = arith.constant 0 : i32
    return %c0_i32, %c0_i32_0 : i32, i32
  }
  func.func @transform_3(%arg0: i32) -> (i32, i32) {
    %c0_i32 = arith.constant 0 : i32
    %c0_i32_0 = arith.constant 0 : i32
    return %arg0, %c0_i32 : i32, i32
  }
}

module attributes {stable_mosaic.version = 11 : i64} {
  func.func @_encoder_layer_kernel(%arg0: i32, %arg1: memref<1x8x32xf32, #tpu.memory_space<vmem>>, %arg2: memref<8x32xf32, #tpu.memory_space<vmem>>, %arg3: memref<1x8x8xf32, #tpu.memory_space<vmem>>, %arg4: memref<1x32xf32, #tpu.memory_space<vmem>>, %arg5: memref<1x32xf32, #tpu.memory_space<vmem>>, %arg6: memref<32x96xf32, #tpu.memory_space<vmem>>, %arg7: memref<1x96xf32, #tpu.memory_space<vmem>>, %arg8: memref<32x32xf32, #tpu.memory_space<vmem>>, %arg9: memref<1x32xf32, #tpu.memory_space<vmem>>, %arg10: memref<1x32xf32, #tpu.memory_space<vmem>>, %arg11: memref<1x32xf32, #tpu.memory_space<vmem>>, %arg12: memref<32x64xf32, #tpu.memory_space<vmem>>, %arg13: memref<1x64xf32, #tpu.memory_space<vmem>>, %arg14: memref<64x32xf32, #tpu.memory_space<vmem>>, %arg15: memref<1x32xf32, #tpu.memory_space<vmem>>, %arg16: memref<1x8x32xf32, #tpu.memory_space<vmem>>) attributes {dimension_semantics = [#tpu.dimension_semantics<parallel>], iteration_bounds = array<i64: 2>, scalar_prefetch = 0 : i64, scratch_operands = 0 : i64, tpu.core_type = #tpu.core_type<tc>, window_params = [{transform_indices = @transform_0, window_bounds = array<i64: 1, 8, 32>}, {pipeline_mode = #tpu.pipeline_mode<synchronous>, transform_indices = @transform_1, window_bounds = array<i64: 8, 32>}, {transform_indices = @transform_2, window_bounds = array<i64: 1, 8, 8>}, {pipeline_mode = #tpu.pipeline_mode<synchronous>, transform_indices = @transform_3, window_bounds = array<i64: 1, 32>}, {pipeline_mode = #tpu.pipeline_mode<synchronous>, transform_indices = @transform_4, window_bounds = array<i64: 1, 32>}, {pipeline_mode = #tpu.pipeline_mode<synchronous>, transform_indices = @transform_5, window_bounds = array<i64: 32, 96>}, {pipeline_mode = #tpu.pipeline_mode<synchronous>, transform_indices = @transform_6, window_bounds = array<i64: 1, 96>}, {pipeline_mode = #tpu.pipeline_mode<synchronous>, transform_indices = @transform_7, window_bounds = array<i64: 32, 32>}, {pipeline_mode = #tpu.pipeline_mode<synchronous>, transform_indices = @transform_8, window_bounds = array<i64: 1, 32>}, {pipeline_mode = #tpu.pipeline_mode<synchronous>, transform_indices = @transform_9, window_bounds = array<i64: 1, 32>}, {pipeline_mode = #tpu.pipeline_mode<synchronous>, transform_indices = @transform_10, window_bounds = array<i64: 1, 32>}, {pipeline_mode = #tpu.pipeline_mode<synchronous>, transform_indices = @transform_11, window_bounds = array<i64: 32, 64>}, {pipeline_mode = #tpu.pipeline_mode<synchronous>, transform_indices = @transform_12, window_bounds = array<i64: 1, 64>}, {pipeline_mode = #tpu.pipeline_mode<synchronous>, transform_indices = @transform_13, window_bounds = array<i64: 64, 32>}, {pipeline_mode = #tpu.pipeline_mode<synchronous>, transform_indices = @transform_14, window_bounds = array<i64: 1, 32>}, {transform_indices = @transform_15, window_bounds = array<i64: 1, 8, 32>}]} {
    %c0 = arith.constant 0 : index
    %c0_0 = arith.constant 0 : index
    %c0_1 = arith.constant 0 : index
    %0 = vector.load %arg1[%c0, %c0_0, %c0_1] : memref<1x8x32xf32, #tpu.memory_space<vmem>>, vector<1x8x32xf32>
    %1 = vector.shape_cast %0 : vector<1x8x32xf32> to vector<8x32xf32>
    %c0_2 = arith.constant 0 : index
    %c0_3 = arith.constant 0 : index
    %2 = vector.load %arg2[%c0_2, %c0_3] : memref<8x32xf32, #tpu.memory_space<vmem>>, vector<8x32xf32>
    %3 = arith.addf %1, %2 : vector<8x32xf32>
    %c0_4 = arith.constant 0 : index
    %c0_5 = arith.constant 0 : index
    %c0_6 = arith.constant 0 : index
    %4 = vector.load %arg3[%c0_4, %c0_5, %c0_6] : memref<1x8x8xf32, #tpu.memory_space<vmem>>, vector<1x8x8xf32>
    %5 = vector.shape_cast %4 : vector<1x8x8xf32> to vector<8x8xf32>
    %c0_7 = arith.constant 0 : index
    %c0_8 = arith.constant 0 : index
    %6 = vector.load %arg4[%c0_7, %c0_8] : memref<1x32xf32, #tpu.memory_space<vmem>>, vector<1x32xf32>
    %c0_9 = arith.constant 0 : index
    %c0_10 = arith.constant 0 : index
    %7 = vector.load %arg5[%c0_9, %c0_10] : memref<1x32xf32, #tpu.memory_space<vmem>>, vector<1x32xf32>
    %cst = arith.constant dense<0.000000e+00> : vector<8xf32>
    %8 = vector.multi_reduction <add>, %3, %cst [1] : vector<8x32xf32> to vector<8xf32>
    %9 = vector.shape_cast %8 : vector<8xf32> to vector<8x1xf32>
    %cst_11 = arith.constant 3.200000e+01 : f32
    %10 = vector.broadcast %cst_11 : f32 to vector<8x1xf32>
    %11 = arith.divf %9, %10 : vector<8x1xf32>
    %12 = vector.broadcast %11 : vector<8x1xf32> to vector<8x32xf32>
    %13 = arith.subf %3, %12 : vector<8x32xf32>
    %14 = arith.mulf %13, %13 : vector<8x32xf32>
    %cst_12 = arith.constant dense<0.000000e+00> : vector<8xf32>
    %15 = vector.multi_reduction <add>, %14, %cst_12 [1] : vector<8x32xf32> to vector<8xf32>
    %16 = vector.shape_cast %15 : vector<8xf32> to vector<8x1xf32>
    %cst_13 = arith.constant 3.200000e+01 : f32
    %17 = vector.broadcast %cst_13 : f32 to vector<8x1xf32>
    %18 = arith.divf %16, %17 : vector<8x1xf32>
    %cst_14 = arith.constant 9.99999974E-6 : f32
    %19 = vector.broadcast %cst_14 : f32 to vector<8x1xf32>
    %20 = arith.addf %18, %19 : vector<8x1xf32>
    %21 = math.rsqrt %20 : vector<8x1xf32>
    %22 = vector.broadcast %21 : vector<8x1xf32> to vector<8x32xf32>
    %23 = arith.mulf %13, %22 : vector<8x32xf32>
    %24 = vector.broadcast %6 : vector<1x32xf32> to vector<8x32xf32>
    %25 = arith.mulf %23, %24 : vector<8x32xf32>
    %26 = vector.broadcast %7 : vector<1x32xf32> to vector<8x32xf32>
    %27 = arith.addf %25, %26 : vector<8x32xf32>
    %c0_15 = arith.constant 0 : index
    %c0_16 = arith.constant 0 : index
    %28 = vector.load %arg6[%c0_15, %c0_16] : memref<32x96xf32, #tpu.memory_space<vmem>>, vector<32x96xf32>
    %cst_17 = arith.constant dense<0.000000e+00> : vector<8x96xf32>
    %29 = tpu.matmul %27, %28, %cst_17 {dimension_numbers = #tpu.dot_dimension_numbers<[1], [0], [0], [1], [0, 0, 1, 1], [], []>} : vector<8x32xf32>, vector<32x96xf32>, vector<8x96xf32> -> vector<8x96xf32>
    %c0_18 = arith.constant 0 : index
    %c0_19 = arith.constant 0 : index
    %30 = vector.load %arg7[%c0_18, %c0_19] : memref<1x96xf32, #tpu.memory_space<vmem>>, vector<1x96xf32>
    %31 = vector.broadcast %30 : vector<1x96xf32> to vector<8x96xf32>
    %32 = arith.addf %29, %31 : vector<8x96xf32>
    %c0_20 = arith.constant 0 : index
    %c0_21 = arith.constant 0 : index
    %33 = vector.load %arg8[%c0_20, %c0_21] : memref<32x32xf32, #tpu.memory_space<vmem>>, vector<32x32xf32>
    %cst_22 = arith.constant 0.000000e+00 : f32
    %34 = vector.broadcast %cst_22 : f32 to vector<8x32xf32>
    %35 = vector.extract_strided_slice %32 {offsets = [0, 0], sizes = [8, 8], strides = [1, 1]} : vector<8x96xf32> to vector<8x8xf32>
    %cst_23 = arith.constant 0.353553385 : f32
    %36 = vector.broadcast %cst_23 : f32 to vector<8x8xf32>
    %37 = arith.mulf %35, %36 : vector<8x8xf32>
    %38 = vector.extract_strided_slice %32 {offsets = [0, 32], sizes = [8, 8], strides = [1, 1]} : vector<8x96xf32> to vector<8x8xf32>
    %39 = vector.extract_strided_slice %32 {offsets = [0, 64], sizes = [8, 8], strides = [1, 1]} : vector<8x96xf32> to vector<8x8xf32>
    %cst_24 = arith.constant dense<0.000000e+00> : vector<8x8xf32>
    %40 = tpu.matmul %37, %38, %cst_24 {dimension_numbers = #tpu.dot_dimension_numbers<[1], [1], [0], [0], [0, 0, 1, 0], [], []>} : vector<8x8xf32>, vector<8x8xf32>, vector<8x8xf32> -> vector<8x8xf32>
    %41 = arith.addf %40, %5 : vector<8x8xf32>
    %cst_25 = arith.constant dense<0xFF800000> : vector<8xf32>
    %42 = vector.multi_reduction <maximumf>, %41, %cst_25 [1] : vector<8x8xf32> to vector<8xf32>
    %43 = vector.shape_cast %42 : vector<8xf32> to vector<8x1xf32>
    %cst_26 = arith.constant -1.000000e+30 : f32
    %44 = vector.broadcast %cst_26 : f32 to vector<8x1xf32>
    %45 = arith.maximumf %43, %44 : vector<8x1xf32>
    %46 = vector.broadcast %45 : vector<8x1xf32> to vector<8x8xf32>
    %47 = arith.subf %41, %46 : vector<8x8xf32>
    %48 = math.exp %47 : vector<8x8xf32>
    %cst_27 = arith.constant dense<0.000000e+00> : vector<8xf32>
    %49 = vector.multi_reduction <add>, %48, %cst_27 [1] : vector<8x8xf32> to vector<8xf32>
    %50 = vector.shape_cast %49 : vector<8xf32> to vector<8x1xf32>
    %cst_28 = arith.constant 1.000000e-30 : f32
    %51 = vector.broadcast %cst_28 : f32 to vector<8x1xf32>
    %52 = arith.maximumf %50, %51 : vector<8x1xf32>
    %53 = tpu.reciprocal %52 {approx = true} : vector<8x1xf32> -> vector<8x1xf32>
    %cst_29 = arith.constant dense<0.000000e+00> : vector<8x8xf32>
    %54 = tpu.matmul %48, %39, %cst_29 {dimension_numbers = #tpu.dot_dimension_numbers<[1], [0], [0], [1], [0, 0, 1, 1], [], []>} : vector<8x8xf32>, vector<8x8xf32>, vector<8x8xf32> -> vector<8x8xf32>
    %55 = vector.broadcast %53 : vector<8x1xf32> to vector<8x8xf32>
    %56 = arith.mulf %54, %55 : vector<8x8xf32>
    %57 = vector.extract_strided_slice %33 {offsets = [0, 0], sizes = [8, 32], strides = [1, 1]} : vector<32x32xf32> to vector<8x32xf32>
    %cst_30 = arith.constant dense<0.000000e+00> : vector<8x32xf32>
    %58 = tpu.matmul %56, %57, %cst_30 {dimension_numbers = #tpu.dot_dimension_numbers<[1], [0], [0], [1], [0, 0, 1, 1], [], []>} : vector<8x8xf32>, vector<8x32xf32>, vector<8x32xf32> -> vector<8x32xf32>
    %59 = arith.addf %34, %58 : vector<8x32xf32>
    %60 = vector.extract_strided_slice %32 {offsets = [0, 8], sizes = [8, 8], strides = [1, 1]} : vector<8x96xf32> to vector<8x8xf32>
    %cst_31 = arith.constant 0.353553385 : f32
    %61 = vector.broadcast %cst_31 : f32 to vector<8x8xf32>
    %62 = arith.mulf %60, %61 : vector<8x8xf32>
    %63 = vector.extract_strided_slice %32 {offsets = [0, 40], sizes = [8, 8], strides = [1, 1]} : vector<8x96xf32> to vector<8x8xf32>
    %64 = vector.extract_strided_slice %32 {offsets = [0, 72], sizes = [8, 8], strides = [1, 1]} : vector<8x96xf32> to vector<8x8xf32>
    %cst_32 = arith.constant dense<0.000000e+00> : vector<8x8xf32>
    %65 = tpu.matmul %62, %63, %cst_32 {dimension_numbers = #tpu.dot_dimension_numbers<[1], [1], [0], [0], [0, 0, 1, 0], [], []>} : vector<8x8xf32>, vector<8x8xf32>, vector<8x8xf32> -> vector<8x8xf32>
    %66 = arith.addf %65, %5 : vector<8x8xf32>
    %cst_33 = arith.constant dense<0xFF800000> : vector<8xf32>
    %67 = vector.multi_reduction <maximumf>, %66, %cst_33 [1] : vector<8x8xf32> to vector<8xf32>
    %68 = vector.shape_cast %67 : vector<8xf32> to vector<8x1xf32>
    %cst_34 = arith.constant -1.000000e+30 : f32
    %69 = vector.broadcast %cst_34 : f32 to vector<8x1xf32>
    %70 = arith.maximumf %68, %69 : vector<8x1xf32>
    %71 = vector.broadcast %70 : vector<8x1xf32> to vector<8x8xf32>
    %72 = arith.subf %66, %71 : vector<8x8xf32>
    %73 = math.exp %72 : vector<8x8xf32>
    %cst_35 = arith.constant dense<0.000000e+00> : vector<8xf32>
    %74 = vector.multi_reduction <add>, %73, %cst_35 [1] : vector<8x8xf32> to vector<8xf32>
    %75 = vector.shape_cast %74 : vector<8xf32> to vector<8x1xf32>
    %cst_36 = arith.constant 1.000000e-30 : f32
    %76 = vector.broadcast %cst_36 : f32 to vector<8x1xf32>
    %77 = arith.maximumf %75, %76 : vector<8x1xf32>
    %78 = tpu.reciprocal %77 {approx = true} : vector<8x1xf32> -> vector<8x1xf32>
    %cst_37 = arith.constant dense<0.000000e+00> : vector<8x8xf32>
    %79 = tpu.matmul %73, %64, %cst_37 {dimension_numbers = #tpu.dot_dimension_numbers<[1], [0], [0], [1], [0, 0, 1, 1], [], []>} : vector<8x8xf32>, vector<8x8xf32>, vector<8x8xf32> -> vector<8x8xf32>
    %80 = vector.broadcast %78 : vector<8x1xf32> to vector<8x8xf32>
    %81 = arith.mulf %79, %80 : vector<8x8xf32>
    %82 = vector.extract_strided_slice %33 {offsets = [8, 0], sizes = [8, 32], strides = [1, 1]} : vector<32x32xf32> to vector<8x32xf32>
    %cst_38 = arith.constant dense<0.000000e+00> : vector<8x32xf32>
    %83 = tpu.matmul %81, %82, %cst_38 {dimension_numbers = #tpu.dot_dimension_numbers<[1], [0], [0], [1], [0, 0, 1, 1], [], []>} : vector<8x8xf32>, vector<8x32xf32>, vector<8x32xf32> -> vector<8x32xf32>
    %84 = arith.addf %59, %83 : vector<8x32xf32>
    %85 = vector.extract_strided_slice %32 {offsets = [0, 16], sizes = [8, 8], strides = [1, 1]} : vector<8x96xf32> to vector<8x8xf32>
    %cst_39 = arith.constant 0.353553385 : f32
    %86 = vector.broadcast %cst_39 : f32 to vector<8x8xf32>
    %87 = arith.mulf %85, %86 : vector<8x8xf32>
    %88 = vector.extract_strided_slice %32 {offsets = [0, 48], sizes = [8, 8], strides = [1, 1]} : vector<8x96xf32> to vector<8x8xf32>
    %89 = vector.extract_strided_slice %32 {offsets = [0, 80], sizes = [8, 8], strides = [1, 1]} : vector<8x96xf32> to vector<8x8xf32>
    %cst_40 = arith.constant dense<0.000000e+00> : vector<8x8xf32>
    %90 = tpu.matmul %87, %88, %cst_40 {dimension_numbers = #tpu.dot_dimension_numbers<[1], [1], [0], [0], [0, 0, 1, 0], [], []>} : vector<8x8xf32>, vector<8x8xf32>, vector<8x8xf32> -> vector<8x8xf32>
    %91 = arith.addf %90, %5 : vector<8x8xf32>
    %cst_41 = arith.constant dense<0xFF800000> : vector<8xf32>
    %92 = vector.multi_reduction <maximumf>, %91, %cst_41 [1] : vector<8x8xf32> to vector<8xf32>
    %93 = vector.shape_cast %92 : vector<8xf32> to vector<8x1xf32>
    %cst_42 = arith.constant -1.000000e+30 : f32
    %94 = vector.broadcast %cst_42 : f32 to vector<8x1xf32>
    %95 = arith.maximumf %93, %94 : vector<8x1xf32>
    %96 = vector.broadcast %95 : vector<8x1xf32> to vector<8x8xf32>
    %97 = arith.subf %91, %96 : vector<8x8xf32>
    %98 = math.exp %97 : vector<8x8xf32>
    %cst_43 = arith.constant dense<0.000000e+00> : vector<8xf32>
    %99 = vector.multi_reduction <add>, %98, %cst_43 [1] : vector<8x8xf32> to vector<8xf32>
    %100 = vector.shape_cast %99 : vector<8xf32> to vector<8x1xf32>
    %cst_44 = arith.constant 1.000000e-30 : f32
    %101 = vector.broadcast %cst_44 : f32 to vector<8x1xf32>
    %102 = arith.maximumf %100, %101 : vector<8x1xf32>
    %103 = tpu.reciprocal %102 {approx = true} : vector<8x1xf32> -> vector<8x1xf32>
    %cst_45 = arith.constant dense<0.000000e+00> : vector<8x8xf32>
    %104 = tpu.matmul %98, %89, %cst_45 {dimension_numbers = #tpu.dot_dimension_numbers<[1], [0], [0], [1], [0, 0, 1, 1], [], []>} : vector<8x8xf32>, vector<8x8xf32>, vector<8x8xf32> -> vector<8x8xf32>
    %105 = vector.broadcast %103 : vector<8x1xf32> to vector<8x8xf32>
    %106 = arith.mulf %104, %105 : vector<8x8xf32>
    %107 = vector.extract_strided_slice %33 {offsets = [16, 0], sizes = [8, 32], strides = [1, 1]} : vector<32x32xf32> to vector<8x32xf32>
    %cst_46 = arith.constant dense<0.000000e+00> : vector<8x32xf32>
    %108 = tpu.matmul %106, %107, %cst_46 {dimension_numbers = #tpu.dot_dimension_numbers<[1], [0], [0], [1], [0, 0, 1, 1], [], []>} : vector<8x8xf32>, vector<8x32xf32>, vector<8x32xf32> -> vector<8x32xf32>
    %109 = arith.addf %84, %108 : vector<8x32xf32>
    %110 = vector.extract_strided_slice %32 {offsets = [0, 24], sizes = [8, 8], strides = [1, 1]} : vector<8x96xf32> to vector<8x8xf32>
    %cst_47 = arith.constant 0.353553385 : f32
    %111 = vector.broadcast %cst_47 : f32 to vector<8x8xf32>
    %112 = arith.mulf %110, %111 : vector<8x8xf32>
    %113 = vector.extract_strided_slice %32 {offsets = [0, 56], sizes = [8, 8], strides = [1, 1]} : vector<8x96xf32> to vector<8x8xf32>
    %114 = vector.extract_strided_slice %32 {offsets = [0, 88], sizes = [8, 8], strides = [1, 1]} : vector<8x96xf32> to vector<8x8xf32>
    %cst_48 = arith.constant dense<0.000000e+00> : vector<8x8xf32>
    %115 = tpu.matmul %112, %113, %cst_48 {dimension_numbers = #tpu.dot_dimension_numbers<[1], [1], [0], [0], [0, 0, 1, 0], [], []>} : vector<8x8xf32>, vector<8x8xf32>, vector<8x8xf32> -> vector<8x8xf32>
    %116 = arith.addf %115, %5 : vector<8x8xf32>
    %cst_49 = arith.constant dense<0xFF800000> : vector<8xf32>
    %117 = vector.multi_reduction <maximumf>, %116, %cst_49 [1] : vector<8x8xf32> to vector<8xf32>
    %118 = vector.shape_cast %117 : vector<8xf32> to vector<8x1xf32>
    %cst_50 = arith.constant -1.000000e+30 : f32
    %119 = vector.broadcast %cst_50 : f32 to vector<8x1xf32>
    %120 = arith.maximumf %118, %119 : vector<8x1xf32>
    %121 = vector.broadcast %120 : vector<8x1xf32> to vector<8x8xf32>
    %122 = arith.subf %116, %121 : vector<8x8xf32>
    %123 = math.exp %122 : vector<8x8xf32>
    %cst_51 = arith.constant dense<0.000000e+00> : vector<8xf32>
    %124 = vector.multi_reduction <add>, %123, %cst_51 [1] : vector<8x8xf32> to vector<8xf32>
    %125 = vector.shape_cast %124 : vector<8xf32> to vector<8x1xf32>
    %cst_52 = arith.constant 1.000000e-30 : f32
    %126 = vector.broadcast %cst_52 : f32 to vector<8x1xf32>
    %127 = arith.maximumf %125, %126 : vector<8x1xf32>
    %128 = tpu.reciprocal %127 {approx = true} : vector<8x1xf32> -> vector<8x1xf32>
    %cst_53 = arith.constant dense<0.000000e+00> : vector<8x8xf32>
    %129 = tpu.matmul %123, %114, %cst_53 {dimension_numbers = #tpu.dot_dimension_numbers<[1], [0], [0], [1], [0, 0, 1, 1], [], []>} : vector<8x8xf32>, vector<8x8xf32>, vector<8x8xf32> -> vector<8x8xf32>
    %130 = vector.broadcast %128 : vector<8x1xf32> to vector<8x8xf32>
    %131 = arith.mulf %129, %130 : vector<8x8xf32>
    %132 = vector.extract_strided_slice %33 {offsets = [24, 0], sizes = [8, 32], strides = [1, 1]} : vector<32x32xf32> to vector<8x32xf32>
    %cst_54 = arith.constant dense<0.000000e+00> : vector<8x32xf32>
    %133 = tpu.matmul %131, %132, %cst_54 {dimension_numbers = #tpu.dot_dimension_numbers<[1], [0], [0], [1], [0, 0, 1, 1], [], []>} : vector<8x8xf32>, vector<8x32xf32>, vector<8x32xf32> -> vector<8x32xf32>
    %134 = arith.addf %109, %133 : vector<8x32xf32>
    %135 = arith.addf %3, %134 : vector<8x32xf32>
    %c0_55 = arith.constant 0 : index
    %c0_56 = arith.constant 0 : index
    %136 = vector.load %arg9[%c0_55, %c0_56] : memref<1x32xf32, #tpu.memory_space<vmem>>, vector<1x32xf32>
    %137 = vector.broadcast %136 : vector<1x32xf32> to vector<8x32xf32>
    %138 = arith.addf %135, %137 : vector<8x32xf32>
    %c0_57 = arith.constant 0 : index
    %c0_58 = arith.constant 0 : index
    %139 = vector.load %arg10[%c0_57, %c0_58] : memref<1x32xf32, #tpu.memory_space<vmem>>, vector<1x32xf32>
    %c0_59 = arith.constant 0 : index
    %c0_60 = arith.constant 0 : index
    %140 = vector.load %arg11[%c0_59, %c0_60] : memref<1x32xf32, #tpu.memory_space<vmem>>, vector<1x32xf32>
    %cst_61 = arith.constant dense<0.000000e+00> : vector<8xf32>
    %141 = vector.multi_reduction <add>, %138, %cst_61 [1] : vector<8x32xf32> to vector<8xf32>
    %142 = vector.shape_cast %141 : vector<8xf32> to vector<8x1xf32>
    %cst_62 = arith.constant 3.200000e+01 : f32
    %143 = vector.broadcast %cst_62 : f32 to vector<8x1xf32>
    %144 = arith.divf %142, %143 : vector<8x1xf32>
    %145 = vector.broadcast %144 : vector<8x1xf32> to vector<8x32xf32>
    %146 = arith.subf %138, %145 : vector<8x32xf32>
    %147 = arith.mulf %146, %146 : vector<8x32xf32>
    %cst_63 = arith.constant dense<0.000000e+00> : vector<8xf32>
    %148 = vector.multi_reduction <add>, %147, %cst_63 [1] : vector<8x32xf32> to vector<8xf32>
    %149 = vector.shape_cast %148 : vector<8xf32> to vector<8x1xf32>
    %cst_64 = arith.constant 3.200000e+01 : f32
    %150 = vector.broadcast %cst_64 : f32 to vector<8x1xf32>
    %151 = arith.divf %149, %150 : vector<8x1xf32>
    %cst_65 = arith.constant 9.99999974E-6 : f32
    %152 = vector.broadcast %cst_65 : f32 to vector<8x1xf32>
    %153 = arith.addf %151, %152 : vector<8x1xf32>
    %154 = math.rsqrt %153 : vector<8x1xf32>
    %155 = vector.broadcast %154 : vector<8x1xf32> to vector<8x32xf32>
    %156 = arith.mulf %146, %155 : vector<8x32xf32>
    %157 = vector.broadcast %139 : vector<1x32xf32> to vector<8x32xf32>
    %158 = arith.mulf %156, %157 : vector<8x32xf32>
    %159 = vector.broadcast %140 : vector<1x32xf32> to vector<8x32xf32>
    %160 = arith.addf %158, %159 : vector<8x32xf32>
    %c0_66 = arith.constant 0 : index
    %c0_67 = arith.constant 0 : index
    %161 = vector.load %arg12[%c0_66, %c0_67] : memref<32x64xf32, #tpu.memory_space<vmem>>, vector<32x64xf32>
    %cst_68 = arith.constant dense<0.000000e+00> : vector<8x64xf32>
    %162 = tpu.matmul %160, %161, %cst_68 {dimension_numbers = #tpu.dot_dimension_numbers<[1], [0], [0], [1], [0, 0, 1, 1], [], []>} : vector<8x32xf32>, vector<32x64xf32>, vector<8x64xf32> -> vector<8x64xf32>
    %c0_69 = arith.constant 0 : index
    %c0_70 = arith.constant 0 : index
    %163 = vector.load %arg13[%c0_69, %c0_70] : memref<1x64xf32, #tpu.memory_space<vmem>>, vector<1x64xf32>
    %164 = vector.broadcast %163 : vector<1x64xf32> to vector<8x64xf32>
    %165 = arith.addf %162, %164 : vector<8x64xf32>
    %cst_71 = arith.constant 5.000000e-01 : f32
    %166 = vector.broadcast %cst_71 : f32 to vector<8x64xf32>
    %167 = arith.mulf %166, %165 : vector<8x64xf32>
    %cst_72 = arith.constant 0.707106769 : f32
    %168 = vector.broadcast %cst_72 : f32 to vector<8x64xf32>
    %169 = arith.mulf %165, %168 : vector<8x64xf32>
    %cst_73 = arith.constant 0.000000e+00 : f32
    %170 = vector.broadcast %cst_73 : f32 to vector<8x64xf32>
    %171 = arith.cmpf oge, %169, %170 : vector<8x64xf32>
    %cst_74 = arith.constant 1.000000e+00 : f32
    %cst_75 = arith.constant -1.000000e+00 : f32
    %172 = vector.broadcast %cst_74 : f32 to vector<8x64xf32>
    %173 = vector.broadcast %cst_75 : f32 to vector<8x64xf32>
    %174 = arith.select %171, %172, %173 : vector<8x64xi1>, vector<8x64xf32>
    %175 = math.absf %169 : vector<8x64xf32>
    %cst_76 = arith.constant 0.327591091 : f32
    %176 = vector.broadcast %cst_76 : f32 to vector<8x64xf32>
    %177 = arith.mulf %176, %175 : vector<8x64xf32>
    %cst_77 = arith.constant 1.000000e+00 : f32
    %178 = vector.broadcast %cst_77 : f32 to vector<8x64xf32>
    %179 = arith.addf %178, %177 : vector<8x64xf32>
    %cst_78 = arith.constant 1.000000e+00 : f32
    %180 = vector.broadcast %cst_78 : f32 to vector<8x64xf32>
    %181 = arith.divf %180, %179 : vector<8x64xf32>
    %cst_79 = arith.constant 1.06140542 : f32
    %182 = vector.broadcast %cst_79 : f32 to vector<8x64xf32>
    %183 = arith.mulf %182, %181 : vector<8x64xf32>
    %cst_80 = arith.constant -1.45315206 : f32
    %184 = vector.broadcast %cst_80 : f32 to vector<8x64xf32>
    %185 = arith.addf %183, %184 : vector<8x64xf32>
    %186 = arith.mulf %185, %181 : vector<8x64xf32>
    %cst_81 = arith.constant 1.42141378 : f32
    %187 = vector.broadcast %cst_81 : f32 to vector<8x64xf32>
    %188 = arith.addf %186, %187 : vector<8x64xf32>
    %189 = arith.mulf %188, %181 : vector<8x64xf32>
    %cst_82 = arith.constant -0.284496725 : f32
    %190 = vector.broadcast %cst_82 : f32 to vector<8x64xf32>
    %191 = arith.addf %189, %190 : vector<8x64xf32>
    %192 = arith.mulf %191, %181 : vector<8x64xf32>
    %cst_83 = arith.constant 0.254829586 : f32
    %193 = vector.broadcast %cst_83 : f32 to vector<8x64xf32>
    %194 = arith.addf %192, %193 : vector<8x64xf32>
    %195 = arith.mulf %194, %181 : vector<8x64xf32>
    %cst_84 = arith.constant 0.000000e+00 : f32
    %196 = vector.broadcast %cst_84 : f32 to vector<8x64xf32>
    %197 = arith.subf %196, %175 : vector<8x64xf32>
    %198 = arith.mulf %197, %175 : vector<8x64xf32>
    %199 = math.exp %198 : vector<8x64xf32>
    %200 = arith.mulf %195, %199 : vector<8x64xf32>
    %cst_85 = arith.constant 1.000000e+00 : f32
    %201 = vector.broadcast %cst_85 : f32 to vector<8x64xf32>
    %202 = arith.subf %201, %200 : vector<8x64xf32>
    %203 = arith.mulf %174, %202 : vector<8x64xf32>
    %cst_86 = arith.constant 1.000000e+00 : f32
    %204 = vector.broadcast %cst_86 : f32 to vector<8x64xf32>
    %205 = arith.addf %204, %203 : vector<8x64xf32>
    %206 = arith.mulf %167, %205 : vector<8x64xf32>
    %c0_87 = arith.constant 0 : index
    %c0_88 = arith.constant 0 : index
    %207 = vector.load %arg14[%c0_87, %c0_88] : memref<64x32xf32, #tpu.memory_space<vmem>>, vector<64x32xf32>
    %cst_89 = arith.constant dense<0.000000e+00> : vector<8x32xf32>
    %208 = tpu.matmul %206, %207, %cst_89 {dimension_numbers = #tpu.dot_dimension_numbers<[1], [0], [0], [1], [0, 0, 1, 1], [], []>} : vector<8x64xf32>, vector<64x32xf32>, vector<8x32xf32> -> vector<8x32xf32>
    %209 = arith.addf %138, %208 : vector<8x32xf32>
    %c0_90 = arith.constant 0 : index
    %c0_91 = arith.constant 0 : index
    %210 = vector.load %arg15[%c0_90, %c0_91] : memref<1x32xf32, #tpu.memory_space<vmem>>, vector<1x32xf32>
    %211 = vector.broadcast %210 : vector<1x32xf32> to vector<8x32xf32>
    %212 = arith.addf %209, %211 : vector<8x32xf32>
    %c0_92 = arith.constant 0 : index
    %c0_93 = arith.constant 0 : index
    %c0_94 = arith.constant 0 : index
    %213 = vector.load %arg16[%c0_92, %c0_93, %c0_94] : memref<1x8x32xf32, #tpu.memory_space<vmem>>, vector<1x8x32xf32>
    %214 = vector.shape_cast %213 : vector<1x8x32xf32> to vector<8x32xf32>
    %215 = vector.shape_cast %212 : vector<8x32xf32> to vector<1x8x32xf32>
    tpu.vector_store %arg16[%c0_92, %c0_93, %c0_94], %215 {strides = array<i32>} : memref<1x8x32xf32, #tpu.memory_space<vmem>>, vector<1x8x32xf32>,
    return
  }
  func.func @transform_0(%arg0: i32) -> (i32, i32, i32) {
    %c0_i32 = arith.constant 0 : i32
    %c0_i32_0 = arith.constant 0 : i32
    %c0_i32_1 = arith.constant 0 : i32
    return %arg0, %c0_i32, %c0_i32_0 : i32, i32, i32
  }
  func.func @transform_1(%arg0: i32) -> (i32, i32) {
    %c0_i32 = arith.constant 0 : i32
    %c0_i32_0 = arith.constant 0 : i32
    %c0_i32_1 = arith.constant 0 : i32
    return %c0_i32, %c0_i32_0 : i32, i32
  }
  func.func @transform_2(%arg0: i32) -> (i32, i32, i32) {
    %c0_i32 = arith.constant 0 : i32
    %c0_i32_0 = arith.constant 0 : i32
    %c0_i32_1 = arith.constant 0 : i32
    return %arg0, %c0_i32, %c0_i32_0 : i32, i32, i32
  }
  func.func @transform_3(%arg0: i32) -> (i32, i32) {
    %c0_i32 = arith.constant 0 : i32
    %c0_i32_0 = arith.constant 0 : i32
    %c0_i32_1 = arith.constant 0 : i32
    return %c0_i32, %c0_i32_0 : i32, i32
  }
  func.func @transform_4(%arg0: i32) -> (i32, i32) {
    %c0_i32 = arith.constant 0 : i32
    %c0_i32_0 = arith.constant 0 : i32
    %c0_i32_1 = arith.constant 0 : i32
    return %c0_i32, %c0_i32_0 : i32, i32
  }
  func.func @transform_5(%arg0: i32) -> (i32, i32) {
    %c0_i32 = arith.constant 0 : i32
    %c0_i32_0 = arith.constant 0 : i32
    %c0_i32_1 = arith.constant 0 : i32
    return %c0_i32, %c0_i32_0 : i32, i32
  }
  func.func @transform_6(%arg0: i32) -> (i32, i32) {
    %c0_i32 = arith.constant 0 : i32
    %c0_i32_0 = arith.constant 0 : i32
    %c0_i32_1 = arith.constant 0 : i32
    return %c0_i32, %c0_i32_0 : i32, i32
  }
  func.func @transform_7(%arg0: i32) -> (i32, i32) {
    %c0_i32 = arith.constant 0 : i32
    %c0_i32_0 = arith.constant 0 : i32
    %c0_i32_1 = arith.constant 0 : i32
    return %c0_i32, %c0_i32_0 : i32, i32
  }
  func.func @transform_8(%arg0: i32) -> (i32, i32) {
    %c0_i32 = arith.constant 0 : i32
    %c0_i32_0 = arith.constant 0 : i32
    %c0_i32_1 = arith.constant 0 : i32
    return %c0_i32, %c0_i32_0 : i32, i32
  }
  func.func @transform_9(%arg0: i32) -> (i32, i32) {
    %c0_i32 = arith.constant 0 : i32
    %c0_i32_0 = arith.constant 0 : i32
    %c0_i32_1 = arith.constant 0 : i32
    return %c0_i32, %c0_i32_0 : i32, i32
  }
  func.func @transform_10(%arg0: i32) -> (i32, i32) {
    %c0_i32 = arith.constant 0 : i32
    %c0_i32_0 = arith.constant 0 : i32
    %c0_i32_1 = arith.constant 0 : i32
    return %c0_i32, %c0_i32_0 : i32, i32
  }
  func.func @transform_11(%arg0: i32) -> (i32, i32) {
    %c0_i32 = arith.constant 0 : i32
    %c0_i32_0 = arith.constant 0 : i32
    %c0_i32_1 = arith.constant 0 : i32
    return %c0_i32, %c0_i32_0 : i32, i32
  }
  func.func @transform_12(%arg0: i32) -> (i32, i32) {
    %c0_i32 = arith.constant 0 : i32
    %c0_i32_0 = arith.constant 0 : i32
    %c0_i32_1 = arith.constant 0 : i32
    return %c0_i32, %c0_i32_0 : i32, i32
  }
  func.func @transform_13(%arg0: i32) -> (i32, i32) {
    %c0_i32 = arith.constant 0 : i32
    %c0_i32_0 = arith.constant 0 : i32
    %c0_i32_1 = arith.constant 0 : i32
    return %c0_i32, %c0_i32_0 : i32, i32
  }
  func.func @transform_14(%arg0: i32) -> (i32, i32) {
    %c0_i32 = arith.constant 0 : i32
    %c0_i32_0 = arith.constant 0 : i32
    %c0_i32_1 = arith.constant 0 : i32
    return %c0_i32, %c0_i32_0 : i32, i32
  }
  func.func @transform_15(%arg0: i32) -> (i32, i32, i32) {
    %c0_i32 = arith.constant 0 : i32
    %c0_i32_0 = arith.constant 0 : i32
    %c0_i32_1 = arith.constant 0 : i32
    return %arg0, %c0_i32, %c0_i32_0 : i32, i32, i32
  }
}

module attributes {stable_mosaic.version = 11 : i64} {
  func.func @_encoder_layer_kernel(%arg0: i32, %arg1: memref<1x8x32xf32, #tpu.memory_space<vmem>>, %arg2: memref<8x32xf32, #tpu.memory_space<vmem>>, %arg3: memref<1x8x8xf32, #tpu.memory_space<vmem>>, %arg4: memref<1x32xf32, #tpu.memory_space<vmem>>, %arg5: memref<1x32xf32, #tpu.memory_space<vmem>>, %arg6: memref<32x96xf32, #tpu.memory_space<vmem>>, %arg7: memref<1x96xf32, #tpu.memory_space<vmem>>, %arg8: memref<32x32xf32, #tpu.memory_space<vmem>>, %arg9: memref<1x32xf32, #tpu.memory_space<vmem>>, %arg10: memref<1x32xf32, #tpu.memory_space<vmem>>, %arg11: memref<1x32xf32, #tpu.memory_space<vmem>>, %arg12: memref<32x64xf32, #tpu.memory_space<vmem>>, %arg13: memref<1x64xf32, #tpu.memory_space<vmem>>, %arg14: memref<64x32xf32, #tpu.memory_space<vmem>>, %arg15: memref<1x32xf32, #tpu.memory_space<vmem>>, %arg16: memref<1x8x32xf32, #tpu.memory_space<vmem>>) attributes {dimension_semantics = [#tpu.dimension_semantics<parallel>], iteration_bounds = array<i64: 2>, scalar_prefetch = 0 : i64, scratch_operands = 0 : i64, tpu.core_type = #tpu.core_type<tc>, window_params = [{transform_indices = @transform_0, window_bounds = array<i64: 1, 8, 32>}, {pipeline_mode = #tpu.pipeline_mode<synchronous>, transform_indices = @transform_1, window_bounds = array<i64: 8, 32>}, {transform_indices = @transform_2, window_bounds = array<i64: 1, 8, 8>}, {pipeline_mode = #tpu.pipeline_mode<synchronous>, transform_indices = @transform_3, window_bounds = array<i64: 1, 32>}, {pipeline_mode = #tpu.pipeline_mode<synchronous>, transform_indices = @transform_4, window_bounds = array<i64: 1, 32>}, {pipeline_mode = #tpu.pipeline_mode<synchronous>, transform_indices = @transform_5, window_bounds = array<i64: 32, 96>}, {pipeline_mode = #tpu.pipeline_mode<synchronous>, transform_indices = @transform_6, window_bounds = array<i64: 1, 96>}, {pipeline_mode = #tpu.pipeline_mode<synchronous>, transform_indices = @transform_7, window_bounds = array<i64: 32, 32>}, {pipeline_mode = #tpu.pipeline_mode<synchronous>, transform_indices = @transform_8, window_bounds = array<i64: 1, 32>}, {pipeline_mode = #tpu.pipeline_mode<synchronous>, transform_indices = @transform_9, window_bounds = array<i64: 1, 32>}, {pipeline_mode = #tpu.pipeline_mode<synchronous>, transform_indices = @transform_10, window_bounds = array<i64: 1, 32>}, {pipeline_mode = #tpu.pipeline_mode<synchronous>, transform_indices = @transform_11, window_bounds = array<i64: 32, 64>}, {pipeline_mode = #tpu.pipeline_mode<synchronous>, transform_indices = @transform_12, window_bounds = array<i64: 1, 64>}, {pipeline_mode = #tpu.pipeline_mode<synchronous>, transform_indices = @transform_13, window_bounds = array<i64: 64, 32>}, {pipeline_mode = #tpu.pipeline_mode<synchronous>, transform_indices = @transform_14, window_bounds = array<i64: 1, 32>}, {transform_indices = @transform_15, window_bounds = array<i64: 1, 8, 32>}]} {
    %c0 = arith.constant 0 : index
    %c0_0 = arith.constant 0 : index
    %c0_1 = arith.constant 0 : index
    %0 = vector.load %arg1[%c0, %c0_0, %c0_1] : memref<1x8x32xf32, #tpu.memory_space<vmem>>, vector<1x8x32xf32>
    %1 = vector.shape_cast %0 : vector<1x8x32xf32> to vector<8x32xf32>
    %c0_2 = arith.constant 0 : index
    %c0_3 = arith.constant 0 : index
    %c0_4 = arith.constant 0 : index
    %2 = vector.load %arg3[%c0_2, %c0_3, %c0_4] : memref<1x8x8xf32, #tpu.memory_space<vmem>>, vector<1x8x8xf32>
    %3 = vector.shape_cast %2 : vector<1x8x8xf32> to vector<8x8xf32>
    %c0_5 = arith.constant 0 : index
    %c0_6 = arith.constant 0 : index
    %4 = vector.load %arg4[%c0_5, %c0_6] : memref<1x32xf32, #tpu.memory_space<vmem>>, vector<1x32xf32>
    %c0_7 = arith.constant 0 : index
    %c0_8 = arith.constant 0 : index
    %5 = vector.load %arg5[%c0_7, %c0_8] : memref<1x32xf32, #tpu.memory_space<vmem>>, vector<1x32xf32>
    %cst = arith.constant dense<0.000000e+00> : vector<8xf32>
    %6 = vector.multi_reduction <add>, %1, %cst [1] : vector<8x32xf32> to vector<8xf32>
    %7 = vector.shape_cast %6 : vector<8xf32> to vector<8x1xf32>
    %cst_9 = arith.constant 3.200000e+01 : f32
    %8 = vector.broadcast %cst_9 : f32 to vector<8x1xf32>
    %9 = arith.divf %7, %8 : vector<8x1xf32>
    %10 = vector.broadcast %9 : vector<8x1xf32> to vector<8x32xf32>
    %11 = arith.subf %1, %10 : vector<8x32xf32>
    %12 = arith.mulf %11, %11 : vector<8x32xf32>
    %cst_10 = arith.constant dense<0.000000e+00> : vector<8xf32>
    %13 = vector.multi_reduction <add>, %12, %cst_10 [1] : vector<8x32xf32> to vector<8xf32>
    %14 = vector.shape_cast %13 : vector<8xf32> to vector<8x1xf32>
    %cst_11 = arith.constant 3.200000e+01 : f32
    %15 = vector.broadcast %cst_11 : f32 to vector<8x1xf32>
    %16 = arith.divf %14, %15 : vector<8x1xf32>
    %cst_12 = arith.constant 9.99999974E-6 : f32
    %17 = vector.broadcast %cst_12 : f32 to vector<8x1xf32>
    %18 = arith.addf %16, %17 : vector<8x1xf32>
    %19 = math.rsqrt %18 : vector<8x1xf32>
    %20 = vector.broadcast %19 : vector<8x1xf32> to vector<8x32xf32>
    %21 = arith.mulf %11, %20 : vector<8x32xf32>
    %22 = vector.broadcast %4 : vector<1x32xf32> to vector<8x32xf32>
    %23 = arith.mulf %21, %22 : vector<8x32xf32>
    %24 = vector.broadcast %5 : vector<1x32xf32> to vector<8x32xf32>
    %25 = arith.addf %23, %24 : vector<8x32xf32>
    %c0_13 = arith.constant 0 : index
    %c0_14 = arith.constant 0 : index
    %26 = vector.load %arg6[%c0_13, %c0_14] : memref<32x96xf32, #tpu.memory_space<vmem>>, vector<32x96xf32>
    %cst_15 = arith.constant dense<0.000000e+00> : vector<8x96xf32>
    %27 = tpu.matmul %25, %26, %cst_15 {dimension_numbers = #tpu.dot_dimension_numbers<[1], [0], [0], [1], [0, 0, 1, 1], [], []>} : vector<8x32xf32>, vector<32x96xf32>, vector<8x96xf32> -> vector<8x96xf32>
    %c0_16 = arith.constant 0 : index
    %c0_17 = arith.constant 0 : index
    %28 = vector.load %arg7[%c0_16, %c0_17] : memref<1x96xf32, #tpu.memory_space<vmem>>, vector<1x96xf32>
    %29 = vector.broadcast %28 : vector<1x96xf32> to vector<8x96xf32>
    %30 = arith.addf %27, %29 : vector<8x96xf32>
    %c0_18 = arith.constant 0 : index
    %c0_19 = arith.constant 0 : index
    %31 = vector.load %arg8[%c0_18, %c0_19] : memref<32x32xf32, #tpu.memory_space<vmem>>, vector<32x32xf32>
    %cst_20 = arith.constant 0.000000e+00 : f32
    %32 = vector.broadcast %cst_20 : f32 to vector<8x32xf32>
    %33 = vector.extract_strided_slice %30 {offsets = [0, 0], sizes = [8, 8], strides = [1, 1]} : vector<8x96xf32> to vector<8x8xf32>
    %cst_21 = arith.constant 0.353553385 : f32
    %34 = vector.broadcast %cst_21 : f32 to vector<8x8xf32>
    %35 = arith.mulf %33, %34 : vector<8x8xf32>
    %36 = vector.extract_strided_slice %30 {offsets = [0, 32], sizes = [8, 8], strides = [1, 1]} : vector<8x96xf32> to vector<8x8xf32>
    %37 = vector.extract_strided_slice %30 {offsets = [0, 64], sizes = [8, 8], strides = [1, 1]} : vector<8x96xf32> to vector<8x8xf32>
    %cst_22 = arith.constant dense<0.000000e+00> : vector<8x8xf32>
    %38 = tpu.matmul %35, %36, %cst_22 {dimension_numbers = #tpu.dot_dimension_numbers<[1], [1], [0], [0], [0, 0, 1, 0], [], []>} : vector<8x8xf32>, vector<8x8xf32>, vector<8x8xf32> -> vector<8x8xf32>
    %39 = arith.addf %38, %3 : vector<8x8xf32>
    %cst_23 = arith.constant dense<0xFF800000> : vector<8xf32>
    %40 = vector.multi_reduction <maximumf>, %39, %cst_23 [1] : vector<8x8xf32> to vector<8xf32>
    %41 = vector.shape_cast %40 : vector<8xf32> to vector<8x1xf32>
    %cst_24 = arith.constant -1.000000e+30 : f32
    %42 = vector.broadcast %cst_24 : f32 to vector<8x1xf32>
    %43 = arith.maximumf %41, %42 : vector<8x1xf32>
    %44 = vector.broadcast %43 : vector<8x1xf32> to vector<8x8xf32>
    %45 = arith.subf %39, %44 : vector<8x8xf32>
    %46 = math.exp %45 : vector<8x8xf32>
    %cst_25 = arith.constant dense<0.000000e+00> : vector<8xf32>
    %47 = vector.multi_reduction <add>, %46, %cst_25 [1] : vector<8x8xf32> to vector<8xf32>
    %48 = vector.shape_cast %47 : vector<8xf32> to vector<8x1xf32>
    %cst_26 = arith.constant 1.000000e-30 : f32
    %49 = vector.broadcast %cst_26 : f32 to vector<8x1xf32>
    %50 = arith.maximumf %48, %49 : vector<8x1xf32>
    %51 = tpu.reciprocal %50 {approx = true} : vector<8x1xf32> -> vector<8x1xf32>
    %cst_27 = arith.constant dense<0.000000e+00> : vector<8x8xf32>
    %52 = tpu.matmul %46, %37, %cst_27 {dimension_numbers = #tpu.dot_dimension_numbers<[1], [0], [0], [1], [0, 0, 1, 1], [], []>} : vector<8x8xf32>, vector<8x8xf32>, vector<8x8xf32> -> vector<8x8xf32>
    %53 = vector.broadcast %51 : vector<8x1xf32> to vector<8x8xf32>
    %54 = arith.mulf %52, %53 : vector<8x8xf32>
    %55 = vector.extract_strided_slice %31 {offsets = [0, 0], sizes = [8, 32], strides = [1, 1]} : vector<32x32xf32> to vector<8x32xf32>
    %cst_28 = arith.constant dense<0.000000e+00> : vector<8x32xf32>
    %56 = tpu.matmul %54, %55, %cst_28 {dimension_numbers = #tpu.dot_dimension_numbers<[1], [0], [0], [1], [0, 0, 1, 1], [], []>} : vector<8x8xf32>, vector<8x32xf32>, vector<8x32xf32> -> vector<8x32xf32>
    %57 = arith.addf %32, %56 : vector<8x32xf32>
    %58 = vector.extract_strided_slice %30 {offsets = [0, 8], sizes = [8, 8], strides = [1, 1]} : vector<8x96xf32> to vector<8x8xf32>
    %cst_29 = arith.constant 0.353553385 : f32
    %59 = vector.broadcast %cst_29 : f32 to vector<8x8xf32>
    %60 = arith.mulf %58, %59 : vector<8x8xf32>
    %61 = vector.extract_strided_slice %30 {offsets = [0, 40], sizes = [8, 8], strides = [1, 1]} : vector<8x96xf32> to vector<8x8xf32>
    %62 = vector.extract_strided_slice %30 {offsets = [0, 72], sizes = [8, 8], strides = [1, 1]} : vector<8x96xf32> to vector<8x8xf32>
    %cst_30 = arith.constant dense<0.000000e+00> : vector<8x8xf32>
    %63 = tpu.matmul %60, %61, %cst_30 {dimension_numbers = #tpu.dot_dimension_numbers<[1], [1], [0], [0], [0, 0, 1, 0], [], []>} : vector<8x8xf32>, vector<8x8xf32>, vector<8x8xf32> -> vector<8x8xf32>
    %64 = arith.addf %63, %3 : vector<8x8xf32>
    %cst_31 = arith.constant dense<0xFF800000> : vector<8xf32>
    %65 = vector.multi_reduction <maximumf>, %64, %cst_31 [1] : vector<8x8xf32> to vector<8xf32>
    %66 = vector.shape_cast %65 : vector<8xf32> to vector<8x1xf32>
    %cst_32 = arith.constant -1.000000e+30 : f32
    %67 = vector.broadcast %cst_32 : f32 to vector<8x1xf32>
    %68 = arith.maximumf %66, %67 : vector<8x1xf32>
    %69 = vector.broadcast %68 : vector<8x1xf32> to vector<8x8xf32>
    %70 = arith.subf %64, %69 : vector<8x8xf32>
    %71 = math.exp %70 : vector<8x8xf32>
    %cst_33 = arith.constant dense<0.000000e+00> : vector<8xf32>
    %72 = vector.multi_reduction <add>, %71, %cst_33 [1] : vector<8x8xf32> to vector<8xf32>
    %73 = vector.shape_cast %72 : vector<8xf32> to vector<8x1xf32>
    %cst_34 = arith.constant 1.000000e-30 : f32
    %74 = vector.broadcast %cst_34 : f32 to vector<8x1xf32>
    %75 = arith.maximumf %73, %74 : vector<8x1xf32>
    %76 = tpu.reciprocal %75 {approx = true} : vector<8x1xf32> -> vector<8x1xf32>
    %cst_35 = arith.constant dense<0.000000e+00> : vector<8x8xf32>
    %77 = tpu.matmul %71, %62, %cst_35 {dimension_numbers = #tpu.dot_dimension_numbers<[1], [0], [0], [1], [0, 0, 1, 1], [], []>} : vector<8x8xf32>, vector<8x8xf32>, vector<8x8xf32> -> vector<8x8xf32>
    %78 = vector.broadcast %76 : vector<8x1xf32> to vector<8x8xf32>
    %79 = arith.mulf %77, %78 : vector<8x8xf32>
    %80 = vector.extract_strided_slice %31 {offsets = [8, 0], sizes = [8, 32], strides = [1, 1]} : vector<32x32xf32> to vector<8x32xf32>
    %cst_36 = arith.constant dense<0.000000e+00> : vector<8x32xf32>
    %81 = tpu.matmul %79, %80, %cst_36 {dimension_numbers = #tpu.dot_dimension_numbers<[1], [0], [0], [1], [0, 0, 1, 1], [], []>} : vector<8x8xf32>, vector<8x32xf32>, vector<8x32xf32> -> vector<8x32xf32>
    %82 = arith.addf %57, %81 : vector<8x32xf32>
    %83 = vector.extract_strided_slice %30 {offsets = [0, 16], sizes = [8, 8], strides = [1, 1]} : vector<8x96xf32> to vector<8x8xf32>
    %cst_37 = arith.constant 0.353553385 : f32
    %84 = vector.broadcast %cst_37 : f32 to vector<8x8xf32>
    %85 = arith.mulf %83, %84 : vector<8x8xf32>
    %86 = vector.extract_strided_slice %30 {offsets = [0, 48], sizes = [8, 8], strides = [1, 1]} : vector<8x96xf32> to vector<8x8xf32>
    %87 = vector.extract_strided_slice %30 {offsets = [0, 80], sizes = [8, 8], strides = [1, 1]} : vector<8x96xf32> to vector<8x8xf32>
    %cst_38 = arith.constant dense<0.000000e+00> : vector<8x8xf32>
    %88 = tpu.matmul %85, %86, %cst_38 {dimension_numbers = #tpu.dot_dimension_numbers<[1], [1], [0], [0], [0, 0, 1, 0], [], []>} : vector<8x8xf32>, vector<8x8xf32>, vector<8x8xf32> -> vector<8x8xf32>
    %89 = arith.addf %88, %3 : vector<8x8xf32>
    %cst_39 = arith.constant dense<0xFF800000> : vector<8xf32>
    %90 = vector.multi_reduction <maximumf>, %89, %cst_39 [1] : vector<8x8xf32> to vector<8xf32>
    %91 = vector.shape_cast %90 : vector<8xf32> to vector<8x1xf32>
    %cst_40 = arith.constant -1.000000e+30 : f32
    %92 = vector.broadcast %cst_40 : f32 to vector<8x1xf32>
    %93 = arith.maximumf %91, %92 : vector<8x1xf32>
    %94 = vector.broadcast %93 : vector<8x1xf32> to vector<8x8xf32>
    %95 = arith.subf %89, %94 : vector<8x8xf32>
    %96 = math.exp %95 : vector<8x8xf32>
    %cst_41 = arith.constant dense<0.000000e+00> : vector<8xf32>
    %97 = vector.multi_reduction <add>, %96, %cst_41 [1] : vector<8x8xf32> to vector<8xf32>
    %98 = vector.shape_cast %97 : vector<8xf32> to vector<8x1xf32>
    %cst_42 = arith.constant 1.000000e-30 : f32
    %99 = vector.broadcast %cst_42 : f32 to vector<8x1xf32>
    %100 = arith.maximumf %98, %99 : vector<8x1xf32>
    %101 = tpu.reciprocal %100 {approx = true} : vector<8x1xf32> -> vector<8x1xf32>
    %cst_43 = arith.constant dense<0.000000e+00> : vector<8x8xf32>
    %102 = tpu.matmul %96, %87, %cst_43 {dimension_numbers = #tpu.dot_dimension_numbers<[1], [0], [0], [1], [0, 0, 1, 1], [], []>} : vector<8x8xf32>, vector<8x8xf32>, vector<8x8xf32> -> vector<8x8xf32>
    %103 = vector.broadcast %101 : vector<8x1xf32> to vector<8x8xf32>
    %104 = arith.mulf %102, %103 : vector<8x8xf32>
    %105 = vector.extract_strided_slice %31 {offsets = [16, 0], sizes = [8, 32], strides = [1, 1]} : vector<32x32xf32> to vector<8x32xf32>
    %cst_44 = arith.constant dense<0.000000e+00> : vector<8x32xf32>
    %106 = tpu.matmul %104, %105, %cst_44 {dimension_numbers = #tpu.dot_dimension_numbers<[1], [0], [0], [1], [0, 0, 1, 1], [], []>} : vector<8x8xf32>, vector<8x32xf32>, vector<8x32xf32> -> vector<8x32xf32>
    %107 = arith.addf %82, %106 : vector<8x32xf32>
    %108 = vector.extract_strided_slice %30 {offsets = [0, 24], sizes = [8, 8], strides = [1, 1]} : vector<8x96xf32> to vector<8x8xf32>
    %cst_45 = arith.constant 0.353553385 : f32
    %109 = vector.broadcast %cst_45 : f32 to vector<8x8xf32>
    %110 = arith.mulf %108, %109 : vector<8x8xf32>
    %111 = vector.extract_strided_slice %30 {offsets = [0, 56], sizes = [8, 8], strides = [1, 1]} : vector<8x96xf32> to vector<8x8xf32>
    %112 = vector.extract_strided_slice %30 {offsets = [0, 88], sizes = [8, 8], strides = [1, 1]} : vector<8x96xf32> to vector<8x8xf32>
    %cst_46 = arith.constant dense<0.000000e+00> : vector<8x8xf32>
    %113 = tpu.matmul %110, %111, %cst_46 {dimension_numbers = #tpu.dot_dimension_numbers<[1], [1], [0], [0], [0, 0, 1, 0], [], []>} : vector<8x8xf32>, vector<8x8xf32>, vector<8x8xf32> -> vector<8x8xf32>
    %114 = arith.addf %113, %3 : vector<8x8xf32>
    %cst_47 = arith.constant dense<0xFF800000> : vector<8xf32>
    %115 = vector.multi_reduction <maximumf>, %114, %cst_47 [1] : vector<8x8xf32> to vector<8xf32>
    %116 = vector.shape_cast %115 : vector<8xf32> to vector<8x1xf32>
    %cst_48 = arith.constant -1.000000e+30 : f32
    %117 = vector.broadcast %cst_48 : f32 to vector<8x1xf32>
    %118 = arith.maximumf %116, %117 : vector<8x1xf32>
    %119 = vector.broadcast %118 : vector<8x1xf32> to vector<8x8xf32>
    %120 = arith.subf %114, %119 : vector<8x8xf32>
    %121 = math.exp %120 : vector<8x8xf32>
    %cst_49 = arith.constant dense<0.000000e+00> : vector<8xf32>
    %122 = vector.multi_reduction <add>, %121, %cst_49 [1] : vector<8x8xf32> to vector<8xf32>
    %123 = vector.shape_cast %122 : vector<8xf32> to vector<8x1xf32>
    %cst_50 = arith.constant 1.000000e-30 : f32
    %124 = vector.broadcast %cst_50 : f32 to vector<8x1xf32>
    %125 = arith.maximumf %123, %124 : vector<8x1xf32>
    %126 = tpu.reciprocal %125 {approx = true} : vector<8x1xf32> -> vector<8x1xf32>
    %cst_51 = arith.constant dense<0.000000e+00> : vector<8x8xf32>
    %127 = tpu.matmul %121, %112, %cst_51 {dimension_numbers = #tpu.dot_dimension_numbers<[1], [0], [0], [1], [0, 0, 1, 1], [], []>} : vector<8x8xf32>, vector<8x8xf32>, vector<8x8xf32> -> vector<8x8xf32>
    %128 = vector.broadcast %126 : vector<8x1xf32> to vector<8x8xf32>
    %129 = arith.mulf %127, %128 : vector<8x8xf32>
    %130 = vector.extract_strided_slice %31 {offsets = [24, 0], sizes = [8, 32], strides = [1, 1]} : vector<32x32xf32> to vector<8x32xf32>
    %cst_52 = arith.constant dense<0.000000e+00> : vector<8x32xf32>
    %131 = tpu.matmul %129, %130, %cst_52 {dimension_numbers = #tpu.dot_dimension_numbers<[1], [0], [0], [1], [0, 0, 1, 1], [], []>} : vector<8x8xf32>, vector<8x32xf32>, vector<8x32xf32> -> vector<8x32xf32>
    %132 = arith.addf %107, %131 : vector<8x32xf32>
    %133 = arith.addf %1, %132 : vector<8x32xf32>
    %c0_53 = arith.constant 0 : index
    %c0_54 = arith.constant 0 : index
    %134 = vector.load %arg9[%c0_53, %c0_54] : memref<1x32xf32, #tpu.memory_space<vmem>>, vector<1x32xf32>
    %135 = vector.broadcast %134 : vector<1x32xf32> to vector<8x32xf32>
    %136 = arith.addf %133, %135 : vector<8x32xf32>
    %c0_55 = arith.constant 0 : index
    %c0_56 = arith.constant 0 : index
    %137 = vector.load %arg10[%c0_55, %c0_56] : memref<1x32xf32, #tpu.memory_space<vmem>>, vector<1x32xf32>
    %c0_57 = arith.constant 0 : index
    %c0_58 = arith.constant 0 : index
    %138 = vector.load %arg11[%c0_57, %c0_58] : memref<1x32xf32, #tpu.memory_space<vmem>>, vector<1x32xf32>
    %cst_59 = arith.constant dense<0.000000e+00> : vector<8xf32>
    %139 = vector.multi_reduction <add>, %136, %cst_59 [1] : vector<8x32xf32> to vector<8xf32>
    %140 = vector.shape_cast %139 : vector<8xf32> to vector<8x1xf32>
    %cst_60 = arith.constant 3.200000e+01 : f32
    %141 = vector.broadcast %cst_60 : f32 to vector<8x1xf32>
    %142 = arith.divf %140, %141 : vector<8x1xf32>
    %143 = vector.broadcast %142 : vector<8x1xf32> to vector<8x32xf32>
    %144 = arith.subf %136, %143 : vector<8x32xf32>
    %145 = arith.mulf %144, %144 : vector<8x32xf32>
    %cst_61 = arith.constant dense<0.000000e+00> : vector<8xf32>
    %146 = vector.multi_reduction <add>, %145, %cst_61 [1] : vector<8x32xf32> to vector<8xf32>
    %147 = vector.shape_cast %146 : vector<8xf32> to vector<8x1xf32>
    %cst_62 = arith.constant 3.200000e+01 : f32
    %148 = vector.broadcast %cst_62 : f32 to vector<8x1xf32>
    %149 = arith.divf %147, %148 : vector<8x1xf32>
    %cst_63 = arith.constant 9.99999974E-6 : f32
    %150 = vector.broadcast %cst_63 : f32 to vector<8x1xf32>
    %151 = arith.addf %149, %150 : vector<8x1xf32>
    %152 = math.rsqrt %151 : vector<8x1xf32>
    %153 = vector.broadcast %152 : vector<8x1xf32> to vector<8x32xf32>
    %154 = arith.mulf %144, %153 : vector<8x32xf32>
    %155 = vector.broadcast %137 : vector<1x32xf32> to vector<8x32xf32>
    %156 = arith.mulf %154, %155 : vector<8x32xf32>
    %157 = vector.broadcast %138 : vector<1x32xf32> to vector<8x32xf32>
    %158 = arith.addf %156, %157 : vector<8x32xf32>
    %c0_64 = arith.constant 0 : index
    %c0_65 = arith.constant 0 : index
    %159 = vector.load %arg12[%c0_64, %c0_65] : memref<32x64xf32, #tpu.memory_space<vmem>>, vector<32x64xf32>
    %cst_66 = arith.constant dense<0.000000e+00> : vector<8x64xf32>
    %160 = tpu.matmul %158, %159, %cst_66 {dimension_numbers = #tpu.dot_dimension_numbers<[1], [0], [0], [1], [0, 0, 1, 1], [], []>} : vector<8x32xf32>, vector<32x64xf32>, vector<8x64xf32> -> vector<8x64xf32>
    %c0_67 = arith.constant 0 : index
    %c0_68 = arith.constant 0 : index
    %161 = vector.load %arg13[%c0_67, %c0_68] : memref<1x64xf32, #tpu.memory_space<vmem>>, vector<1x64xf32>
    %162 = vector.broadcast %161 : vector<1x64xf32> to vector<8x64xf32>
    %163 = arith.addf %160, %162 : vector<8x64xf32>
    %cst_69 = arith.constant 5.000000e-01 : f32
    %164 = vector.broadcast %cst_69 : f32 to vector<8x64xf32>
    %165 = arith.mulf %164, %163 : vector<8x64xf32>
    %cst_70 = arith.constant 0.707106769 : f32
    %166 = vector.broadcast %cst_70 : f32 to vector<8x64xf32>
    %167 = arith.mulf %163, %166 : vector<8x64xf32>
    %cst_71 = arith.constant 0.000000e+00 : f32
    %168 = vector.broadcast %cst_71 : f32 to vector<8x64xf32>
    %169 = arith.cmpf oge, %167, %168 : vector<8x64xf32>
    %cst_72 = arith.constant 1.000000e+00 : f32
    %cst_73 = arith.constant -1.000000e+00 : f32
    %170 = vector.broadcast %cst_72 : f32 to vector<8x64xf32>
    %171 = vector.broadcast %cst_73 : f32 to vector<8x64xf32>
    %172 = arith.select %169, %170, %171 : vector<8x64xi1>, vector<8x64xf32>
    %173 = math.absf %167 : vector<8x64xf32>
    %cst_74 = arith.constant 0.327591091 : f32
    %174 = vector.broadcast %cst_74 : f32 to vector<8x64xf32>
    %175 = arith.mulf %174, %173 : vector<8x64xf32>
    %cst_75 = arith.constant 1.000000e+00 : f32
    %176 = vector.broadcast %cst_75 : f32 to vector<8x64xf32>
    %177 = arith.addf %176, %175 : vector<8x64xf32>
    %cst_76 = arith.constant 1.000000e+00 : f32
    %178 = vector.broadcast %cst_76 : f32 to vector<8x64xf32>
    %179 = arith.divf %178, %177 : vector<8x64xf32>
    %cst_77 = arith.constant 1.06140542 : f32
    %180 = vector.broadcast %cst_77 : f32 to vector<8x64xf32>
    %181 = arith.mulf %180, %179 : vector<8x64xf32>
    %cst_78 = arith.constant -1.45315206 : f32
    %182 = vector.broadcast %cst_78 : f32 to vector<8x64xf32>
    %183 = arith.addf %181, %182 : vector<8x64xf32>
    %184 = arith.mulf %183, %179 : vector<8x64xf32>
    %cst_79 = arith.constant 1.42141378 : f32
    %185 = vector.broadcast %cst_79 : f32 to vector<8x64xf32>
    %186 = arith.addf %184, %185 : vector<8x64xf32>
    %187 = arith.mulf %186, %179 : vector<8x64xf32>
    %cst_80 = arith.constant -0.284496725 : f32
    %188 = vector.broadcast %cst_80 : f32 to vector<8x64xf32>
    %189 = arith.addf %187, %188 : vector<8x64xf32>
    %190 = arith.mulf %189, %179 : vector<8x64xf32>
    %cst_81 = arith.constant 0.254829586 : f32
    %191 = vector.broadcast %cst_81 : f32 to vector<8x64xf32>
    %192 = arith.addf %190, %191 : vector<8x64xf32>
    %193 = arith.mulf %192, %179 : vector<8x64xf32>
    %cst_82 = arith.constant 0.000000e+00 : f32
    %194 = vector.broadcast %cst_82 : f32 to vector<8x64xf32>
    %195 = arith.subf %194, %173 : vector<8x64xf32>
    %196 = arith.mulf %195, %173 : vector<8x64xf32>
    %197 = math.exp %196 : vector<8x64xf32>
    %198 = arith.mulf %193, %197 : vector<8x64xf32>
    %cst_83 = arith.constant 1.000000e+00 : f32
    %199 = vector.broadcast %cst_83 : f32 to vector<8x64xf32>
    %200 = arith.subf %199, %198 : vector<8x64xf32>
    %201 = arith.mulf %172, %200 : vector<8x64xf32>
    %cst_84 = arith.constant 1.000000e+00 : f32
    %202 = vector.broadcast %cst_84 : f32 to vector<8x64xf32>
    %203 = arith.addf %202, %201 : vector<8x64xf32>
    %204 = arith.mulf %165, %203 : vector<8x64xf32>
    %c0_85 = arith.constant 0 : index
    %c0_86 = arith.constant 0 : index
    %205 = vector.load %arg14[%c0_85, %c0_86] : memref<64x32xf32, #tpu.memory_space<vmem>>, vector<64x32xf32>
    %cst_87 = arith.constant dense<0.000000e+00> : vector<8x32xf32>
    %206 = tpu.matmul %204, %205, %cst_87 {dimension_numbers = #tpu.dot_dimension_numbers<[1], [0], [0], [1], [0, 0, 1, 1], [], []>} : vector<8x64xf32>, vector<64x32xf32>, vector<8x32xf32> -> vector<8x32xf32>
    %207 = arith.addf %136, %206 : vector<8x32xf32>
    %c0_88 = arith.constant 0 : index
    %c0_89 = arith.constant 0 : index
    %208 = vector.load %arg15[%c0_88, %c0_89] : memref<1x32xf32, #tpu.memory_space<vmem>>, vector<1x32xf32>
    %209 = vector.broadcast %208 : vector<1x32xf32> to vector<8x32xf32>
    %210 = arith.addf %207, %209 : vector<8x32xf32>
    %c0_90 = arith.constant 0 : index
    %c0_91 = arith.constant 0 : index
    %c0_92 = arith.constant 0 : index
    %211 = vector.load %arg16[%c0_90, %c0_91, %c0_92] : memref<1x8x32xf32, #tpu.memory_space<vmem>>, vector<1x8x32xf32>
    %212 = vector.shape_cast %211 : vector<1x8x32xf32> to vector<8x32xf32>
    %213 = vector.shape_cast %210 : vector<8x32xf32> to vector<1x8x32xf32>
    tpu.vector_store %arg16[%c0_90, %c0_91, %c0_92], %213 {strides = array<i32>} : memref<1x8x32xf32, #tpu.memory_space<vmem>>, vector<1x8x32xf32>,
    return
  }
  func.func @transform_0(%arg0: i32) -> (i32, i32, i32) {
    %c0_i32 = arith.constant 0 : i32
    %c0_i32_0 = arith.constant 0 : i32
    %c0_i32_1 = arith.constant 0 : i32
    return %arg0, %c0_i32, %c0_i32_0 : i32, i32, i32
  }
  func.func @transform_1(%arg0: i32) -> (i32, i32) {
    %c0_i32 = arith.constant 0 : i32
    %c0_i32_0 = arith.constant 0 : i32
    %c0_i32_1 = arith.constant 0 : i32
    return %c0_i32, %c0_i32_0 : i32, i32
  }
  func.func @transform_2(%arg0: i32) -> (i32, i32, i32) {
    %c0_i32 = arith.constant 0 : i32
    %c0_i32_0 = arith.constant 0 : i32
    %c0_i32_1 = arith.constant 0 : i32
    return %arg0, %c0_i32, %c0_i32_0 : i32, i32, i32
  }
  func.func @transform_3(%arg0: i32) -> (i32, i32) {
    %c0_i32 = arith.constant 0 : i32
    %c0_i32_0 = arith.constant 0 : i32
    %c0_i32_1 = arith.constant 0 : i32
    return %c0_i32, %c0_i32_0 : i32, i32
  }
  func.func @transform_4(%arg0: i32) -> (i32, i32) {
    %c0_i32 = arith.constant 0 : i32
    %c0_i32_0 = arith.constant 0 : i32
    %c0_i32_1 = arith.constant 0 : i32
    return %c0_i32, %c0_i32_0 : i32, i32
  }
  func.func @transform_5(%arg0: i32) -> (i32, i32) {
    %c0_i32 = arith.constant 0 : i32
    %c0_i32_0 = arith.constant 0 : i32
    %c0_i32_1 = arith.constant 0 : i32
    return %c0_i32, %c0_i32_0 : i32, i32
  }
  func.func @transform_6(%arg0: i32) -> (i32, i32) {
    %c0_i32 = arith.constant 0 : i32
    %c0_i32_0 = arith.constant 0 : i32
    %c0_i32_1 = arith.constant 0 : i32
    return %c0_i32, %c0_i32_0 : i32, i32
  }
  func.func @transform_7(%arg0: i32) -> (i32, i32) {
    %c0_i32 = arith.constant 0 : i32
    %c0_i32_0 = arith.constant 0 : i32
    %c0_i32_1 = arith.constant 0 : i32
    return %c0_i32, %c0_i32_0 : i32, i32
  }
  func.func @transform_8(%arg0: i32) -> (i32, i32) {
    %c0_i32 = arith.constant 0 : i32
    %c0_i32_0 = arith.constant 0 : i32
    %c0_i32_1 = arith.constant 0 : i32
    return %c0_i32, %c0_i32_0 : i32, i32
  }
  func.func @transform_9(%arg0: i32) -> (i32, i32) {
    %c0_i32 = arith.constant 0 : i32
    %c0_i32_0 = arith.constant 0 : i32
    %c0_i32_1 = arith.constant 0 : i32
    return %c0_i32, %c0_i32_0 : i32, i32
  }
  func.func @transform_10(%arg0: i32) -> (i32, i32) {
    %c0_i32 = arith.constant 0 : i32
    %c0_i32_0 = arith.constant 0 : i32
    %c0_i32_1 = arith.constant 0 : i32
    return %c0_i32, %c0_i32_0 : i32, i32
  }
  func.func @transform_11(%arg0: i32) -> (i32, i32) {
    %c0_i32 = arith.constant 0 : i32
    %c0_i32_0 = arith.constant 0 : i32
    %c0_i32_1 = arith.constant 0 : i32
    return %c0_i32, %c0_i32_0 : i32, i32
  }
  func.func @transform_12(%arg0: i32) -> (i32, i32) {
    %c0_i32 = arith.constant 0 : i32
    %c0_i32_0 = arith.constant 0 : i32
    %c0_i32_1 = arith.constant 0 : i32
    return %c0_i32, %c0_i32_0 : i32, i32
  }
  func.func @transform_13(%arg0: i32) -> (i32, i32) {
    %c0_i32 = arith.constant 0 : i32
    %c0_i32_0 = arith.constant 0 : i32
    %c0_i32_1 = arith.constant 0 : i32
    return %c0_i32, %c0_i32_0 : i32, i32
  }
  func.func @transform_14(%arg0: i32) -> (i32, i32) {
    %c0_i32 = arith.constant 0 : i32
    %c0_i32_0 = arith.constant 0 : i32
    %c0_i32_1 = arith.constant 0 : i32
    return %c0_i32, %c0_i32_0 : i32, i32
  }
  func.func @transform_15(%arg0: i32) -> (i32, i32, i32) {
    %c0_i32 = arith.constant 0 : i32
    %c0_i32_0 = arith.constant 0 : i32
    %c0_i32_1 = arith.constant 0 : i32
    return %arg0, %c0_i32, %c0_i32_0 : i32, i32, i32
  }
}

</mosaic_0001>

<llo_original>
// kernel: transformer_forward.5
$region0: #{transformer_forward.5}
  #allocation0 [shape = 'u32[]', space=smem, size = 0x4, offset = 0x4, fixed_abs, tag = 'smem constant byte address 0x4 - core index']
  #allocation1 [shape = 'u32[144,128]{1,0:T(1,128)}', space=vmem, size = 0x12000, scoped, tag = 'internal scratch']
  %s0 = inlined_call_operand.vmem [shape: f32[16,32], index: 0, kind: input, shape index: {}]
  %s1 = inlined_call_operand.vmem [shape: f32[32,64], index: 1, kind: input, shape index: {}]
  %s2 = inlined_call_operand.vmem [shape: f32[1,64], index: 2, kind: input, shape index: {}]
  %s3 = inlined_call_operand.vmem [shape: f32[16,64], index: 3, kind: output, shape index: {}]
  %s4 = sld [smem:[#allocation0]]
  $region45: #{transformer_forward.5} parent=0
    _
  %s6 = ssub.s32 1, %s4
  %s7 = scalar_select 0, %s6, %s4
  loop: start=0, step=1, limit=4
  $region2: #{transformer_forward.5} parent=0 // loop_pre_header
    _
  $region3: #{transformer_forward.5} parent=0 // loop_header
    %s9 = sphi 0, %s13
    %p10 = scmp.ge.s32.totalorder %s9, 4
    %s19 = sphi 0, %s21
    %s22 = sphi 0, %s19
    %s23 = sphi 0, %s22
    %s39 = sphi 0, %s23
    %s43 = sphi 0, %s43
    %s45 = sphi 0, %s43
    %s46 = sphi 0, %s45
    %s60 = sphi 0, %s46
    %s64 = sphi 0, %s64
    %s66 = sphi 0, %s64
    %s67 = sphi 0, %s66
    %s81 = sphi 0, %s67
    %s87 = sphi 0, %s89
    %s90 = sphi 0, %s87
    %s91 = sphi 0, %s90
    %s107 = sphi 0, %s91
  $region4: #{transformer_forward.5} parent=0 // loop_header_branch
    %12 = sbr.rel (%p10) target = $region8
  $region5: #{transformer_forward.5} parent=0 // loop_body
    %s14 = ssub.s32 %s9, 1
    %s15 = ssub.s32 %s9, 2
    %s16 = sadd.s32 %s9, 1
    %s17 = ssub.s32 %s9, %s16
    %p18 = scmp.eq.s32.totalorder %s17, 0
    %s20 = sadd.s32 %s19, 1
    %s21 = scalar_select %p18, %s19, %s20
    %p24 = pneg %p18
    %p25 = scmp.eq.s32.totalorder %s9, 1
    %p26 = por %p24, %p25
    %p27 = scmp.ne.s32.totalorder %s19, %s22
    %p28 = scmp.eq.s32.totalorder %s9, 0
    %p29 = por %p27, %p28
    %p30 = scmp.ne.s32.totalorder %s19, %s22
    %p31 = scmp.eq.s32.totalorder %s14, 1
    %p32 = por %p30, %p31
    %p33 = scmp.ne.s32.totalorder %s22, %s23
    %p34 = scmp.eq.s32.totalorder %s14, 0
    %p35 = por %p33, %p34
    %p36 = scmp.ne.s32.totalorder %s22, %s23
    %p37 = scmp.eq.s32.totalorder %s15, 1
    %p38 = por %p36, %p37
    %p40 = scmp.ne.s32.totalorder %s23, %s39
    %p41 = scmp.eq.s32.totalorder %s15, 0
    %p42 = por %p40, %p41
    %s44 = sadd.s32 %s43, 1
    %p47 = scmp.eq.s32.totalorder %s9, 1
    %p48 = scmp.ne.s32.totalorder %s43, %s45
    %p49 = scmp.eq.s32.totalorder %s9, 0
    %p50 = por %p48, %p49
    %p51 = scmp.ne.s32.totalorder %s43, %s45
    %p52 = scmp.eq.s32.totalorder %s14, 1
    %p53 = por %p51, %p52
    %p54 = scmp.ne.s32.totalorder %s45, %s46
    %p55 = scmp.eq.s32.totalorder %s14, 0
    %p56 = por %p54, %p55
    %p57 = scmp.ne.s32.totalorder %s45, %s46
    %p58 = scmp.eq.s32.totalorder %s15, 1
    %p59 = por %p57, %p58
    %p61 = scmp.ne.s32.totalorder %s46, %s60
    %p62 = scmp.eq.s32.totalorder %s15, 0
    %p63 = por %p61, %p62
    %s65 = sadd.s32 %s64, 1
    %p68 = scmp.eq.s32.totalorder %s9, 1
    %p69 = scmp.ne.s32.totalorder %s64, %s66
    %p70 = scmp.eq.s32.totalorder %s9, 0
    %p71 = por %p69, %p70
    %p72 = scmp.ne.s32.totalorder %s64, %s66
    %p73 = scmp.eq.s32.totalorder %s14, 1
    %p74 = por %p72, %p73
    %p75 = scmp.ne.s32.totalorder %s66, %s67
    %p76 = scmp.eq.s32.totalorder %s14, 0
    %p77 = por %p75, %p76
    %p78 = scmp.ne.s32.totalorder %s66, %s67
    %p79 = scmp.eq.s32.totalorder %s15, 1
    %p80 = por %p78, %p79
    %p82 = scmp.ne.s32.totalorder %s67, %s81
    %p83 = scmp.eq.s32.totalorder %s15, 0
    %p84 = por %p82, %p83
    %s85 = ssub.s32 %s9, %s16
    %p86 = scmp.eq.s32.totalorder %s85, 0
    %s88 = sadd.s32 %s87, 1
    %s89 = scalar_select %p86, %s87, %s88
    %p92 = pneg %p86
    %p93 = scmp.eq.s32.totalorder %s9, 1
    %p94 = por %p92, %p93
    %p95 = scmp.ne.s32.totalorder %s87, %s90
    %p96 = scmp.eq.s32.totalorder %s9, 0
    %p97 = por %p95, %p96
    %p98 = scmp.ne.s32.totalorder %s87, %s90
    %p99 = scmp.eq.s32.totalorder %s14, 1
    %p100 = por %p98, %p99
    %p101 = scmp.ne.s32.totalorder %s90, %s91
    %p102 = scmp.eq.s32.totalorder %s14, 0
    %p103 = por %p101, %p102
    %p104 = scmp.ne.s32.totalorder %s90, %s91
    %p105 = scmp.eq.s32.totalorder %s15, 1
    %p106 = por %p104, %p105
    %p108 = scmp.ne.s32.totalorder %s91, %s107
    %p109 = scmp.eq.s32.totalorder %s15, 0
    %p110 = por %p108, %p109
    %p111 = scmp.le.s32.totalorder 1, %s9
    %p112 = scmp.lt.s32.totalorder %s9, 3
    %p113 = pnand %p111, %p112
    %p114 = pneg %p113
    // Predicated region
    $region9: #{transformer_forward.5} parent=5 // pred_check
      _
    $region10: #{transformer_forward.5} parent=5 // pred_check_branch
      %116 = sbr.rel (%p113) target = $region12
    $region11: #{transformer_forward.5} parent=5 // pred_region
      %s117 = ssub.s32 %s9, 1
      // Predicated region
      $region13: #{transformer_forward.5} parent=11 // pred_check
        %p118 = pneg %p56
      $region14: #{transformer_forward.5} parent=11 // pred_check_branch
        %120 = sbr.rel (%p118) target = $region16
      $region15: #{transformer_forward.5} parent=11 // pred_region
        _
      $region16: #{transformer_forward.5} parent=11 // pred_fallthru
        _
      // Predicated region
      $region17: #{transformer_forward.5} parent=11 // pred_check
        %p121 = pneg %p77
      $region18: #{transformer_forward.5} parent=11 // pred_check_branch
        %123 = sbr.rel (%p121) target = $region20
      $region19: #{transformer_forward.5} parent=11 // pred_region
        _
      $region20: #{transformer_forward.5} parent=11 // pred_fallthru
        _
    $region12: #{transformer_forward.5} parent=5 // pred_fallthru
      _
    %p124 = scmp.lt.s32.totalorder %s9, 2
    // Predicated region
    $region21: #{transformer_forward.5} parent=5 // pred_check
      %p125 = pneg %p124
    $region22: #{transformer_forward.5} parent=5 // pred_check_branch
      %127 = sbr.rel (%p125) target = $region24
    $region23: #{transformer_forward.5} parent=5 // pred_region
      // Predicated region
      $region25: #{transformer_forward.5} parent=23 // pred_check
        %p128 = pneg %p29
      $region26: #{transformer_forward.5} parent=23 // pred_check_branch
        %130 = sbr.rel (%p128) target = $region28
      $region27: #{transformer_forward.5} parent=23 // pred_region
        %p131 = scmp.lt.s32.totalorder %s9, 1
        %s132 = scalar_select %p131, %s9, 1
        %s133 = smul.addr %s132, 8
        %s134 = scalar_lea.vmem %s0, %s133
      $region28: #{transformer_forward.5} parent=23 // pred_fallthru
        _
    $region24: #{transformer_forward.5} parent=5 // pred_fallthru
      _
    %p135 = scmp.le.s32.totalorder 1, %s9
    %p136 = scmp.lt.s32.totalorder %s9, 3
    %p137 = pnand %p135, %p136
    %p138 = pneg %p137
    // Predicated region
    $region29: #{transformer_forward.5} parent=5 // pred_check
      _
    $region30: #{transformer_forward.5} parent=5 // pred_check_branch
      %140 = sbr.rel (%p137) target = $region32
    $region31: #{transformer_forward.5} parent=5 // pred_region
      %s141 = ssub.s32 %s9, 1
      %p142 = scmp.lt.s32.totalorder %s14, 1
      %s143 = scalar_select %p142, %s14, 1
      %s144 = smul.addr %s143, 8
      %s145 = scalar_lea.vmem %s0, %s144
      %p146 = pneg %p35
      %p147 = pneg %p32
      %p148 = pneg %p56
      %p149 = pneg %p53
      %p150 = pneg %p77
      %p151 = pneg %p74
      %p152 = pneg %p103
      %p153 = pneg %p100
      %p154 = scmp.lt.s32.totalorder %s14, 1
      %s155 = scalar_select %p154, %s14, 1
      %s156 = smul.addr %s155, 8
      %s157 = scalar_lea.vmem %s3, %s156
      %p158 = scmp.lt.s32.totalorder %s14, 1
      %s159 = scalar_select %p158, %s14, 1
      %s160 = smul.addr %s159, 8
      %s161 = scalar_lea.vmem %s0, %s160
      %p162 = scmp.lt.s32.totalorder %s14, 1
      %s163 = scalar_select %p162, %s14, 1
      %s164 = smul.addr %s163, 8
      %s165 = scalar_lea.vmem %s3, %s164
      %v166 = vld [vmem:[%s161] sm:$0xff]
      %v167 = vld [vmem:[%s1] sm:$0xff]
      %v168 = vld [vmem:[%s1 + $0x8] sm:$0xff]
      %v169 = vld [vmem:[%s1 + $0x10] sm:$0xff]
      %v170 = vld [vmem:[%s1 + $0x18] sm:$0xff]
      %v171 = vld [vmem:[%s2] sm:$0x1]
      %v173 = vlaneseq
      %v174 = vshrl.u32 %v173, 7
      %v175 = vsub.s32 0, %v174
      %v176 = vrot.slane %v171, %v175
      %vm178 = vcmask 261120
      %v180 = vsel %vm178, %v166, 0
      %182 = vmatprep.subr.mxu0 0.0
      %183 = vmatpush1.msra.mxu0 0.0
      %184 = vmatprep.subr.mxu0 0.0
      %185 = vmatpush1.msra.mxu0 0.0
      %186 = vmatprep.subr.mxu0 0.0
      %187 = vmatpush1.msra.mxu0 0.0
      %188 = vmatprep.subr.mxu0 0.0
      %189 = vmatpush1.msra.mxu0 0.0
      %190 = vmatprep.subr.mxu0 0.0
      %191 = vmatpush1.msra.mxu0 0.0
      %192 = vmatprep.subr.mxu0 0.0
      %193 = vmatpush1.msra.mxu0 0.0
      %194 = vmatprep.subr.mxu0 0.0
      %195 = vmatpush1.msra.mxu0 0.0
      %196 = vmatprep.subr.mxu0 0.0
      %197 = vmatpush1.msra.mxu0 0.0
      %198 = vmatprep.subr.mxu0 0.0
      %199 = vmatpush1.msra.mxu0 0.0
      %200 = vmatprep.subr.mxu0 0.0
      %201 = vmatpush1.msra.mxu0 0.0
      %202 = vmatprep.subr.mxu0 0.0
      %203 = vmatpush1.msra.mxu0 0.0
      %204 = vmatprep.subr.mxu0 0.0
      %205 = vmatpush1.msra.mxu0 0.0
      %206 = vmatprep.subr.mxu0 0.0
      %207 = vmatpush1.msra.mxu0 %v170
      %208 = vmatprep.subr.mxu0 0.0
      %209 = vmatpush1.msra.mxu0 %v169
      %210 = vmatprep.subr.mxu0 0.0
      %211 = vmatpush1.msra.mxu0 %v168
      %212 = vmatprep.subr.mxu0 0.0
      %213 = vmatpush1.msra.mxu0 %v167
      %214 = vmatprep.subr.mxu0 0.0
      %215 = vmatpush2.msra.mxu0 0.0
      %216 = vmatprep.subr.mxu0 0.0
      %217 = vmatpush2.msra.mxu0 0.0
      %218 = vmatprep.subr.mxu0 0.0
      %219 = vmatpush2.msra.mxu0 0.0
      %220 = vmatprep.subr.mxu0 0.0
      %221 = vmatpush2.msra.mxu0 0.0
      %222 = vmatprep.subr.mxu0 0.0
      %223 = vmatpush2.msra.mxu0 0.0
      %224 = vmatprep.subr.mxu0 0.0
      %225 = vmatpush2.msra.mxu0 0.0
      %226 = vmatprep.subr.mxu0 0.0
      %227 = vmatpush2.msra.mxu0 0.0
      %228 = vmatprep.subr.mxu0 0.0
      %229 = vmatpush2.msra.mxu0 0.0
      %230 = vmatprep.subr.mxu0 0.0
      %231 = vmatpush2.msra.mxu0 0.0
      %232 = vmatprep.subr.mxu0 0.0
      %233 = vmatpush2.msra.mxu0 0.0
      %234 = vmatprep.subr.mxu0 0.0
      %235 = vmatpush2.msra.mxu0 0.0
      %236 = vmatprep.subr.mxu0 0.0
      %237 = vmatpush2.msra.mxu0 0.0
      %238 = vmatprep.subr.mxu0 0.0
      %239 = vmatpush2.msra.mxu0 0.0
      %240 = vmatprep.subr.mxu0 0.0
      %241 = vmatpush2.msra.mxu0 0.0
      %242 = vmatprep.subr.mxu0 0.0
      %243 = vmatpush2.msra.mxu0 0.0
      %244 = vmatprep.subr.mxu0 0.0
      %245 = vmatpush2.msra.mxu0 0.0
      %246 = vmatprep.mubr.f32.mxu0 0.0
      %247 = vmatmul.mubr.f32.gmra.mxu0 %v180
      %v248 = vpop.f32.mrf.mxu0
      %v249 = vadd.f32 %v176, %v248
      %v250 = vpop.f32.mrf.mxu0
      %251 = vdwg.mxu0
      %vm252 = vcmask 523264
      %v253 = vsel %vm252, %v249, -inf
      %254 = vmax.xlane.f32.xlu0 %v253
      %v255 = vpop.xlane.xlu0 %254
      %v256 = vsub.f32 %v249, %v255
      %v257 = vmul.f32 %v256, 1.442695
      %v258 = vpow.pop %v257
      %v259 = vsel %vm252, %v258, 0.0
      %260 = vadd.xlane.f32.xlu0 %v259
      %v261 = vpop.xlane.xlu0 %260
      %v262 = vlog2.pop %v261
      %v263 = vmul.f32 %v262, 0.6931472
      %v264 = vadd.f32 %v263, %v255
      %v265 = vsub.f32 %v249, %v264
      %266 = vst.msk [vmem:[%s165] sm:$0xff] %vm252, %v265
      %p267 = scmp.lt.s32.totalorder %s14, 1
      %s268 = scalar_select %p267, %s14, 1
      %s269 = smul.addr %s268, 8
      %s270 = scalar_lea.vmem %s3, %s269
      // Predicated region
      $region33: #{transformer_forward.5} parent=31 // pred_check
        %p271 = pneg %p100
      $region34: #{transformer_forward.5} parent=31 // pred_check_branch
        %273 = sbr.rel (%p271) target = $region36
      $region35: #{transformer_forward.5} parent=31 // pred_region
        _
      $region36: #{transformer_forward.5} parent=31 // pred_fallthru
        _
    $region32: #{transformer_forward.5} parent=5 // pred_fallthru
      _
    %p274 = scmp.le.s32.totalorder 2, %s9
    // Predicated region
    $region37: #{transformer_forward.5} parent=5 // pred_check
      %p275 = pneg %p274
    $region38: #{transformer_forward.5} parent=5 // pred_check_branch
      %277 = sbr.rel (%p275) target = $region40
    $region39: #{transformer_forward.5} parent=5 // pred_region
      %s278 = ssub.s32 %s9, 2
      // Predicated region
      $region41: #{transformer_forward.5} parent=39 // pred_check
        %p279 = pneg %p106
      $region42: #{transformer_forward.5} parent=39 // pred_check_branch
        %281 = sbr.rel (%p279) target = $region44
      $region43: #{transformer_forward.5} parent=39 // pred_region
        %p282 = scmp.lt.s32.totalorder %s15, 1
        %s283 = scalar_select %p282, %s15, 1
        %s284 = smul.addr %s283, 8
        %s285 = scalar_lea.vmem %s3, %s284
      $region44: #{transformer_forward.5} parent=39 // pred_fallthru
        _
    $region40: #{transformer_forward.5} parent=5 // pred_fallthru
      _
  $region6: #{transformer_forward.5} parent=0 // loop_footer
    %s13 = sadd.s32 1, %s9
  $region7: #{transformer_forward.5} parent=0 // loop_footer_branch
    %8 = sbr.rel target = $region3
  $region8: #{transformer_forward.5} parent=0 // loop_exit
    _

// kernel: transformer_forward.3
$region0: #{transformer_forward.3}
  #allocation0 [shape = 'u32[]', space=smem, size = 0x4, offset = 0x4, fixed_abs, tag = 'smem constant byte address 0x4 - core index']
  #allocation1 [shape = 'u32[144,128]{1,0:T(1,128)}', space=vmem, size = 0x12000, scoped, tag = 'internal scratch']
  %s0 = inlined_call_operand.vmem [shape: f32[2,8,32], index: 0, kind: input, shape index: {}]
  %s1 = inlined_call_operand.vmem [shape: f32[8,32], index: 1, kind: input, shape index: {}]
  %s2 = inlined_call_operand.vmem [shape: f32[2,8,8], index: 2, kind: input, shape index: {}]
  %s3 = inlined_call_operand.vmem [shape: f32[1,32], index: 3, kind: input, shape index: {}]
  %s4 = inlined_call_operand.vmem [shape: f32[1,32], index: 4, kind: input, shape index: {}]
  %s5 = inlined_call_operand.vmem [shape: f32[32,96], index: 5, kind: input, shape index: {}]
  %s6 = inlined_call_operand.vmem [shape: f32[1,96], index: 6, kind: input, shape index: {}]
  %s7 = inlined_call_operand.vmem [shape: f32[32,32], index: 7, kind: input, shape index: {}]
  %s8 = inlined_call_operand.vmem [shape: f32[1,32], index: 8, kind: input, shape index: {}]
  %s9 = inlined_call_operand.vmem [shape: f32[1,32], index: 9, kind: input, shape index: {}]
  %s10 = inlined_call_operand.vmem [shape: f32[1,32], index: 10, kind: input, shape index: {}]
  %s11 = inlined_call_operand.vmem [shape: f32[32,64], index: 11, kind: input, shape index: {}]
  %s12 = inlined_call_operand.vmem [shape: f32[1,64], index: 12, kind: input, shape index: {}]
  %s13 = inlined_call_operand.vmem [shape: f32[64,32], index: 13, kind: input, shape index: {}]
  %s14 = inlined_call_operand.vmem [shape: f32[1,32], index: 14, kind: input, shape index: {}]
  %s15 = inlined_call_operand.vmem [shape: f32[2,8,32], index: 15, kind: output, shape index: {}]
  %s16 = sld [smem:[#allocation0]]
  $region93: #{transformer_forward.3} parent=0
    _
  %s18 = ssub.s32 1, %s16
  %s19 = scalar_select 0, %s18, %s16
  loop: start=0, step=1, limit=4
  $region2: #{transformer_forward.3} parent=0 // loop_pre_header
    _
  $region3: #{transformer_forward.3} parent=0 // loop_header
    %s21 = sphi 0, %s25
    %p22 = scmp.ge.s32.totalorder %s21, 4
    %s31 = sphi 0, %s33
    %s34 = sphi 0, %s31
    %s35 = sphi 0, %s34
    %s51 = sphi 0, %s35
    %s55 = sphi 0, %s55
    %s57 = sphi 0, %s55
    %s58 = sphi 0, %s57
    %s72 = sphi 0, %s58
    %s78 = sphi 0, %s80
    %s81 = sphi 0, %s78
    %s82 = sphi 0, %s81
    %s98 = sphi 0, %s82
    %s102 = sphi 0, %s102
    %s104 = sphi 0, %s102
    %s105 = sphi 0, %s104
    %s119 = sphi 0, %s105
    %s123 = sphi 0, %s123
    %s125 = sphi 0, %s123
    %s126 = sphi 0, %s125
    %s140 = sphi 0, %s126
    %s144 = sphi 0, %s144
    %s146 = sphi 0, %s144
    %s147 = sphi 0, %s146
    %s161 = sphi 0, %s147
    %s165 = sphi 0, %s165
    %s167 = sphi 0, %s165
    %s168 = sphi 0, %s167
    %s182 = sphi 0, %s168
    %s186 = sphi 0, %s186
    %s188 = sphi 0, %s186
    %s189 = sphi 0, %s188
    %s203 = sphi 0, %s189
    %s207 = sphi 0, %s207
    %s209 = sphi 0, %s207
    %s210 = sphi 0, %s209
    %s224 = sphi 0, %s210
    %s228 = sphi 0, %s228
    %s230 = sphi 0, %s228
    %s231 = sphi 0, %s230
    %s245 = sphi 0, %s231
    %s249 = sphi 0, %s249
    %s251 = sphi 0, %s249
    %s252 = sphi 0, %s251
    %s266 = sphi 0, %s252
    %s270 = sphi 0, %s270
    %s272 = sphi 0, %s270
    %s273 = sphi 0, %s272
    %s287 = sphi 0, %s273
    %s291 = sphi 0, %s291
    %s293 = sphi 0, %s291
    %s294 = sphi 0, %s293
    %s308 = sphi 0, %s294
    %s312 = sphi 0, %s312
    %s314 = sphi 0, %s312
    %s315 = sphi 0, %s314
    %s329 = sphi 0, %s315
    %s333 = sphi 0, %s333
    %s335 = sphi 0, %s333
    %s336 = sphi 0, %s335
    %s350 = sphi 0, %s336
    %s356 = sphi 0, %s358
    %s359 = sphi 0, %s356
    %s360 = sphi 0, %s359
    %s376 = sphi 0, %s360
  $region4: #{transformer_forward.3} parent=0 // loop_header_branch
    %24 = sbr.rel (%p22) target = $region8
  $region5: #{transformer_forward.3} parent=0 // loop_body
    %s26 = ssub.s32 %s21, 1
    %s27 = ssub.s32 %s21, 2
    %s28 = sadd.s32 %s21, 1
    %s29 = ssub.s32 %s21, %s28
    %p30 = scmp.eq.s32.totalorder %s29, 0
    %s32 = sadd.s32 %s31, 1
    %s33 = scalar_select %p30, %s31, %s32
    %p36 = pneg %p30
    %p37 = scmp.eq.s32.totalorder %s21, 1
    %p38 = por %p36, %p37
    %p39 = scmp.ne.s32.totalorder %s31, %s34
    %p40 = scmp.eq.s32.totalorder %s21, 0
    %p41 = por %p39, %p40
    %p42 = scmp.ne.s32.totalorder %s31, %s34
    %p43 = scmp.eq.s32.totalorder %s26, 1
    %p44 = por %p42, %p43
    %p45 = scmp.ne.s32.totalorder %s34, %s35
    %p46 = scmp.eq.s32.totalorder %s26, 0
    %p47 = por %p45, %p46
    %p48 = scmp.ne.s32.totalorder %s34, %s35
    %p49 = scmp.eq.s32.totalorder %s27, 1
    %p50 = por %p48, %p49
    %p52 = scmp.ne.s32.totalorder %s35, %s51
    %p53 = scmp.eq.s32.totalorder %s27, 0
    %p54 = por %p52, %p53
    %s56 = sadd.s32 %s55, 1
    %p59 = scmp.eq.s32.totalorder %s21, 1
    %p60 = scmp.ne.s32.totalorder %s55, %s57
    %p61 = scmp.eq.s32.totalorder %s21, 0
    %p62 = por %p60, %p61
    %p63 = scmp.ne.s32.totalorder %s55, %s57
    %p64 = scmp.eq.s32.totalorder %s26, 1
    %p65 = por %p63, %p64
    %p66 = scmp.ne.s32.totalorder %s57, %s58
    %p67 = scmp.eq.s32.totalorder %s26, 0
    %p68 = por %p66, %p67
    %p69 = scmp.ne.s32.totalorder %s57, %s58
    %p70 = scmp.eq.s32.totalorder %s27, 1
    %p71 = por %p69, %p70
    %p73 = scmp.ne.s32.totalorder %s58, %s72
    %p74 = scmp.eq.s32.totalorder %s27, 0
    %p75 = por %p73, %p74
    %s76 = ssub.s32 %s21, %s28
    %p77 = scmp.eq.s32.totalorder %s76, 0
    %s79 = sadd.s32 %s78, 1
    %s80 = scalar_select %p77, %s78, %s79
    %p83 = pneg %p77
    %p84 = scmp.eq.s32.totalorder %s21, 1
    %p85 = por %p83, %p84
    %p86 = scmp.ne.s32.totalorder %s78, %s81
    %p87 = scmp.eq.s32.totalorder %s21, 0
    %p88 = por %p86, %p87
    %p89 = scmp.ne.s32.totalorder %s78, %s81
    %p90 = scmp.eq.s32.totalorder %s26, 1
    %p91 = por %p89, %p90
    %p92 = scmp.ne.s32.totalorder %s81, %s82
    %p93 = scmp.eq.s32.totalorder %s26, 0
    %p94 = por %p92, %p93
    %p95 = scmp.ne.s32.totalorder %s81, %s82
    %p96 = scmp.eq.s32.totalorder %s27, 1
    %p97 = por %p95, %p96
    %p99 = scmp.ne.s32.totalorder %s82, %s98
    %p100 = scmp.eq.s32.totalorder %s27, 0
    %p101 = por %p99, %p100
    %s103 = sadd.s32 %s102, 1
    %p106 = scmp.eq.s32.totalorder %s21, 1
    %p107 = scmp.ne.s32.totalorder %s102, %s104
    %p108 = scmp.eq.s32.totalorder %s21, 0
    %p109 = por %p107, %p108
    %p110 = scmp.ne.s32.totalorder %s102, %s104
    %p111 = scmp.eq.s32.totalorder %s26, 1
    %p112 = por %p110, %p111
    %p113 = scmp.ne.s32.totalorder %s104, %s105
    %p114 = scmp.eq.s32.totalorder %s26, 0
    %p115 = por %p113, %p114
    %p116 = scmp.ne.s32.totalorder %s104, %s105
    %p117 = scmp.eq.s32.totalorder %s27, 1
    %p118 = por %p116, %p117
    %p120 = scmp.ne.s32.totalorder %s105, %s119
    %p121 = scmp.eq.s32.totalorder %s27, 0
    %p122 = por %p120, %p121
    %s124 = sadd.s32 %s123, 1
    %p127 = scmp.eq.s32.totalorder %s21, 1
    %p128 = scmp.ne.s32.totalorder %s123, %s125
    %p129 = scmp.eq.s32.totalorder %s21, 0
    %p130 = por %p128, %p129
    %p131 = scmp.ne.s32.totalorder %s123, %s125
    %p132 = scmp.eq.s32.totalorder %s26, 1
    %p133 = por %p131, %p132
    %p134 = scmp.ne.s32.totalorder %s125, %s126
    %p135 = scmp.eq.s32.totalorder %s26, 0
    %p136 = por %p134, %p135
    %p137 = scmp.ne.s32.totalorder %s125, %s126
    %p138 = scmp.eq.s32.totalorder %s27, 1
    %p139 = por %p137, %p138
    %p141 = scmp.ne.s32.totalorder %s126, %s140
    %p142 = scmp.eq.s32.totalorder %s27, 0
    %p143 = por %p141, %p142
    %s145 = sadd.s32 %s144, 1
    %p148 = scmp.eq.s32.totalorder %s21, 1
    %p149 = scmp.ne.s32.totalorder %s144, %s146
    %p150 = scmp.eq.s32.totalorder %s21, 0
    %p151 = por %p149, %p150
    %p152 = scmp.ne.s32.totalorder %s144, %s146
    %p153 = scmp.eq.s32.totalorder %s26, 1
    %p154 = por %p152, %p153
    %p155 = scmp.ne.s32.totalorder %s146, %s147
    %p156 = scmp.eq.s32.totalorder %s26, 0
    %p157 = por %p155, %p156
    %p158 = scmp.ne.s32.totalorder %s146, %s147
    %p159 = scmp.eq.s32.totalorder %s27, 1
    %p160 = por %p158, %p159
    %p162 = scmp.ne.s32.totalorder %s147, %s161
    %p163 = scmp.eq.s32.totalorder %s27, 0
    %p164 = por %p162, %p163
    %s166 = sadd.s32 %s165, 1
    %p169 = scmp.eq.s32.totalorder %s21, 1
    %p170 = scmp.ne.s32.totalorder %s165, %s167
    %p171 = scmp.eq.s32.totalorder %s21, 0
    %p172 = por %p170, %p171
    %p173 = scmp.ne.s32.totalorder %s165, %s167
    %p174 = scmp.eq.s32.totalorder %s26, 1
    %p175 = por %p173, %p174
    %p176 = scmp.ne.s32.totalorder %s167, %s168
    %p177 = scmp.eq.s32.totalorder %s26, 0
    %p178 = por %p176, %p177
    %p179 = scmp.ne.s32.totalorder %s167, %s168
    %p180 = scmp.eq.s32.totalorder %s27, 1
    %p181 = por %p179, %p180
    %p183 = scmp.ne.s32.totalorder %s168, %s182
    %p184 = scmp.eq.s32.totalorder %s27, 0
    %p185 = por %p183, %p184
    %s187 = sadd.s32 %s186, 1
    %p190 = scmp.eq.s32.totalorder %s21, 1
    %p191 = scmp.ne.s32.totalorder %s186, %s188
    %p192 = scmp.eq.s32.totalorder %s21, 0
    %p193 = por %p191, %p192
    %p194 = scmp.ne.s32.totalorder %s186, %s188
    %p195 = scmp.eq.s32.totalorder %s26, 1
    %p196 = por %p194, %p195
    %p197 = scmp.ne.s32.totalorder %s188, %s189
    %p198 = scmp.eq.s32.totalorder %s26, 0
    %p199 = por %p197, %p198
    %p200 = scmp.ne.s32.totalorder %s188, %s189
    %p201 = scmp.eq.s32.totalorder %s27, 1
    %p202 = por %p200, %p201
    %p204 = scmp.ne.s32.totalorder %s189, %s203
    %p205 = scmp.eq.s32.totalorder %s27, 0
    %p206 = por %p204, %p205
    %s208 = sadd.s32 %s207, 1
    %p211 = scmp.eq.s32.totalorder %s21, 1
    %p212 = scmp.ne.s32.totalorder %s207, %s209
    %p213 = scmp.eq.s32.totalorder %s21, 0
    %p214 = por %p212, %p213
    %p215 = scmp.ne.s32.totalorder %s207, %s209
    %p216 = scmp.eq.s32.totalorder %s26, 1
    %p217 = por %p215, %p216
    %p218 = scmp.ne.s32.totalorder %s209, %s210
    %p219 = scmp.eq.s32.totalorder %s26, 0
    %p220 = por %p218, %p219
    %p221 = scmp.ne.s32.totalorder %s209, %s210
    %p222 = scmp.eq.s32.totalorder %s27, 1
    %p223 = por %p221, %p222
    %p225 = scmp.ne.s32.totalorder %s210, %s224
    %p226 = scmp.eq.s32.totalorder %s27, 0
    %p227 = por %p225, %p226
    %s229 = sadd.s32 %s228, 1
    %p232 = scmp.eq.s32.totalorder %s21, 1
    %p233 = scmp.ne.s32.totalorder %s228, %s230
    %p234 = scmp.eq.s32.totalorder %s21, 0
    %p235 = por %p233, %p234
    %p236 = scmp.ne.s32.totalorder %s228, %s230
    %p237 = scmp.eq.s32.totalorder %s26, 1
    %p238 = por %p236, %p237
    %p239 = scmp.ne.s32.totalorder %s230, %s231
    %p240 = scmp.eq.s32.totalorder %s26, 0
    %p241 = por %p239, %p240
    %p242 = scmp.ne.s32.totalorder %s230, %s231
    %p243 = scmp.eq.s32.totalorder %s27, 1
    %p244 = por %p242, %p243
    %p246 = scmp.ne.s32.totalorder %s231, %s245
    %p247 = scmp.eq.s32.totalorder %s27, 0
    %p248 = por %p246, %p247
    %s250 = sadd.s32 %s249, 1
    %p253 = scmp.eq.s32.totalorder %s21, 1
    %p254 = scmp.ne.s32.totalorder %s249, %s251
    %p255 = scmp.eq.s32.totalorder %s21, 0
    %p256 = por %p254, %p255
    %p257 = scmp.ne.s32.totalorder %s249, %s251
    %p258 = scmp.eq.s32.totalorder %s26, 1
    %p259 = por %p257, %p258
    %p260 = scmp.ne.s32.totalorder %s251, %s252
    %p261 = scmp.eq.s32.totalorder %s26, 0
    %p262 = por %p260, %p261
    %p263 = scmp.ne.s32.totalorder %s251, %s252
    %p264 = scmp.eq.s32.totalorder %s27, 1
    %p265 = por %p263, %p264
    %p267 = scmp.ne.s32.totalorder %s252, %s266
    %p268 = scmp.eq.s32.totalorder %s27, 0
    %p269 = por %p267, %p268
    %s271 = sadd.s32 %s270, 1
    %p274 = scmp.eq.s32.totalorder %s21, 1
    %p275 = scmp.ne.s32.totalorder %s270, %s272
    %p276 = scmp.eq.s32.totalorder %s21, 0
    %p277 = por %p275, %p276
    %p278 = scmp.ne.s32.totalorder %s270, %s272
    %p279 = scmp.eq.s32.totalorder %s26, 1
    %p280 = por %p278, %p279
    %p281 = scmp.ne.s32.totalorder %s272, %s273
    %p282 = scmp.eq.s32.totalorder %s26, 0
    %p283 = por %p281, %p282
    %p284 = scmp.ne.s32.totalorder %s272, %s273
    %p285 = scmp.eq.s32.totalorder %s27, 1
    %p286 = por %p284, %p285
    %p288 = scmp.ne.s32.totalorder %s273, %s287
    %p289 = scmp.eq.s32.totalorder %s27, 0
    %p290 = por %p288, %p289
    %s292 = sadd.s32 %s291, 1
    %p295 = scmp.eq.s32.totalorder %s21, 1
    %p296 = scmp.ne.s32.totalorder %s291, %s293
    %p297 = scmp.eq.s32.totalorder %s21, 0
    %p298 = por %p296, %p297
    %p299 = scmp.ne.s32.totalorder %s291, %s293
    %p300 = scmp.eq.s32.totalorder %s26, 1
    %p301 = por %p299, %p300
    %p302 = scmp.ne.s32.totalorder %s293, %s294
    %p303 = scmp.eq.s32.totalorder %s26, 0
    %p304 = por %p302, %p303
    %p305 = scmp.ne.s32.totalorder %s293, %s294
    %p306 = scmp.eq.s32.totalorder %s27, 1
    %p307 = por %p305, %p306
    %p309 = scmp.ne.s32.totalorder %s294, %s308
    %p310 = scmp.eq.s32.totalorder %s27, 0
    %p311 = por %p309, %p310
    %s313 = sadd.s32 %s312, 1
    %p316 = scmp.eq.s32.totalorder %s21, 1
    %p317 = scmp.ne.s32.totalorder %s312, %s314
    %p318 = scmp.eq.s32.totalorder %s21, 0
    %p319 = por %p317, %p318
    %p320 = scmp.ne.s32.totalorder %s312, %s314
    %p321 = scmp.eq.s32.totalorder %s26, 1
    %p322 = por %p320, %p321
    %p323 = scmp.ne.s32.totalorder %s314, %s315
    %p324 = scmp.eq.s32.totalorder %s26, 0
    %p325 = por %p323, %p324
    %p326 = scmp.ne.s32.totalorder %s314, %s315
    %p327 = scmp.eq.s32.totalorder %s27, 1
    %p328 = por %p326, %p327
    %p330 = scmp.ne.s32.totalorder %s315, %s329
    %p331 = scmp.eq.s32.totalorder %s27, 0
    %p332 = por %p330, %p331
    %s334 = sadd.s32 %s333, 1
    %p337 = scmp.eq.s32.totalorder %s21, 1
    %p338 = scmp.ne.s32.totalorder %s333, %s335
    %p339 = scmp.eq.s32.totalorder %s21, 0
    %p340 = por %p338, %p339
    %p341 = scmp.ne.s32.totalorder %s333, %s335
    %p342 = scmp.eq.s32.totalorder %s26, 1
    %p343 = por %p341, %p342
    %p344 = scmp.ne.s32.totalorder %s335, %s336
    %p345 = scmp.eq.s32.totalorder %s26, 0
    %p346 = por %p344, %p345
    %p347 = scmp.ne.s32.totalorder %s335, %s336
    %p348 = scmp.eq.s32.totalorder %s27, 1
    %p349 = por %p347, %p348
    %p351 = scmp.ne.s32.totalorder %s336, %s350
    %p352 = scmp.eq.s32.totalorder %s27, 0
    %p353 = por %p351, %p352
    %s354 = ssub.s32 %s21, %s28
    %p355 = scmp.eq.s32.totalorder %s354, 0
    %s357 = sadd.s32 %s356, 1
    %s358 = scalar_select %p355, %s356, %s357
    %p361 = pneg %p355
    %p362 = scmp.eq.s32.totalorder %s21, 1
    %p363 = por %p361, %p362
    %p364 = scmp.ne.s32.totalorder %s356, %s359
    %p365 = scmp.eq.s32.totalorder %s21, 0
    %p366 = por %p364, %p365
    %p367 = scmp.ne.s32.totalorder %s356, %s359
    %p368 = scmp.eq.s32.totalorder %s26, 1
    %p369 = por %p367, %p368
    %p370 = scmp.ne.s32.totalorder %s359, %s360
    %p371 = scmp.eq.s32.totalorder %s26, 0
    %p372 = por %p370, %p371
    %p373 = scmp.ne.s32.totalorder %s359, %s360
    %p374 = scmp.eq.s32.totalorder %s27, 1
    %p375 = por %p373, %p374
    %p377 = scmp.ne.s32.totalorder %s360, %s376
    %p378 = scmp.eq.s32.totalorder %s27, 0
    %p379 = por %p377, %p378
    %p380 = scmp.le.s32.totalorder 1, %s21
    %p381 = scmp.lt.s32.totalorder %s21, 3
    %p382 = pnand %p380, %p381
    %p383 = pneg %p382
    // Predicated region
    $region9: #{transformer_forward.3} parent=5 // pred_check
      _
    $region10: #{transformer_forward.3} parent=5 // pred_check_branch
      %385 = sbr.rel (%p382) target = $region12
    $region11: #{transformer_forward.3} parent=5 // pred_region
      %s386 = ssub.s32 %s21, 1
      // Predicated region
      $region13: #{transformer_forward.3} parent=11 // pred_check
        %p387 = pneg %p68
      $region14: #{transformer_forward.3} parent=11 // pred_check_branch
        %389 = sbr.rel (%p387) target = $region16
      $region15: #{transformer_forward.3} parent=11 // pred_region
        _
      $region16: #{transformer_forward.3} parent=11 // pred_fallthru
        _
      // Predicated region
      $region17: #{transformer_forward.3} parent=11 // pred_check
        %p390 = pneg %p115
      $region18: #{transformer_forward.3} parent=11 // pred_check_branch
        %392 = sbr.rel (%p390) target = $region20
      $region19: #{transformer_forward.3} parent=11 // pred_region
        _
      $region20: #{transformer_forward.3} parent=11 // pred_fallthru
        _
      // Predicated region
      $region21: #{transformer_forward.3} parent=11 // pred_check
        %p393 = pneg %p136
      $region22: #{transformer_forward.3} parent=11 // pred_check_branch
        %395 = sbr.rel (%p393) target = $region24
      $region23: #{transformer_forward.3} parent=11 // pred_region
        _
      $region24: #{transformer_forward.3} parent=11 // pred_fallthru
        _
      // Predicated region
      $region25: #{transformer_forward.3} parent=11 // pred_check
        %p396 = pneg %p157
      $region26: #{transformer_forward.3} parent=11 // pred_check_branch
        %398 = sbr.rel (%p396) target = $region28
      $region27: #{transformer_forward.3} parent=11 // pred_region
        _
      $region28: #{transformer_forward.3} parent=11 // pred_fallthru
        _
      // Predicated region
      $region29: #{transformer_forward.3} parent=11 // pred_check
        %p399 = pneg %p178
      $region30: #{transformer_forward.3} parent=11 // pred_check_branch
        %401 = sbr.rel (%p399) target = $region32
      $region31: #{transformer_forward.3} parent=11 // pred_region
        _
      $region32: #{transformer_forward.3} parent=11 // pred_fallthru
        _
      // Predicated region
      $region33: #{transformer_forward.3} parent=11 // pred_check
        %p402 = pneg %p199
      $region34: #{transformer_forward.3} parent=11 // pred_check_branch
        %404 = sbr.rel (%p402) target = $region36
      $region35: #{transformer_forward.3} parent=11 // pred_region
        _
      $region36: #{transformer_forward.3} parent=11 // pred_fallthru
        _
      // Predicated region
      $region37: #{transformer_forward.3} parent=11 // pred_check
        %p405 = pneg %p220
      $region38: #{transformer_forward.3} parent=11 // pred_check_branch
        %407 = sbr.rel (%p405) target = $region40
      $region39: #{transformer_forward.3} parent=11 // pred_region
        _
      $region40: #{transformer_forward.3} parent=11 // pred_fallthru
        _
      // Predicated region
      $region41: #{transformer_forward.3} parent=11 // pred_check
        %p408 = pneg %p241
      $region42: #{transformer_forward.3} parent=11 // pred_check_branch
        %410 = sbr.rel (%p408) target = $region44
      $region43: #{transformer_forward.3} parent=11 // pred_region
        _
      $region44: #{transformer_forward.3} parent=11 // pred_fallthru
        _
      // Predicated region
      $region45: #{transformer_forward.3} parent=11 // pred_check
        %p411 = pneg %p262
      $region46: #{transformer_forward.3} parent=11 // pred_check_branch
        %413 = sbr.rel (%p411) target = $region48
      $region47: #{transformer_forward.3} parent=11 // pred_region
        _
      $region48: #{transformer_forward.3} parent=11 // pred_fallthru
        _
      // Predicated region
      $region49: #{transformer_forward.3} parent=11 // pred_check
        %p414 = pneg %p283
      $region50: #{transformer_forward.3} parent=11 // pred_check_branch
        %416 = sbr.rel (%p414) target = $region52
      $region51: #{transformer_forward.3} parent=11 // pred_region
        _
      $region52: #{transformer_forward.3} parent=11 // pred_fallthru
        _
      // Predicated region
      $region53: #{transformer_forward.3} parent=11 // pred_check
        %p417 = pneg %p304
      $region54: #{transformer_forward.3} parent=11 // pred_check_branch
        %419 = sbr.rel (%p417) target = $region56
      $region55: #{transformer_forward.3} parent=11 // pred_region
        _
      $region56: #{transformer_forward.3} parent=11 // pred_fallthru
        _
      // Predicated region
      $region57: #{transformer_forward.3} parent=11 // pred_check
        %p420 = pneg %p325
      $region58: #{transformer_forward.3} parent=11 // pred_check_branch
        %422 = sbr.rel (%p420) target = $region60
      $region59: #{transformer_forward.3} parent=11 // pred_region
        _
      $region60: #{transformer_forward.3} parent=11 // pred_fallthru
        _
      // Predicated region
      $region61: #{transformer_forward.3} parent=11 // pred_check
        %p423 = pneg %p346
      $region62: #{transformer_forward.3} parent=11 // pred_check_branch
        %425 = sbr.rel (%p423) target = $region64
      $region63: #{transformer_forward.3} parent=11 // pred_region
        _
      $region64: #{transformer_forward.3} parent=11 // pred_fallthru
        _
    $region12: #{transformer_forward.3} parent=5 // pred_fallthru
      _
    %p426 = scmp.lt.s32.totalorder %s21, 2
    // Predicated region
    $region65: #{transformer_forward.3} parent=5 // pred_check
      %p427 = pneg %p426
    $region66: #{transformer_forward.3} parent=5 // pred_check_branch
      %429 = sbr.rel (%p427) target = $region68
    $region67: #{transformer_forward.3} parent=5 // pred_region
      // Predicated region
      $region69: #{transformer_forward.3} parent=67 // pred_check
        %p430 = pneg %p41
      $region70: #{transformer_forward.3} parent=67 // pred_check_branch
        %432 = sbr.rel (%p430) target = $region72
      $region71: #{transformer_forward.3} parent=67 // pred_region
        %p433 = scmp.lt.s32.totalorder %s21, 1
        %s434 = scalar_select %p433, %s21, 1
        %s435 = smul.addr %s434, 8
        %s436 = scalar_lea.vmem %s0, %s435
      $region72: #{transformer_forward.3} parent=67 // pred_fallthru
        _
      // Predicated region
      $region73: #{transformer_forward.3} parent=67 // pred_check
        %p437 = pneg %p88
      $region74: #{transformer_forward.3} parent=67 // pred_check_branch
        %439 = sbr.rel (%p437) target = $region76
      $region75: #{transformer_forward.3} parent=67 // pred_region
        %p440 = scmp.lt.s32.totalorder %s21, 1
        %s441 = scalar_select %p440, %s21, 1
        %s442 = smul.addr %s441, 8
        %s443 = scalar_lea.vmem %s2, %s442
      $region76: #{transformer_forward.3} parent=67 // pred_fallthru
        _
    $region68: #{transformer_forward.3} parent=5 // pred_fallthru
      _
    %p444 = scmp.le.s32.totalorder 1, %s21
    %p445 = scmp.lt.s32.totalorder %s21, 3
    %p446 = pnand %p444, %p445
    %p447 = pneg %p446
    // Predicated region
    $region77: #{transformer_forward.3} parent=5 // pred_check
      _
    $region78: #{transformer_forward.3} parent=5 // pred_check_branch
      %449 = sbr.rel (%p446) target = $region80
    $region79: #{transformer_forward.3} parent=5 // pred_region
      %s450 = ssub.s32 %s21, 1
      %p451 = scmp.lt.s32.totalorder %s26, 1
      %s452 = scalar_select %p451, %s26, 1
      %s453 = smul.addr %s452, 8
      %s454 = scalar_lea.vmem %s0, %s453
      %p455 = pneg %p47
      %p456 = pneg %p44
      %p457 = pneg %p68
      %p458 = pneg %p65
      %p459 = scmp.lt.s32.totalorder %s26, 1
      %s460 = scalar_select %p459, %s26, 1
      %s461 = smul.addr %s460, 8
      %s462 = scalar_lea.vmem %s2, %s461
      %p463 = pneg %p94
      %p464 = pneg %p91
      %p465 = pneg %p115
      %p466 = pneg %p112
      %p467 = pneg %p136
      %p468 = pneg %p133
      %p469 = pneg %p157
      %p470 = pneg %p154
      %p471 = pneg %p178
      %p472 = pneg %p175
      %p473 = pneg %p199
      %p474 = pneg %p196
      %p475 = pneg %p220
      %p476 = pneg %p217
      %p477 = pneg %p241
      %p478 = pneg %p238
      %p479 = pneg %p262
      %p480 = pneg %p259
      %p481 = pneg %p283
      %p482 = pneg %p280
      %p483 = pneg %p304
      %p484 = pneg %p301
      %p485 = pneg %p325
      %p486 = pneg %p322
      %p487 = pneg %p346
      %p488 = pneg %p343
      %p489 = pneg %p372
      %p490 = pneg %p369
      %p491 = scmp.lt.s32.totalorder %s26, 1
      %s492 = scalar_select %p491, %s26, 1
      %s493 = smul.addr %s492, 8
      %s494 = scalar_lea.vmem %s15, %s493
      %p495 = scmp.lt.s32.totalorder %s26, 1
      %s496 = scalar_select %p495, %s26, 1
      %s497 = smul.addr %s496, 8
      %s498 = scalar_lea.vmem %s0, %s497
      %p499 = scmp.lt.s32.totalorder %s26, 1
      %s500 = scalar_select %p499, %s26, 1
      %s501 = smul.addr %s500, 8
      %s502 = scalar_lea.vmem %s2, %s501
      %p503 = scmp.lt.s32.totalorder %s26, 1
      %s504 = scalar_select %p503, %s26, 1
      %s505 = smul.addr %s504, 8
      %s506 = scalar_lea.vmem %s15, %s505
      %v507 = vld [vmem:[%s498] sm:$0xff]
      %v508 = vld [vmem:[%s1] sm:$0xff]
      %v509 = vadd.f32 %v507, %v508
      %v510 = vld [vmem:[%s502] sm:$0xff]
      %v511 = vld [vmem:[%s3] sm:$0x1]
      %v512 = vld [vmem:[%s4] sm:$0x1]
      %vm513 = vcmask 261120
      %v514 = vsel %vm513, %v509, 0.0
      %515 = vadd.xlane.f32.xlu0 %v514
      %v516 = vpop.xlane.xlu0 %515
      %v517 = vrcp.pop 32.0
      %v518 = vmul.f32 %v516, %v517
      %v519 = vsub.f32 %v509, %v518
      %v520 = vmul.f32 %v519, %v519
      %v521 = vsel %vm513, %v520, 0.0
      %522 = vadd.xlane.f32.xlu0 %v521
      %v523 = vpop.xlane.xlu0 %522
      %v524 = vmul.f32 %v523, %v517
      %v525 = vadd.f32 %v524, 1e-05
      %v526 = vrsqrt.pop %v525
      %v527 = vmul.f32 %v519, %v526
      %v529 = vlaneseq
      %v530 = vshrl.u32 %v529, 7
      %v531 = vsub.s32 0, %v530
      %v532 = vrot.slane %v511, %v531
      %v534 = vmul.f32 %v527, %v532
      %v536 = vlaneseq
      %v537 = vshrl.u32 %v536, 7
      %v538 = vsub.s32 0, %v537
      %v539 = vrot.slane %v512, %v538
      %v541 = vadd.f32 %v534, %v539
      %v542 = vld [vmem:[%s5] sm:$0xff]
      %v543 = vld [vmem:[%s5 + $0x8] sm:$0xff]
      %v544 = vld [vmem:[%s5 + $0x10] sm:$0xff]
      %v545 = vld [vmem:[%s5 + $0x18] sm:$0xff]
      %v546 = vld [vmem:[%s6] sm:$0x1]
      %v548 = vlaneseq
      %v549 = vshrl.u32 %v548, 7
      %v550 = vsub.s32 0, %v549
      %v551 = vrot.slane %v546, %v550
      %v554 = vsel %vm513, %v541, 0
      %556 = vmatprep.subr.mxu0 0.0
      %557 = vmatpush1.msra.mxu0 0.0
      %558 = vmatprep.subr.mxu0 0.0
      %559 = vmatpush1.msra.mxu0 0.0
      %560 = vmatprep.subr.mxu0 0.0
      %561 = vmatpush1.msra.mxu0 0.0
      %562 = vmatprep.subr.mxu0 0.0
      %563 = vmatpush1.msra.mxu0 0.0
      %564 = vmatprep.subr.mxu0 0.0
      %565 = vmatpush1.msra.mxu0 0.0
      %566 = vmatprep.subr.mxu0 0.0
      %567 = vmatpush1.msra.mxu0 0.0
      %568 = vmatprep.subr.mxu0 0.0
      %569 = vmatpush1.msra.mxu0 0.0
      %570 = vmatprep.subr.mxu0 0.0
      %571 = vmatpush1.msra.mxu0 0.0
      %572 = vmatprep.subr.mxu0 0.0
      %573 = vmatpush1.msra.mxu0 0.0
      %574 = vmatprep.subr.mxu0 0.0
      %575 = vmatpush1.msra.mxu0 0.0
      %576 = vmatprep.subr.mxu0 0.0
      %577 = vmatpush1.msra.mxu0 0.0
      %578 = vmatprep.subr.mxu0 0.0
      %579 = vmatpush1.msra.mxu0 0.0
      %580 = vmatprep.subr.mxu0 0.0
      %581 = vmatpush1.msra.mxu0 %v545
      %582 = vmatprep.subr.mxu0 0.0
      %583 = vmatpush1.msra.mxu0 %v544
      %584 = vmatprep.subr.mxu0 0.0
      %585 = vmatpush1.msra.mxu0 %v543
      %586 = vmatprep.subr.mxu0 0.0
      %587 = vmatpush1.msra.mxu0 %v542
      %588 = vmatprep.subr.mxu0 0.0
      %589 = vmatpush2.msra.mxu0 0.0
      %590 = vmatprep.subr.mxu0 0.0
      %591 = vmatpush2.msra.mxu0 0.0
      %592 = vmatprep.subr.mxu0 0.0
      %593 = vmatpush2.msra.mxu0 0.0
      %594 = vmatprep.subr.mxu0 0.0
      %595 = vmatpush2.msra.mxu0 0.0
      %596 = vmatprep.subr.mxu0 0.0
      %597 = vmatpush2.msra.mxu0 0.0
      %598 = vmatprep.subr.mxu0 0.0
      %599 = vmatpush2.msra.mxu0 0.0
      %600 = vmatprep.subr.mxu0 0.0
      %601 = vmatpush2.msra.mxu0 0.0
      %602 = vmatprep.subr.mxu0 0.0
      %603 = vmatpush2.msra.mxu0 0.0
      %604 = vmatprep.subr.mxu0 0.0
      %605 = vmatpush2.msra.mxu0 0.0
      %606 = vmatprep.subr.mxu0 0.0
      %607 = vmatpush2.msra.mxu0 0.0
      %608 = vmatprep.subr.mxu0 0.0
      %609 = vmatpush2.msra.mxu0 0.0
      %610 = vmatprep.subr.mxu0 0.0
      %611 = vmatpush2.msra.mxu0 0.0
      %612 = vmatprep.subr.mxu0 0.0
      %613 = vmatpush2.msra.mxu0 0.0
      %614 = vmatprep.subr.mxu0 0.0
      %615 = vmatpush2.msra.mxu0 0.0
      %616 = vmatprep.subr.mxu0 0.0
      %617 = vmatpush2.msra.mxu0 0.0
      %618 = vmatprep.subr.mxu0 0.0
      %619 = vmatpush2.msra.mxu0 0.0
      %620 = vmatprep.mubr.f32.mxu0 0.0
      %621 = vmatmul.mubr.f32.gmra.mxu0 %v554
      %v622 = vpop.f32.mrf.mxu0
      %v623 = vadd.f32 %v551, %v622
      %v624 = vpop.f32.mrf.mxu0
      %625 = vdwg.mxu0
      %v626 = vld [vmem:[%s7] sm:$0xff]
      %v627 = vld [vmem:[%s7 + $0x8] sm:$0xff]
      %v628 = vld [vmem:[%s7 + $0x10] sm:$0xff]
      %v629 = vld [vmem:[%s7 + $0x18] sm:$0xff]
      %v630 = vmul.f32 %v623, 0.35355338
      %632 = vrot.lane.b32.xlu0 %v623, 96
      %v633 = vpop.permute.xlu0 %632
      %vm634 = vcmask 64512
      %v636 = vsel %vm634, %v630, 0
      %v638 = vsel %vm634, %v633, 0
      %640 = vmatprep.subr.mxu0 0.0
      %641 = vmatpush1.xpose.msra.mxu0 0.0
      %642 = vmatprep.subr.mxu0 0.0
      %643 = vmatpush1.xpose.msra.mxu0 0.0
      %644 = vmatprep.subr.mxu0 0.0
      %645 = vmatpush1.xpose.msra.mxu0 0.0
      %646 = vmatprep.subr.mxu0 0.0
      %647 = vmatpush1.xpose.msra.mxu0 0.0
      %648 = vmatprep.subr.mxu0 0.0
      %649 = vmatpush1.xpose.msra.mxu0 0.0
      %650 = vmatprep.subr.mxu0 0.0
      %651 = vmatpush1.xpose.msra.mxu0 0.0
      %652 = vmatprep.subr.mxu0 0.0
      %653 = vmatpush1.xpose.msra.mxu0 0.0
      %654 = vmatprep.subr.mxu0 0.0
      %655 = vmatpush1.xpose.msra.mxu0 0.0
      %656 = vmatprep.subr.mxu0 0.0
      %657 = vmatpush1.xpose.msra.mxu0 0.0
      %658 = vmatprep.subr.mxu0 0.0
      %659 = vmatpush1.xpose.msra.mxu0 0.0
      %660 = vmatprep.subr.mxu0 0.0
      %661 = vmatpush1.xpose.msra.mxu0 0.0
      %662 = vmatprep.subr.mxu0 0.0
      %663 = vmatpush1.xpose.msra.mxu0 0.0
      %664 = vmatprep.subr.mxu0 0.0
      %665 = vmatpush1.xpose.msra.mxu0 0.0
      %666 = vmatprep.subr.mxu0 0.0
      %667 = vmatpush1.xpose.msra.mxu0 0.0
      %668 = vmatprep.subr.mxu0 0.0
      %669 = vmatpush1.xpose.msra.mxu0 0.0
      %670 = vmatprep.subr.mxu0 0.0
      %671 = vmatpush1.xpose.msra.mxu0 %v638
      %672 = vmatprep.subr.mxu0 0.0
      %673 = vmatpush2.xpose.msra.mxu0 0.0
      %674 = vmatprep.subr.mxu0 0.0
      %675 = vmatpush2.xpose.msra.mxu0 0.0
      %676 = vmatprep.subr.mxu0 0.0
      %677 = vmatpush2.xpose.msra.mxu0 0.0
      %678 = vmatprep.subr.mxu0 0.0
      %679 = vmatpush2.xpose.msra.mxu0 0.0
      %680 = vmatprep.subr.mxu0 0.0
      %681 = vmatpush2.xpose.msra.mxu0 0.0
      %682 = vmatprep.subr.mxu0 0.0
      %683 = vmatpush2.xpose.msra.mxu0 0.0
      %684 = vmatprep.subr.mxu0 0.0
      %685 = vmatpush2.xpose.msra.mxu0 0.0
      %686 = vmatprep.subr.mxu0 0.0
      %687 = vmatpush2.xpose.msra.mxu0 0.0
      %688 = vmatprep.subr.mxu0 0.0
      %689 = vmatpush2.xpose.msra.mxu0 0.0
      %690 = vmatprep.subr.mxu0 0.0
      %691 = vmatpush2.xpose.msra.mxu0 0.0
      %692 = vmatprep.subr.mxu0 0.0
      %693 = vmatpush2.xpose.msra.mxu0 0.0
      %694 = vmatprep.subr.mxu0 0.0
      %695 = vmatpush2.xpose.msra.mxu0 0.0
      %696 = vmatprep.subr.mxu0 0.0
      %697 = vmatpush2.xpose.msra.mxu0 0.0
      %698 = vmatprep.subr.mxu0 0.0
      %699 = vmatpush2.xpose.msra.mxu0 0.0
      %700 = vmatprep.subr.mxu0 0.0
      %701 = vmatpush2.xpose.msra.mxu0 0.0
      %702 = vmatprep.subr.mxu0 0.0
      %703 = vmatpush2.xpose.msra.mxu0 0.0
      %704 = vmatprep.mubr.f32.mxu0 0.0
      %705 = vmatmul.mubr.f32.gmra.mxu0 %v636
      %v706 = vpop.f32.mrf.mxu0
      %v707 = vadd.f32 %v510, %v706
      %v708 = vpop.f32.mrf.mxu0
      %709 = vdwg.mxu0
      %v710 = vsel %vm634, %v707, -inf
      %711 = vmax.xlane.f32.xlu0 %v710
      %v712 = vpop.xlane.xlu0 %711
      %v713 = vmax.f32 %v712, -1e+30
      %v714 = vsub.f32 %v707, %v713
      %v715 = vmul.f32 %v714, 1.442695
      %v716 = vpow.pop %v715
      %v717 = vsel %vm634, %v716, 0.0
      %718 = vadd.xlane.f32.xlu0 %v717
      %v719 = vpop.xlane.xlu0 %718
      %v720 = vmax.f32 %v719, 1e-30
      %v721 = vrcp.pop %v720
      %722 = vrot.lane.b32.xlu0 %v623, 64
      %v723 = vpop.permute.xlu0 %722
      %v726 = vsel %vm634, %v716, 0
      %728 = vmatprep.subr.mxu0 0.0
      %729 = vmatpush1.msra.mxu0 0.0
      %730 = vmatprep.subr.mxu0 0.0
      %731 = vmatpush1.msra.mxu0 0.0
      %732 = vmatprep.subr.mxu0 0.0
      %733 = vmatpush1.msra.mxu0 0.0
      %734 = vmatprep.subr.mxu0 0.0
      %735 = vmatpush1.msra.mxu0 0.0
      %736 = vmatprep.subr.mxu0 0.0
      %737 = vmatpush1.msra.mxu0 0.0
      %738 = vmatprep.subr.mxu0 0.0
      %739 = vmatpush1.msra.mxu0 0.0
      %740 = vmatprep.subr.mxu0 0.0
      %741 = vmatpush1.msra.mxu0 0.0
      %742 = vmatprep.subr.mxu0 0.0
      %743 = vmatpush1.msra.mxu0 0.0
      %744 = vmatprep.subr.mxu0 0.0
      %745 = vmatpush1.msra.mxu0 0.0
      %746 = vmatprep.subr.mxu0 0.0
      %747 = vmatpush1.msra.mxu0 0.0
      %748 = vmatprep.subr.mxu0 0.0
      %749 = vmatpush1.msra.mxu0 0.0
      %750 = vmatprep.subr.mxu0 0.0
      %751 = vmatpush1.msra.mxu0 0.0
      %752 = vmatprep.subr.mxu0 0.0
      %753 = vmatpush1.msra.mxu0 0.0
      %754 = vmatprep.subr.mxu0 0.0
      %755 = vmatpush1.msra.mxu0 0.0
      %756 = vmatprep.subr.mxu0 0.0
      %757 = vmatpush1.msra.mxu0 0.0
      %758 = vmatprep.subr.mxu0 0.0
      %759 = vmatpush1.msra.mxu0 %v723
      %760 = vmatprep.subr.mxu0 0.0
      %761 = vmatpush2.msra.mxu0 0.0
      %762 = vmatprep.subr.mxu0 0.0
      %763 = vmatpush2.msra.mxu0 0.0
      %764 = vmatprep.subr.mxu0 0.0
      %765 = vmatpush2.msra.mxu0 0.0
      %766 = vmatprep.subr.mxu0 0.0
      %767 = vmatpush2.msra.mxu0 0.0
      %768 = vmatprep.subr.mxu0 0.0
      %769 = vmatpush2.msra.mxu0 0.0
      %770 = vmatprep.subr.mxu0 0.0
      %771 = vmatpush2.msra.mxu0 0.0
      %772 = vmatprep.subr.mxu0 0.0
      %773 = vmatpush2.msra.mxu0 0.0
      %774 = vmatprep.subr.mxu0 0.0
      %775 = vmatpush2.msra.mxu0 0.0
      %776 = vmatprep.subr.mxu0 0.0
      %777 = vmatpush2.msra.mxu0 0.0
      %778 = vmatprep.subr.mxu0 0.0
      %779 = vmatpush2.msra.mxu0 0.0
      %780 = vmatprep.subr.mxu0 0.0
      %781 = vmatpush2.msra.mxu0 0.0
      %782 = vmatprep.subr.mxu0 0.0
      %783 = vmatpush2.msra.mxu0 0.0
      %784 = vmatprep.subr.mxu0 0.0
      %785 = vmatpush2.msra.mxu0 0.0
      %786 = vmatprep.subr.mxu0 0.0
      %787 = vmatpush2.msra.mxu0 0.0
      %788 = vmatprep.subr.mxu0 0.0
      %789 = vmatpush2.msra.mxu0 0.0
      %790 = vmatprep.subr.mxu0 0.0
      %791 = vmatpush2.msra.mxu0 0.0
      %792 = vmatprep.mubr.f32.mxu0 0.0
      %793 = vmatmul.mubr.f32.gmra.mxu0 %v726
      %v794 = vpop.f32.mrf.mxu0
      %v795 = vadd.f32 0.0, %v794
      %v796 = vpop.f32.mrf.mxu0
      %797 = vdwg.mxu0
      %v798 = vmul.f32 %v795, %v721
      %799 = vrot.lane.b32.xlu0 %v630, 120
      %v800 = vpop.permute.xlu0 %799
      %801 = vrot.lane.b32.xlu0 %v623, 88
      %v802 = vpop.permute.xlu0 %801
      %v803 = vsel %vm634, %v800, 0
      %v805 = vsel %vm634, %v802, 0
      %807 = vmatprep.subr.mxu0 0.0
      %808 = vmatpush1.xpose.msra.mxu0 0.0
      %809 = vmatprep.subr.mxu0 0.0
      %810 = vmatpush1.xpose.msra.mxu0 0.0
      %811 = vmatprep.subr.mxu0 0.0
      %812 = vmatpush1.xpose.msra.mxu0 0.0
      %813 = vmatprep.subr.mxu0 0.0
      %814 = vmatpush1.xpose.msra.mxu0 0.0
      %815 = vmatprep.subr.mxu0 0.0
      %816 = vmatpush1.xpose.msra.mxu0 0.0
      %817 = vmatprep.subr.mxu0 0.0
      %818 = vmatpush1.xpose.msra.mxu0 0.0
      %819 = vmatprep.subr.mxu0 0.0
      %820 = vmatpush1.xpose.msra.mxu0 0.0
      %821 = vmatprep.subr.mxu0 0.0
      %822 = vmatpush1.xpose.msra.mxu0 0.0
      %823 = vmatprep.subr.mxu0 0.0
      %824 = vmatpush1.xpose.msra.mxu0 0.0
      %825 = vmatprep.subr.mxu0 0.0
      %826 = vmatpush1.xpose.msra.mxu0 0.0
      %827 = vmatprep.subr.mxu0 0.0
      %828 = vmatpush1.xpose.msra.mxu0 0.0
      %829 = vmatprep.subr.mxu0 0.0
      %830 = vmatpush1.xpose.msra.mxu0 0.0
      %831 = vmatprep.subr.mxu0 0.0
      %832 = vmatpush1.xpose.msra.mxu0 0.0
      %833 = vmatprep.subr.mxu0 0.0
      %834 = vmatpush1.xpose.msra.mxu0 0.0
      %835 = vmatprep.subr.mxu0 0.0
      %836 = vmatpush1.xpose.msra.mxu0 0.0
      %837 = vmatprep.subr.mxu0 0.0
      %838 = vmatpush1.xpose.msra.mxu0 %v805
      %839 = vmatprep.subr.mxu0 0.0
      %840 = vmatpush2.xpose.msra.mxu0 0.0
      %841 = vmatprep.subr.mxu0 0.0
      %842 = vmatpush2.xpose.msra.mxu0 0.0
      %843 = vmatprep.subr.mxu0 0.0
      %844 = vmatpush2.xpose.msra.mxu0 0.0
      %845 = vmatprep.subr.mxu0 0.0
      %846 = vmatpush2.xpose.msra.mxu0 0.0
      %847 = vmatprep.subr.mxu0 0.0
      %848 = vmatpush2.xpose.msra.mxu0 0.0
      %849 = vmatprep.subr.mxu0 0.0
      %850 = vmatpush2.xpose.msra.mxu0 0.0
      %851 = vmatprep.subr.mxu0 0.0
      %852 = vmatpush2.xpose.msra.mxu0 0.0
      %853 = vmatprep.subr.mxu0 0.0
      %854 = vmatpush2.xpose.msra.mxu0 0.0
      %855 = vmatprep.subr.mxu0 0.0
      %856 = vmatpush2.xpose.msra.mxu0 0.0
      %857 = vmatprep.subr.mxu0 0.0
      %858 = vmatpush2.xpose.msra.mxu0 0.0
      %859 = vmatprep.subr.mxu0 0.0
      %860 = vmatpush2.xpose.msra.mxu0 0.0
      %861 = vmatprep.subr.mxu0 0.0
      %862 = vmatpush2.xpose.msra.mxu0 0.0
      %863 = vmatprep.subr.mxu0 0.0
      %864 = vmatpush2.xpose.msra.mxu0 0.0
      %865 = vmatprep.subr.mxu0 0.0
      %866 = vmatpush2.xpose.msra.mxu0 0.0
      %867 = vmatprep.subr.mxu0 0.0
      %868 = vmatpush2.xpose.msra.mxu0 0.0
      %869 = vmatprep.subr.mxu0 0.0
      %870 = vmatpush2.xpose.msra.mxu0 0.0
      %871 = vmatprep.mubr.f32.mxu0 0.0
      %872 = vmatmul.mubr.f32.gmra.mxu0 %v803
      %v873 = vpop.f32.mrf.mxu0
      %v874 = vadd.f32 %v510, %v873
      %v875 = vpop.f32.mrf.mxu0
      %876 = vdwg.mxu0
      %v877 = vsel %vm634, %v874, -inf
      %878 = vmax.xlane.f32.xlu0 %v877
      %v879 = vpop.xlane.xlu0 %878
      %v880 = vmax.f32 %v879, -1e+30
      %v881 = vsub.f32 %v874, %v880
      %v882 = vmul.f32 %v881, 1.442695
      %v883 = vpow.pop %v882
      %v884 = vsel %vm634, %v883, 0.0
      %885 = vadd.xlane.f32.xlu0 %v884
      %v886 = vpop.xlane.xlu0 %885
      %v887 = vmax.f32 %v886, 1e-30
      %v888 = vrcp.pop %v887
      %889 = vrot.lane.b32.xlu0 %v623, 56
      %v890 = vpop.permute.xlu0 %889
      %v893 = vsel %vm634, %v883, 0
      %895 = vmatprep.subr.mxu0 0.0
      %896 = vmatpush1.msra.mxu0 0.0
      %897 = vmatprep.subr.mxu0 0.0
      %898 = vmatpush1.msra.mxu0 0.0
      %899 = vmatprep.subr.mxu0 0.0
      %900 = vmatpush1.msra.mxu0 0.0
      %901 = vmatprep.subr.mxu0 0.0
      %902 = vmatpush1.msra.mxu0 0.0
      %903 = vmatprep.subr.mxu0 0.0
      %904 = vmatpush1.msra.mxu0 0.0
      %905 = vmatprep.subr.mxu0 0.0
      %906 = vmatpush1.msra.mxu0 0.0
      %907 = vmatprep.subr.mxu0 0.0
      %908 = vmatpush1.msra.mxu0 0.0
      %909 = vmatprep.subr.mxu0 0.0
      %910 = vmatpush1.msra.mxu0 0.0
      %911 = vmatprep.subr.mxu0 0.0
      %912 = vmatpush1.msra.mxu0 0.0
      %913 = vmatprep.subr.mxu0 0.0
      %914 = vmatpush1.msra.mxu0 0.0
      %915 = vmatprep.subr.mxu0 0.0
      %916 = vmatpush1.msra.mxu0 0.0
      %917 = vmatprep.subr.mxu0 0.0
      %918 = vmatpush1.msra.mxu0 0.0
      %919 = vmatprep.subr.mxu0 0.0
      %920 = vmatpush1.msra.mxu0 0.0
      %921 = vmatprep.subr.mxu0 0.0
      %922 = vmatpush1.msra.mxu0 0.0
      %923 = vmatprep.subr.mxu0 0.0
      %924 = vmatpush1.msra.mxu0 0.0
      %925 = vmatprep.subr.mxu0 0.0
      %926 = vmatpush1.msra.mxu0 %v890
      %927 = vmatprep.subr.mxu0 0.0
      %928 = vmatpush2.msra.mxu0 0.0
      %929 = vmatprep.subr.mxu0 0.0
      %930 = vmatpush2.msra.mxu0 0.0
      %931 = vmatprep.subr.mxu0 0.0
      %932 = vmatpush2.msra.mxu0 0.0
      %933 = vmatprep.subr.mxu0 0.0
      %934 = vmatpush2.msra.mxu0 0.0
      %935 = vmatprep.subr.mxu0 0.0
      %936 = vmatpush2.msra.mxu0 0.0
      %937 = vmatprep.subr.mxu0 0.0
      %938 = vmatpush2.msra.mxu0 0.0
      %939 = vmatprep.subr.mxu0 0.0
      %940 = vmatpush2.msra.mxu0 0.0
      %941 = vmatprep.subr.mxu0 0.0
      %942 = vmatpush2.msra.mxu0 0.0
      %943 = vmatprep.subr.mxu0 0.0
      %944 = vmatpush2.msra.mxu0 0.0
      %945 = vmatprep.subr.mxu0 0.0
      %946 = vmatpush2.msra.mxu0 0.0
      %947 = vmatprep.subr.mxu0 0.0
      %948 = vmatpush2.msra.mxu0 0.0
      %949 = vmatprep.subr.mxu0 0.0
      %950 = vmatpush2.msra.mxu0 0.0
      %951 = vmatprep.subr.mxu0 0.0
      %952 = vmatpush2.msra.mxu0 0.0
      %953 = vmatprep.subr.mxu0 0.0
      %954 = vmatpush2.msra.mxu0 0.0
      %955 = vmatprep.subr.mxu0 0.0
      %956 = vmatpush2.msra.mxu0 0.0
      %957 = vmatprep.subr.mxu0 0.0
      %958 = vmatpush2.msra.mxu0 0.0
      %959 = vmatprep.mubr.f32.mxu0 0.0
      %960 = vmatmul.mubr.f32.gmra.mxu0 %v893
      %v961 = vpop.f32.mrf.mxu0
      %v962 = vadd.f32 0.0, %v961
      %v963 = vpop.f32.mrf.mxu0
      %964 = vdwg.mxu0
      %v965 = vmul.f32 %v962, %v888
      %v967 = vsel %vm634, %v965, 0
      %969 = vmatprep.subr.mxu0 0.0
      %970 = vmatpush1.msra.mxu0 0.0
      %971 = vmatprep.subr.mxu0 0.0
      %972 = vmatpush1.msra.mxu0 0.0
      %973 = vmatprep.subr.mxu0 0.0
      %974 = vmatpush1.msra.mxu0 0.0
      %975 = vmatprep.subr.mxu0 0.0
      %976 = vmatpush1.msra.mxu0 0.0
      %977 = vmatprep.subr.mxu0 0.0
      %978 = vmatpush1.msra.mxu0 0.0
      %979 = vmatprep.subr.mxu0 0.0
      %980 = vmatpush1.msra.mxu0 0.0
      %981 = vmatprep.subr.mxu0 0.0
      %982 = vmatpush1.msra.mxu0 0.0
      %983 = vmatprep.subr.mxu0 0.0
      %984 = vmatpush1.msra.mxu0 0.0
      %985 = vmatprep.subr.mxu0 0.0
      %986 = vmatpush1.msra.mxu0 0.0
      %987 = vmatprep.subr.mxu0 0.0
      %988 = vmatpush1.msra.mxu0 0.0
      %989 = vmatprep.subr.mxu0 0.0
      %990 = vmatpush1.msra.mxu0 0.0
      %991 = vmatprep.subr.mxu0 0.0
      %992 = vmatpush1.msra.mxu0 0.0
      %993 = vmatprep.subr.mxu0 0.0
      %994 = vmatpush1.msra.mxu0 0.0
      %995 = vmatprep.subr.mxu0 0.0
      %996 = vmatpush1.msra.mxu0 0.0
      %997 = vmatprep.subr.mxu0 0.0
      %998 = vmatpush1.msra.mxu0 0.0
      %999 = vmatprep.subr.mxu0 0.0
      %1000 = vmatpush1.msra.mxu0 %v627
      %1001 = vmatprep.subr.mxu0 0.0
      %1002 = vmatpush2.msra.mxu0 0.0
      %1003 = vmatprep.subr.mxu0 0.0
      %1004 = vmatpush2.msra.mxu0 0.0
      %1005 = vmatprep.subr.mxu0 0.0
      %1006 = vmatpush2.msra.mxu0 0.0
      %1007 = vmatprep.subr.mxu0 0.0
      %1008 = vmatpush2.msra.mxu0 0.0
      %1009 = vmatprep.subr.mxu0 0.0
      %1010 = vmatpush2.msra.mxu0 0.0
      %1011 = vmatprep.subr.mxu0 0.0
      %1012 = vmatpush2.msra.mxu0 0.0
      %1013 = vmatprep.subr.mxu0 0.0
      %1014 = vmatpush2.msra.mxu0 0.0
      %1015 = vmatprep.subr.mxu0 0.0
      %1016 = vmatpush2.msra.mxu0 0.0
      %1017 = vmatprep.subr.mxu0 0.0
      %1018 = vmatpush2.msra.mxu0 0.0
      %1019 = vmatprep.subr.mxu0 0.0
      %1020 = vmatpush2.msra.mxu0 0.0
      %1021 = vmatprep.subr.mxu0 0.0
      %1022 = vmatpush2.msra.mxu0 0.0
      %1023 = vmatprep.subr.mxu0 0.0
      %1024 = vmatpush2.msra.mxu0 0.0
      %1025 = vmatprep.subr.mxu0 0.0
      %1026 = vmatpush2.msra.mxu0 0.0
      %1027 = vmatprep.subr.mxu0 0.0
      %1028 = vmatpush2.msra.mxu0 0.0
      %1029 = vmatprep.subr.mxu0 0.0
      %1030 = vmatpush2.msra.mxu0 0.0
      %1031 = vmatprep.subr.mxu0 0.0
      %1032 = vmatpush2.msra.mxu0 0.0
      %1033 = vmatprep.mubr.f32.mxu0 0.0
      %1034 = vmatmul.mubr.f32.gmra.mxu0 %v967
      %v1035 = vpop.f32.mrf.mxu0
      %v1036 = vadd.f32 0.0, %v1035
      %v1037 = vpop.f32.mrf.mxu0
      %1038 = vdwg.mxu0
      %v1040 = vsel %vm634, %v798, 0
      %1042 = vmatprep.subr.mxu0 0.0
      %1043 = vmatpush1.msra.mxu0 0.0
      %1044 = vmatprep.subr.mxu0 0.0
      %1045 = vmatpush1.msra.mxu0 0.0
      %1046 = vmatprep.subr.mxu0 0.0
      %1047 = vmatpush1.msra.mxu0 0.0
      %1048 = vmatprep.subr.mxu0 0.0
      %1049 = vmatpush1.msra.mxu0 0.0
      %1050 = vmatprep.subr.mxu0 0.0
      %1051 = vmatpush1.msra.mxu0 0.0
      %1052 = vmatprep.subr.mxu0 0.0
      %1053 = vmatpush1.msra.mxu0 0.0
      %1054 = vmatprep.subr.mxu0 0.0
      %1055 = vmatpush1.msra.mxu0 0.0
      %1056 = vmatprep.subr.mxu0 0.0
      %1057 = vmatpush1.msra.mxu0 0.0
      %1058 = vmatprep.subr.mxu0 0.0
      %1059 = vmatpush1.msra.mxu0 0.0
      %1060 = vmatprep.subr.mxu0 0.0
      %1061 = vmatpush1.msra.mxu0 0.0
      %1062 = vmatprep.subr.mxu0 0.0
      %1063 = vmatpush1.msra.mxu0 0.0
      %1064 = vmatprep.subr.mxu0 0.0
      %1065 = vmatpush1.msra.mxu0 0.0
      %1066 = vmatprep.subr.mxu0 0.0
      %1067 = vmatpush1.msra.mxu0 0.0
      %1068 = vmatprep.subr.mxu0 0.0
      %1069 = vmatpush1.msra.mxu0 0.0
      %1070 = vmatprep.subr.mxu0 0.0
      %1071 = vmatpush1.msra.mxu0 0.0
      %1072 = vmatprep.subr.mxu0 0.0
      %1073 = vmatpush1.msra.mxu0 %v626
      %1074 = vmatprep.subr.mxu0 0.0
      %1075 = vmatpush2.msra.mxu0 0.0
      %1076 = vmatprep.subr.mxu0 0.0
      %1077 = vmatpush2.msra.mxu0 0.0
      %1078 = vmatprep.subr.mxu0 0.0
      %1079 = vmatpush2.msra.mxu0 0.0
      %1080 = vmatprep.subr.mxu0 0.0
      %1081 = vmatpush2.msra.mxu0 0.0
      %1082 = vmatprep.subr.mxu0 0.0
      %1083 = vmatpush2.msra.mxu0 0.0
      %1084 = vmatprep.subr.mxu0 0.0
      %1085 = vmatpush2.msra.mxu0 0.0
      %1086 = vmatprep.subr.mxu0 0.0
      %1087 = vmatpush2.msra.mxu0 0.0
      %1088 = vmatprep.subr.mxu0 0.0
      %1089 = vmatpush2.msra.mxu0 0.0
      %1090 = vmatprep.subr.mxu0 0.0
      %1091 = vmatpush2.msra.mxu0 0.0
      %1092 = vmatprep.subr.mxu0 0.0
      %1093 = vmatpush2.msra.mxu0 0.0
      %1094 = vmatprep.subr.mxu0 0.0
      %1095 = vmatpush2.msra.mxu0 0.0
      %1096 = vmatprep.subr.mxu0 0.0
      %1097 = vmatpush2.msra.mxu0 0.0
      %1098 = vmatprep.subr.mxu0 0.0
      %1099 = vmatpush2.msra.mxu0 0.0
      %1100 = vmatprep.subr.mxu0 0.0
      %1101 = vmatpush2.msra.mxu0 0.0
      %1102 = vmatprep.subr.mxu0 0.0
      %1103 = vmatpush2.msra.mxu0 0.0
      %1104 = vmatprep.subr.mxu0 0.0
      %1105 = vmatpush2.msra.mxu0 0.0
      %1106 = vmatprep.mubr.f32.mxu0 0.0
      %1107 = vmatmul.mubr.f32.gmra.mxu0 %v1040
      %v1108 = vpop.f32.mrf.mxu0
      %v1109 = vadd.f32 %v1036, %v1108
      %v1110 = vpop.f32.mrf.mxu0
      %1111 = vdwg.mxu0
      %1112 = vrot.lane.b32.xlu0 %v630, 112
      %v1113 = vpop.permute.xlu0 %1112
      %1114 = vrot.lane.b32.xlu0 %v623, 80
      %v1115 = vpop.permute.xlu0 %1114
      %v1116 = vsel %vm634, %v1113, 0
      %v1118 = vsel %vm634, %v1115, 0
      %1120 = vmatprep.subr.mxu0 0.0
      %1121 = vmatpush1.xpose.msra.mxu0 0.0
      %1122 = vmatprep.subr.mxu0 0.0
      %1123 = vmatpush1.xpose.msra.mxu0 0.0
      %1124 = vmatprep.subr.mxu0 0.0
      %1125 = vmatpush1.xpose.msra.mxu0 0.0
      %1126 = vmatprep.subr.mxu0 0.0
      %1127 = vmatpush1.xpose.msra.mxu0 0.0
      %1128 = vmatprep.subr.mxu0 0.0
      %1129 = vmatpush1.xpose.msra.mxu0 0.0
      %1130 = vmatprep.subr.mxu0 0.0
      %1131 = vmatpush1.xpose.msra.mxu0 0.0
      %1132 = vmatprep.subr.mxu0 0.0
      %1133 = vmatpush1.xpose.msra.mxu0 0.0
      %1134 = vmatprep.subr.mxu0 0.0
      %1135 = vmatpush1.xpose.msra.mxu0 0.0
      %1136 = vmatprep.subr.mxu0 0.0
      %1137 = vmatpush1.xpose.msra.mxu0 0.0
      %1138 = vmatprep.subr.mxu0 0.0
      %1139 = vmatpush1.xpose.msra.mxu0 0.0
      %1140 = vmatprep.subr.mxu0 0.0
      %1141 = vmatpush1.xpose.msra.mxu0 0.0
      %1142 = vmatprep.subr.mxu0 0.0
      %1143 = vmatpush1.xpose.msra.mxu0 0.0
      %1144 = vmatprep.subr.mxu0 0.0
      %1145 = vmatpush1.xpose.msra.mxu0 0.0
      %1146 = vmatprep.subr.mxu0 0.0
      %1147 = vmatpush1.xpose.msra.mxu0 0.0
      %1148 = vmatprep.subr.mxu0 0.0
      %1149 = vmatpush1.xpose.msra.mxu0 0.0
      %1150 = vmatprep.subr.mxu0 0.0
      %1151 = vmatpush1.xpose.msra.mxu0 %v1118
      %1152 = vmatprep.subr.mxu0 0.0
      %1153 = vmatpush2.xpose.msra.mxu0 0.0
      %1154 = vmatprep.subr.mxu0 0.0
      %1155 = vmatpush2.xpose.msra.mxu0 0.0
      %1156 = vmatprep.subr.mxu0 0.0
      %1157 = vmatpush2.xpose.msra.mxu0 0.0
      %1158 = vmatprep.subr.mxu0 0.0
      %1159 = vmatpush2.xpose.msra.mxu0 0.0
      %1160 = vmatprep.subr.mxu0 0.0
      %1161 = vmatpush2.xpose.msra.mxu0 0.0
      %1162 = vmatprep.subr.mxu0 0.0
      %1163 = vmatpush2.xpose.msra.mxu0 0.0
      %1164 = vmatprep.subr.mxu0 0.0
      %1165 = vmatpush2.xpose.msra.mxu0 0.0
      %1166 = vmatprep.subr.mxu0 0.0
      %1167 = vmatpush2.xpose.msra.mxu0 0.0
      %1168 = vmatprep.subr.mxu0 0.0
      %1169 = vmatpush2.xpose.msra.mxu0 0.0
      %1170 = vmatprep.subr.mxu0 0.0
      %1171 = vmatpush2.xpose.msra.mxu0 0.0
      %1172 = vmatprep.subr.mxu0 0.0
      %1173 = vmatpush2.xpose.msra.mxu0 0.0
      %1174 = vmatprep.subr.mxu0 0.0
      %1175 = vmatpush2.xpose.msra.mxu0 0.0
      %1176 = vmatprep.subr.mxu0 0.0
      %1177 = vmatpush2.xpose.msra.mxu0 0.0
      %1178 = vmatprep.subr.mxu0 0.0
      %1179 = vmatpush2.xpose.msra.mxu0 0.0
      %1180 = vmatprep.subr.mxu0 0.0
      %1181 = vmatpush2.xpose.msra.mxu0 0.0
      %1182 = vmatprep.subr.mxu0 0.0
      %1183 = vmatpush2.xpose.msra.mxu0 0.0
      %1184 = vmatprep.mubr.f32.mxu0 0.0
      %1185 = vmatmul.mubr.f32.gmra.mxu0 %v1116
      %v1186 = vpop.f32.mrf.mxu0
      %v1187 = vadd.f32 %v510, %v1186
      %v1188 = vpop.f32.mrf.mxu0
      %1189 = vdwg.mxu0
      %v1190 = vsel %vm634, %v1187, -inf
      %1191 = vmax.xlane.f32.xlu0 %v1190
      %v1192 = vpop.xlane.xlu0 %1191
      %v1193 = vmax.f32 %v1192, -1e+30
      %v1194 = vsub.f32 %v1187, %v1193
      %v1195 = vmul.f32 %v1194, 1.442695
      %v1196 = vpow.pop %v1195
      %v1197 = vsel %vm634, %v1196, 0.0
      %1198 = vadd.xlane.f32.xlu0 %v1197
      %v1199 = vpop.xlane.xlu0 %1198
      %v1200 = vmax.f32 %v1199, 1e-30
      %v1201 = vrcp.pop %v1200
      %1202 = vrot.lane.b32.xlu0 %v623, 48
      %v1203 = vpop.permute.xlu0 %1202
      %v1206 = vsel %vm634, %v1196, 0
      %1208 = vmatprep.subr.mxu0 0.0
      %1209 = vmatpush1.msra.mxu0 0.0
      %1210 = vmatprep.subr.mxu0 0.0
      %1211 = vmatpush1.msra.mxu0 0.0
      %1212 = vmatprep.subr.mxu0 0.0
      %1213 = vmatpush1.msra.mxu0 0.0
      %1214 = vmatprep.subr.mxu0 0.0
      %1215 = vmatpush1.msra.mxu0 0.0
      %1216 = vmatprep.subr.mxu0 0.0
      %1217 = vmatpush1.msra.mxu0 0.0
      %1218 = vmatprep.subr.mxu0 0.0
      %1219 = vmatpush1.msra.mxu0 0.0
      %1220 = vmatprep.subr.mxu0 0.0
      %1221 = vmatpush1.msra.mxu0 0.0
      %1222 = vmatprep.subr.mxu0 0.0
      %1223 = vmatpush1.msra.mxu0 0.0
      %1224 = vmatprep.subr.mxu0 0.0
      %1225 = vmatpush1.msra.mxu0 0.0
      %1226 = vmatprep.subr.mxu0 0.0
      %1227 = vmatpush1.msra.mxu0 0.0
      %1228 = vmatprep.subr.mxu0 0.0
      %1229 = vmatpush1.msra.mxu0 0.0
      %1230 = vmatprep.subr.mxu0 0.0
      %1231 = vmatpush1.msra.mxu0 0.0
      %1232 = vmatprep.subr.mxu0 0.0
      %1233 = vmatpush1.msra.mxu0 0.0
      %1234 = vmatprep.subr.mxu0 0.0
      %1235 = vmatpush1.msra.mxu0 0.0
      %1236 = vmatprep.subr.mxu0 0.0
      %1237 = vmatpush1.msra.mxu0 0.0
      %1238 = vmatprep.subr.mxu0 0.0
      %1239 = vmatpush1.msra.mxu0 %v1203
      %1240 = vmatprep.subr.mxu0 0.0
      %1241 = vmatpush2.msra.mxu0 0.0
      %1242 = vmatprep.subr.mxu0 0.0
      %1243 = vmatpush2.msra.mxu0 0.0
      %1244 = vmatprep.subr.mxu0 0.0
      %1245 = vmatpush2.msra.mxu0 0.0
      %1246 = vmatprep.subr.mxu0 0.0
      %1247 = vmatpush2.msra.mxu0 0.0
      %1248 = vmatprep.subr.mxu0 0.0
      %1249 = vmatpush2.msra.mxu0 0.0
      %1250 = vmatprep.subr.mxu0 0.0
      %1251 = vmatpush2.msra.mxu0 0.0
      %1252 = vmatprep.subr.mxu0 0.0
      %1253 = vmatpush2.msra.mxu0 0.0
      %1254 = vmatprep.subr.mxu0 0.0
      %1255 = vmatpush2.msra.mxu0 0.0
      %1256 = vmatprep.subr.mxu0 0.0
      %1257 = vmatpush2.msra.mxu0 0.0
      %1258 = vmatprep.subr.mxu0 0.0
      %1259 = vmatpush2.msra.mxu0 0.0
      %1260 = vmatprep.subr.mxu0 0.0
      %1261 = vmatpush2.msra.mxu0 0.0
      %1262 = vmatprep.subr.mxu0 0.0
      %1263 = vmatpush2.msra.mxu0 0.0
      %1264 = vmatprep.subr.mxu0 0.0
      %1265 = vmatpush2.msra.mxu0 0.0
      %1266 = vmatprep.subr.mxu0 0.0
      %1267 = vmatpush2.msra.mxu0 0.0
      %1268 = vmatprep.subr.mxu0 0.0
      %1269 = vmatpush2.msra.mxu0 0.0
      %1270 = vmatprep.subr.mxu0 0.0
      %1271 = vmatpush2.msra.mxu0 0.0
      %1272 = vmatprep.mubr.f32.mxu0 0.0
      %1273 = vmatmul.mubr.f32.gmra.mxu0 %v1206
      %v1274 = vpop.f32.mrf.mxu0
      %v1275 = vadd.f32 0.0, %v1274
      %v1276 = vpop.f32.mrf.mxu0
      %1277 = vdwg.mxu0
      %v1278 = vmul.f32 %v1275, %v1201
      %v1280 = vsel %vm634, %v1278, 0
      %1282 = vmatprep.subr.mxu0 0.0
      %1283 = vmatpush1.msra.mxu0 0.0
      %1284 = vmatprep.subr.mxu0 0.0
      %1285 = vmatpush1.msra.mxu0 0.0
      %1286 = vmatprep.subr.mxu0 0.0
      %1287 = vmatpush1.msra.mxu0 0.0
      %1288 = vmatprep.subr.mxu0 0.0
      %1289 = vmatpush1.msra.mxu0 0.0
      %1290 = vmatprep.subr.mxu0 0.0
      %1291 = vmatpush1.msra.mxu0 0.0
      %1292 = vmatprep.subr.mxu0 0.0
      %1293 = vmatpush1.msra.mxu0 0.0
      %1294 = vmatprep.subr.mxu0 0.0
      %1295 = vmatpush1.msra.mxu0 0.0
      %1296 = vmatprep.subr.mxu0 0.0
      %1297 = vmatpush1.msra.mxu0 0.0
      %1298 = vmatprep.subr.mxu0 0.0
      %1299 = vmatpush1.msra.mxu0 0.0
      %1300 = vmatprep.subr.mxu0 0.0
      %1301 = vmatpush1.msra.mxu0 0.0
      %1302 = vmatprep.subr.mxu0 0.0
      %1303 = vmatpush1.msra.mxu0 0.0
      %1304 = vmatprep.subr.mxu0 0.0
      %1305 = vmatpush1.msra.mxu0 0.0
      %1306 = vmatprep.subr.mxu0 0.0
      %1307 = vmatpush1.msra.mxu0 0.0
      %1308 = vmatprep.subr.mxu0 0.0
      %1309 = vmatpush1.msra.mxu0 0.0
      %1310 = vmatprep.subr.mxu0 0.0
      %1311 = vmatpush1.msra.mxu0 0.0
      %1312 = vmatprep.subr.mxu0 0.0
      %1313 = vmatpush1.msra.mxu0 %v628
      %1314 = vmatprep.subr.mxu0 0.0
      %1315 = vmatpush2.msra.mxu0 0.0
      %1316 = vmatprep.subr.mxu0 0.0
      %1317 = vmatpush2.msra.mxu0 0.0
      %1318 = vmatprep.subr.mxu0 0.0
      %1319 = vmatpush2.msra.mxu0 0.0
      %1320 = vmatprep.subr.mxu0 0.0
      %1321 = vmatpush2.msra.mxu0 0.0
      %1322 = vmatprep.subr.mxu0 0.0
      %1323 = vmatpush2.msra.mxu0 0.0
      %1324 = vmatprep.subr.mxu0 0.0
      %1325 = vmatpush2.msra.mxu0 0.0
      %1326 = vmatprep.subr.mxu0 0.0
      %1327 = vmatpush2.msra.mxu0 0.0
      %1328 = vmatprep.subr.mxu0 0.0
      %1329 = vmatpush2.msra.mxu0 0.0
      %1330 = vmatprep.subr.mxu0 0.0
      %1331 = vmatpush2.msra.mxu0 0.0
      %1332 = vmatprep.subr.mxu0 0.0
      %1333 = vmatpush2.msra.mxu0 0.0
      %1334 = vmatprep.subr.mxu0 0.0
      %1335 = vmatpush2.msra.mxu0 0.0
      %1336 = vmatprep.subr.mxu0 0.0
      %1337 = vmatpush2.msra.mxu0 0.0
      %1338 = vmatprep.subr.mxu0 0.0
      %1339 = vmatpush2.msra.mxu0 0.0
      %1340 = vmatprep.subr.mxu0 0.0
      %1341 = vmatpush2.msra.mxu0 0.0
      %1342 = vmatprep.subr.mxu0 0.0
      %1343 = vmatpush2.msra.mxu0 0.0
      %1344 = vmatprep.subr.mxu0 0.0
      %1345 = vmatpush2.msra.mxu0 0.0
      %1346 = vmatprep.mubr.f32.mxu0 0.0
      %1347 = vmatmul.mubr.f32.gmra.mxu0 %v1280
      %v1348 = vpop.f32.mrf.mxu0
      %v1349 = vadd.f32 0.0, %v1348
      %v1350 = vpop.f32.mrf.mxu0
      %1351 = vdwg.mxu0
      %v1352 = vadd.f32 %v1109, %v1349
      %1353 = vrot.lane.b32.xlu0 %v630, 104
      %v1354 = vpop.permute.xlu0 %1353
      %1355 = vrot.lane.b32.xlu0 %v623, 72
      %v1356 = vpop.permute.xlu0 %1355
      %v1357 = vsel %vm634, %v1354, 0
      %v1359 = vsel %vm634, %v1356, 0
      %1361 = vmatprep.subr.mxu0 0.0
      %1362 = vmatpush1.xpose.msra.mxu0 0.0
      %1363 = vmatprep.subr.mxu0 0.0
      %1364 = vmatpush1.xpose.msra.mxu0 0.0
      %1365 = vmatprep.subr.mxu0 0.0
      %1366 = vmatpush1.xpose.msra.mxu0 0.0
      %1367 = vmatprep.subr.mxu0 0.0
      %1368 = vmatpush1.xpose.msra.mxu0 0.0
      %1369 = vmatprep.subr.mxu0 0.0
      %1370 = vmatpush1.xpose.msra.mxu0 0.0
      %1371 = vmatprep.subr.mxu0 0.0
      %1372 = vmatpush1.xpose.msra.mxu0 0.0
      %1373 = vmatprep.subr.mxu0 0.0
      %1374 = vmatpush1.xpose.msra.mxu0 0.0
      %1375 = vmatprep.subr.mxu0 0.0
      %1376 = vmatpush1.xpose.msra.mxu0 0.0
      %1377 = vmatprep.subr.mxu0 0.0
      %1378 = vmatpush1.xpose.msra.mxu0 0.0
      %1379 = vmatprep.subr.mxu0 0.0
      %1380 = vmatpush1.xpose.msra.mxu0 0.0
      %1381 = vmatprep.subr.mxu0 0.0
      %1382 = vmatpush1.xpose.msra.mxu0 0.0
      %1383 = vmatprep.subr.mxu0 0.0
      %1384 = vmatpush1.xpose.msra.mxu0 0.0
      %1385 = vmatprep.subr.mxu0 0.0
      %1386 = vmatpush1.xpose.msra.mxu0 0.0
      %1387 = vmatprep.subr.mxu0 0.0
      %1388 = vmatpush1.xpose.msra.mxu0 0.0
      %1389 = vmatprep.subr.mxu0 0.0
      %1390 = vmatpush1.xpose.msra.mxu0 0.0
      %1391 = vmatprep.subr.mxu0 0.0
      %1392 = vmatpush1.xpose.msra.mxu0 %v1359
      %1393 = vmatprep.subr.mxu0 0.0
      %1394 = vmatpush2.xpose.msra.mxu0 0.0
      %1395 = vmatprep.subr.mxu0 0.0
      %1396 = vmatpush2.xpose.msra.mxu0 0.0
      %1397 = vmatprep.subr.mxu0 0.0
      %1398 = vmatpush2.xpose.msra.mxu0 0.0
      %1399 = vmatprep.subr.mxu0 0.0
      %1400 = vmatpush2.xpose.msra.mxu0 0.0
      %1401 = vmatprep.subr.mxu0 0.0
      %1402 = vmatpush2.xpose.msra.mxu0 0.0
      %1403 = vmatprep.subr.mxu0 0.0
      %1404 = vmatpush2.xpose.msra.mxu0 0.0
      %1405 = vmatprep.subr.mxu0 0.0
      %1406 = vmatpush2.xpose.msra.mxu0 0.0
      %1407 = vmatprep.subr.mxu0 0.0
      %1408 = vmatpush2.xpose.msra.mxu0 0.0
      %1409 = vmatprep.subr.mxu0 0.0
      %1410 = vmatpush2.xpose.msra.mxu0 0.0
      %1411 = vmatprep.subr.mxu0 0.0
      %1412 = vmatpush2.xpose.msra.mxu0 0.0
      %1413 = vmatprep.subr.mxu0 0.0
      %1414 = vmatpush2.xpose.msra.mxu0 0.0
      %1415 = vmatprep.subr.mxu0 0.0
      %1416 = vmatpush2.xpose.msra.mxu0 0.0
      %1417 = vmatprep.subr.mxu0 0.0
      %1418 = vmatpush2.xpose.msra.mxu0 0.0
      %1419 = vmatprep.subr.mxu0 0.0
      %1420 = vmatpush2.xpose.msra.mxu0 0.0
      %1421 = vmatprep.subr.mxu0 0.0
      %1422 = vmatpush2.xpose.msra.mxu0 0.0
      %1423 = vmatprep.subr.mxu0 0.0
      %1424 = vmatpush2.xpose.msra.mxu0 0.0
      %1425 = vmatprep.mubr.f32.mxu0 0.0
      %1426 = vmatmul.mubr.f32.gmra.mxu0 %v1357
      %v1427 = vpop.f32.mrf.mxu0
      %v1428 = vadd.f32 %v510, %v1427
      %v1429 = vpop.f32.mrf.mxu0
      %1430 = vdwg.mxu0
      %v1431 = vsel %vm634, %v1428, -inf
      %1432 = vmax.xlane.f32.xlu0 %v1431
      %v1433 = vpop.xlane.xlu0 %1432
      %v1434 = vmax.f32 %v1433, -1e+30
      %v1435 = vsub.f32 %v1428, %v1434
      %v1436 = vmul.f32 %v1435, 1.442695
      %v1437 = vpow.pop %v1436
      %v1438 = vsel %vm634, %v1437, 0.0
      %1439 = vadd.xlane.f32.xlu0 %v1438
      %v1440 = vpop.xlane.xlu0 %1439
      %v1441 = vmax.f32 %v1440, 1e-30
      %v1442 = vrcp.pop %v1441
      %1443 = vrot.lane.b32.xlu0 %v623, 40
      %v1444 = vpop.permute.xlu0 %1443
      %v1447 = vsel %vm634, %v1437, 0
      %1449 = vmatprep.subr.mxu0 0.0
      %1450 = vmatpush1.msra.mxu0 0.0
      %1451 = vmatprep.subr.mxu0 0.0
      %1452 = vmatpush1.msra.mxu0 0.0
      %1453 = vmatprep.subr.mxu0 0.0
      %1454 = vmatpush1.msra.mxu0 0.0
      %1455 = vmatprep.subr.mxu0 0.0
      %1456 = vmatpush1.msra.mxu0 0.0
      %1457 = vmatprep.subr.mxu0 0.0
      %1458 = vmatpush1.msra.mxu0 0.0
      %1459 = vmatprep.subr.mxu0 0.0
      %1460 = vmatpush1.msra.mxu0 0.0
      %1461 = vmatprep.subr.mxu0 0.0
      %1462 = vmatpush1.msra.mxu0 0.0
      %1463 = vmatprep.subr.mxu0 0.0
      %1464 = vmatpush1.msra.mxu0 0.0
      %1465 = vmatprep.subr.mxu0 0.0
      %1466 = vmatpush1.msra.mxu0 0.0
      %1467 = vmatprep.subr.mxu0 0.0
      %1468 = vmatpush1.msra.mxu0 0.0
      %1469 = vmatprep.subr.mxu0 0.0
      %1470 = vmatpush1.msra.mxu0 0.0
      %1471 = vmatprep.subr.mxu0 0.0
      %1472 = vmatpush1.msra.mxu0 0.0
      %1473 = vmatprep.subr.mxu0 0.0
      %1474 = vmatpush1.msra.mxu0 0.0
      %1475 = vmatprep.subr.mxu0 0.0
      %1476 = vmatpush1.msra.mxu0 0.0
      %1477 = vmatprep.subr.mxu0 0.0
      %1478 = vmatpush1.msra.mxu0 0.0
      %1479 = vmatprep.subr.mxu0 0.0
      %1480 = vmatpush1.msra.mxu0 %v1444
      %1481 = vmatprep.subr.mxu0 0.0
      %1482 = vmatpush2.msra.mxu0 0.0
      %1483 = vmatprep.subr.mxu0 0.0
      %1484 = vmatpush2.msra.mxu0 0.0
      %1485 = vmatprep.subr.mxu0 0.0
      %1486 = vmatpush2.msra.mxu0 0.0
      %1487 = vmatprep.subr.mxu0 0.0
      %1488 = vmatpush2.msra.mxu0 0.0
      %1489 = vmatprep.subr.mxu0 0.0
      %1490 = vmatpush2.msra.mxu0 0.0
      %1491 = vmatprep.subr.mxu0 0.0
      %1492 = vmatpush2.msra.mxu0 0.0
      %1493 = vmatprep.subr.mxu0 0.0
      %1494 = vmatpush2.msra.mxu0 0.0
      %1495 = vmatprep.subr.mxu0 0.0
      %1496 = vmatpush2.msra.mxu0 0.0
      %1497 = vmatprep.subr.mxu0 0.0
      %1498 = vmatpush2.msra.mxu0 0.0
      %1499 = vmatprep.subr.mxu0 0.0
      %1500 = vmatpush2.msra.mxu0 0.0
      %1501 = vmatprep.subr.mxu0 0.0
      %1502 = vmatpush2.msra.mxu0 0.0
      %1503 = vmatprep.subr.mxu0 0.0
      %1504 = vmatpush2.msra.mxu0 0.0
      %1505 = vmatprep.subr.mxu0 0.0
      %1506 = vmatpush2.msra.mxu0 0.0
      %1507 = vmatprep.subr.mxu0 0.0
      %1508 = vmatpush2.msra.mxu0 0.0
      %1509 = vmatprep.subr.mxu0 0.0
      %1510 = vmatpush2.msra.mxu0 0.0
      %1511 = vmatprep.subr.mxu0 0.0
      %1512 = vmatpush2.msra.mxu0 0.0
      %1513 = vmatprep.mubr.f32.mxu0 0.0
      %1514 = vmatmul.mubr.f32.gmra.mxu0 %v1447
      %v1515 = vpop.f32.mrf.mxu0
      %v1516 = vadd.f32 0.0, %v1515
      %v1517 = vpop.f32.mrf.mxu0
      %1518 = vdwg.mxu0
      %v1519 = vmul.f32 %v1516, %v1442
      %v1521 = vsel %vm634, %v1519, 0
      %1523 = vmatprep.subr.mxu0 0.0
      %1524 = vmatpush1.msra.mxu0 0.0
      %1525 = vmatprep.subr.mxu0 0.0
      %1526 = vmatpush1.msra.mxu0 0.0
      %1527 = vmatprep.subr.mxu0 0.0
      %1528 = vmatpush1.msra.mxu0 0.0
      %1529 = vmatprep.subr.mxu0 0.0
      %1530 = vmatpush1.msra.mxu0 0.0
      %1531 = vmatprep.subr.mxu0 0.0
      %1532 = vmatpush1.msra.mxu0 0.0
      %1533 = vmatprep.subr.mxu0 0.0
      %1534 = vmatpush1.msra.mxu0 0.0
      %1535 = vmatprep.subr.mxu0 0.0
      %1536 = vmatpush1.msra.mxu0 0.0
      %1537 = vmatprep.subr.mxu0 0.0
      %1538 = vmatpush1.msra.mxu0 0.0
      %1539 = vmatprep.subr.mxu0 0.0
      %1540 = vmatpush1.msra.mxu0 0.0
      %1541 = vmatprep.subr.mxu0 0.0
      %1542 = vmatpush1.msra.mxu0 0.0
      %1543 = vmatprep.subr.mxu0 0.0
      %1544 = vmatpush1.msra.mxu0 0.0
      %1545 = vmatprep.subr.mxu0 0.0
      %1546 = vmatpush1.msra.mxu0 0.0
      %1547 = vmatprep.subr.mxu0 0.0
      %1548 = vmatpush1.msra.mxu0 0.0
      %1549 = vmatprep.subr.mxu0 0.0
      %1550 = vmatpush1.msra.mxu0 0.0
      %1551 = vmatprep.subr.mxu0 0.0
      %1552 = vmatpush1.msra.mxu0 0.0
      %1553 = vmatprep.subr.mxu0 0.0
      %1554 = vmatpush1.msra.mxu0 %v629
      %1555 = vmatprep.subr.mxu0 0.0
      %1556 = vmatpush2.msra.mxu0 0.0
      %1557 = vmatprep.subr.mxu0 0.0
      %1558 = vmatpush2.msra.mxu0 0.0
      %1559 = vmatprep.subr.mxu0 0.0
      %1560 = vmatpush2.msra.mxu0 0.0
      %1561 = vmatprep.subr.mxu0 0.0
      %1562 = vmatpush2.msra.mxu0 0.0
      %1563 = vmatprep.subr.mxu0 0.0
      %1564 = vmatpush2.msra.mxu0 0.0
      %1565 = vmatprep.subr.mxu0 0.0
      %1566 = vmatpush2.msra.mxu0 0.0
      %1567 = vmatprep.subr.mxu0 0.0
      %1568 = vmatpush2.msra.mxu0 0.0
      %1569 = vmatprep.subr.mxu0 0.0
      %1570 = vmatpush2.msra.mxu0 0.0
      %1571 = vmatprep.subr.mxu0 0.0
      %1572 = vmatpush2.msra.mxu0 0.0
      %1573 = vmatprep.subr.mxu0 0.0
      %1574 = vmatpush2.msra.mxu0 0.0
      %1575 = vmatprep.subr.mxu0 0.0
      %1576 = vmatpush2.msra.mxu0 0.0
      %1577 = vmatprep.subr.mxu0 0.0
      %1578 = vmatpush2.msra.mxu0 0.0
      %1579 = vmatprep.subr.mxu0 0.0
      %1580 = vmatpush2.msra.mxu0 0.0
      %1581 = vmatprep.subr.mxu0 0.0
      %1582 = vmatpush2.msra.mxu0 0.0
      %1583 = vmatprep.subr.mxu0 0.0
      %1584 = vmatpush2.msra.mxu0 0.0
      %1585 = vmatprep.subr.mxu0 0.0
      %1586 = vmatpush2.msra.mxu0 0.0
      %1587 = vmatprep.mubr.f32.mxu0 0.0
      %1588 = vmatmul.mubr.f32.gmra.mxu0 %v1521
      %v1589 = vpop.f32.mrf.mxu0
      %v1590 = vadd.f32 0.0, %v1589
      %v1591 = vpop.f32.mrf.mxu0
      %1592 = vdwg.mxu0
      %v1593 = vadd.f32 %v1352, %v1590
      %v1594 = vadd.f32 %v509, %v1593
      %v1595 = vld [vmem:[%s8] sm:$0x1]
      %v1597 = vlaneseq
      %v1598 = vshrl.u32 %v1597, 7
      %v1599 = vsub.s32 0, %v1598
      %v1600 = vrot.slane %v1595, %v1599
      %v1602 = vadd.f32 %v1594, %v1600
      %v1603 = vld [vmem:[%s9] sm:$0x1]
      %v1604 = vld [vmem:[%s10] sm:$0x1]
      %v1605 = vsel %vm513, %v1602, 0.0
      %1606 = vadd.xlane.f32.xlu0 %v1605
      %v1607 = vpop.xlane.xlu0 %1606
      %v1608 = vmul.f32 %v1607, %v517
      %v1609 = vsub.f32 %v1602, %v1608
      %v1610 = vmul.f32 %v1609, %v1609
      %v1611 = vsel %vm513, %v1610, 0.0
      %1612 = vadd.xlane.f32.xlu0 %v1611
      %v1613 = vpop.xlane.xlu0 %1612
      %v1614 = vmul.f32 %v1613, %v517
      %v1615 = vadd.f32 %v1614, 1e-05
      %v1616 = vrsqrt.pop %v1615
      %v1617 = vmul.f32 %v1609, %v1616
      %v1619 = vlaneseq
      %v1620 = vshrl.u32 %v1619, 7
      %v1621 = vsub.s32 0, %v1620
      %v1622 = vrot.slane %v1603, %v1621
      %v1624 = vmul.f32 %v1617, %v1622
      %v1626 = vlaneseq
      %v1627 = vshrl.u32 %v1626, 7
      %v1628 = vsub.s32 0, %v1627
      %v1629 = vrot.slane %v1604, %v1628
      %v1631 = vadd.f32 %v1624, %v1629
      %v1632 = vld [vmem:[%s11] sm:$0xff]
      %v1633 = vld [vmem:[%s11 + $0x8] sm:$0xff]
      %v1634 = vld [vmem:[%s11 + $0x10] sm:$0xff]
      %v1635 = vld [vmem:[%s11 + $0x18] sm:$0xff]
      %v1636 = vld [vmem:[%s12] sm:$0x1]
      %v1638 = vlaneseq
      %v1639 = vshrl.u32 %v1638, 7
      %v1640 = vsub.s32 0, %v1639
      %v1641 = vrot.slane %v1636, %v1640
      %v1644 = vsel %vm513, %v1631, 0
      %1646 = vmatprep.subr.mxu0 0.0
      %1647 = vmatpush1.msra.mxu0 0.0
      %1648 = vmatprep.subr.mxu0 0.0
      %1649 = vmatpush1.msra.mxu0 0.0
      %1650 = vmatprep.subr.mxu0 0.0
      %1651 = vmatpush1.msra.mxu0 0.0
      %1652 = vmatprep.subr.mxu0 0.0
      %1653 = vmatpush1.msra.mxu0 0.0
      %1654 = vmatprep.subr.mxu0 0.0
      %1655 = vmatpush1.msra.mxu0 0.0
      %1656 = vmatprep.subr.mxu0 0.0
      %1657 = vmatpush1.msra.mxu0 0.0
      %1658 = vmatprep.subr.mxu0 0.0
      %1659 = vmatpush1.msra.mxu0 0.0
      %1660 = vmatprep.subr.mxu0 0.0
      %1661 = vmatpush1.msra.mxu0 0.0
      %1662 = vmatprep.subr.mxu0 0.0
      %1663 = vmatpush1.msra.mxu0 0.0
      %1664 = vmatprep.subr.mxu0 0.0
      %1665 = vmatpush1.msra.mxu0 0.0
      %1666 = vmatprep.subr.mxu0 0.0
      %1667 = vmatpush1.msra.mxu0 0.0
      %1668 = vmatprep.subr.mxu0 0.0
      %1669 = vmatpush1.msra.mxu0 0.0
      %1670 = vmatprep.subr.mxu0 0.0
      %1671 = vmatpush1.msra.mxu0 %v1635
      %1672 = vmatprep.subr.mxu0 0.0
      %1673 = vmatpush1.msra.mxu0 %v1634
      %1674 = vmatprep.subr.mxu0 0.0
      %1675 = vmatpush1.msra.mxu0 %v1633
      %1676 = vmatprep.subr.mxu0 0.0
      %1677 = vmatpush1.msra.mxu0 %v1632
      %1678 = vmatprep.subr.mxu0 0.0
      %1679 = vmatpush2.msra.mxu0 0.0
      %1680 = vmatprep.subr.mxu0 0.0
      %1681 = vmatpush2.msra.mxu0 0.0
      %1682 = vmatprep.subr.mxu0 0.0
      %1683 = vmatpush2.msra.mxu0 0.0
      %1684 = vmatprep.subr.mxu0 0.0
      %1685 = vmatpush2.msra.mxu0 0.0
      %1686 = vmatprep.subr.mxu0 0.0
      %1687 = vmatpush2.msra.mxu0 0.0
      %1688 = vmatprep.subr.mxu0 0.0
      %1689 = vmatpush2.msra.mxu0 0.0
      %1690 = vmatprep.subr.mxu0 0.0
      %1691 = vmatpush2.msra.mxu0 0.0
      %1692 = vmatprep.subr.mxu0 0.0
      %1693 = vmatpush2.msra.mxu0 0.0
      %1694 = vmatprep.subr.mxu0 0.0
      %1695 = vmatpush2.msra.mxu0 0.0
      %1696 = vmatprep.subr.mxu0 0.0
      %1697 = vmatpush2.msra.mxu0 0.0
      %1698 = vmatprep.subr.mxu0 0.0
      %1699 = vmatpush2.msra.mxu0 0.0
      %1700 = vmatprep.subr.mxu0 0.0
      %1701 = vmatpush2.msra.mxu0 0.0
      %1702 = vmatprep.subr.mxu0 0.0
      %1703 = vmatpush2.msra.mxu0 0.0
      %1704 = vmatprep.subr.mxu0 0.0
      %1705 = vmatpush2.msra.mxu0 0.0
      %1706 = vmatprep.subr.mxu0 0.0
      %1707 = vmatpush2.msra.mxu0 0.0
      %1708 = vmatprep.subr.mxu0 0.0
      %1709 = vmatpush2.msra.mxu0 0.0
      %1710 = vmatprep.mubr.f32.mxu0 0.0
      %1711 = vmatmul.mubr.f32.gmra.mxu0 %v1644
      %v1712 = vpop.f32.mrf.mxu0
      %v1713 = vadd.f32 %v1641, %v1712
      %v1714 = vpop.f32.mrf.mxu0
      %1715 = vdwg.mxu0
      %v1716 = vmul.f32 %v1713, 0.5
      %v1717 = vmul.f32 %v1713, 0.70710677
      %vm1718 = vcmp.ge.f32.partialorder %v1717, 0.0
      %v1719 = vsel %vm1718, 1.0, -1.0
      %v1720 = vand.u32 2147483647, %v1717
      %v1721 = vmul.f32 %v1720, 0.3275911
      %v1722 = vadd.f32 %v1721, 1.0
      %v1723 = vrcp.pop %v1722
      %v1724 = vmul.f32 1.0, %v1723
      %v1725 = vmul.f32 %v1724, 1.0614054
      %v1726 = vadd.f32 %v1725, -1.4531521
      %v1727 = vmul.f32 %v1726, %v1724
      %v1728 = vadd.f32 %v1727, 1.4214138
      %v1729 = vmul.f32 %v1728, %v1724
      %v1730 = vadd.f32 %v1729, -0.28449672
      %v1731 = vmul.f32 %v1730, %v1724
      %v1732 = vadd.f32 %v1731, 0.2548296
      %v1733 = vmul.f32 %v1732, %v1724
      %v1734 = vsub.f32 0.0, %v1720
      %v1735 = vmul.f32 %v1734, %v1720
      %v1736 = vmul.f32 %v1735, 1.442695
      %v1737 = vpow.pop %v1736
      %v1738 = vmul.f32 %v1733, %v1737
      %v1739 = vsub.f32 1.0, %v1738
      %v1740 = vmul.f32 %v1719, %v1739
      %v1741 = vadd.f32 %v1740, 1.0
      %v1742 = vmul.f32 %v1716, %v1741
      %v1743 = vld [vmem:[%s13] sm:$0xff]
      %v1744 = vld [vmem:[%s13 + $0x8] sm:$0xff]
      %v1745 = vld [vmem:[%s13 + $0x10] sm:$0xff]
      %v1746 = vld [vmem:[%s13 + $0x18] sm:$0xff]
      %v1747 = vld [vmem:[%s13 + $0x20] sm:$0xff]
      %v1748 = vld [vmem:[%s13 + $0x28] sm:$0xff]
      %v1749 = vld [vmem:[%s13 + $0x30] sm:$0xff]
      %v1750 = vld [vmem:[%s13 + $0x38] sm:$0xff]
      %vm1751 = vcmask 523264
      %v1753 = vsel %vm1751, %v1742, 0
      %1755 = vmatprep.subr.mxu0 0.0
      %1756 = vmatpush1.msra.mxu0 0.0
      %1757 = vmatprep.subr.mxu0 0.0
      %1758 = vmatpush1.msra.mxu0 0.0
      %1759 = vmatprep.subr.mxu0 0.0
      %1760 = vmatpush1.msra.mxu0 0.0
      %1761 = vmatprep.subr.mxu0 0.0
      %1762 = vmatpush1.msra.mxu0 0.0
      %1763 = vmatprep.subr.mxu0 0.0
      %1764 = vmatpush1.msra.mxu0 0.0
      %1765 = vmatprep.subr.mxu0 0.0
      %1766 = vmatpush1.msra.mxu0 0.0
      %1767 = vmatprep.subr.mxu0 0.0
      %1768 = vmatpush1.msra.mxu0 0.0
      %1769 = vmatprep.subr.mxu0 0.0
      %1770 = vmatpush1.msra.mxu0 0.0
      %1771 = vmatprep.subr.mxu0 0.0
      %1772 = vmatpush1.msra.mxu0 %v1750
      %1773 = vmatprep.subr.mxu0 0.0
      %1774 = vmatpush1.msra.mxu0 %v1749
      %1775 = vmatprep.subr.mxu0 0.0
      %1776 = vmatpush1.msra.mxu0 %v1748
      %1777 = vmatprep.subr.mxu0 0.0
      %1778 = vmatpush1.msra.mxu0 %v1747
      %1779 = vmatprep.subr.mxu0 0.0
      %1780 = vmatpush1.msra.mxu0 %v1746
      %1781 = vmatprep.subr.mxu0 0.0
      %1782 = vmatpush1.msra.mxu0 %v1745
      %1783 = vmatprep.subr.mxu0 0.0
      %1784 = vmatpush1.msra.mxu0 %v1744
      %1785 = vmatprep.subr.mxu0 0.0
      %1786 = vmatpush1.msra.mxu0 %v1743
      %1787 = vmatprep.subr.mxu0 0.0
      %1788 = vmatpush2.msra.mxu0 0.0
      %1789 = vmatprep.subr.mxu0 0.0
      %1790 = vmatpush2.msra.mxu0 0.0
      %1791 = vmatprep.subr.mxu0 0.0
      %1792 = vmatpush2.msra.mxu0 0.0
      %1793 = vmatprep.subr.mxu0 0.0
      %1794 = vmatpush2.msra.mxu0 0.0
      %1795 = vmatprep.subr.mxu0 0.0
      %1796 = vmatpush2.msra.mxu0 0.0
      %1797 = vmatprep.subr.mxu0 0.0
      %1798 = vmatpush2.msra.mxu0 0.0
      %1799 = vmatprep.subr.mxu0 0.0
      %1800 = vmatpush2.msra.mxu0 0.0
      %1801 = vmatprep.subr.mxu0 0.0
      %1802 = vmatpush2.msra.mxu0 0.0
      %1803 = vmatprep.subr.mxu0 0.0
      %1804 = vmatpush2.msra.mxu0 0.0
      %1805 = vmatprep.subr.mxu0 0.0
      %1806 = vmatpush2.msra.mxu0 0.0
      %1807 = vmatprep.subr.mxu0 0.0
      %1808 = vmatpush2.msra.mxu0 0.0
      %1809 = vmatprep.subr.mxu0 0.0
      %1810 = vmatpush2.msra.mxu0 0.0
      %1811 = vmatprep.subr.mxu0 0.0
      %1812 = vmatpush2.msra.mxu0 0.0
      %1813 = vmatprep.subr.mxu0 0.0
      %1814 = vmatpush2.msra.mxu0 0.0
      %1815 = vmatprep.subr.mxu0 0.0
      %1816 = vmatpush2.msra.mxu0 0.0
      %1817 = vmatprep.subr.mxu0 0.0
      %1818 = vmatpush2.msra.mxu0 0.0
      %1819 = vmatprep.mubr.f32.mxu0 0.0
      %1820 = vmatmul.mubr.f32.gmra.mxu0 %v1753
      %v1821 = vpop.f32.mrf.mxu0
      %v1822 = vadd.f32 0.0, %v1821
      %v1823 = vpop.f32.mrf.mxu0
      %1824 = vdwg.mxu0
      %v1825 = vadd.f32 %v1602, %v1822
      %v1826 = vld [vmem:[%s14] sm:$0x1]
      %v1828 = vlaneseq
      %v1829 = vshrl.u32 %v1828, 7
      %v1830 = vsub.s32 0, %v1829
      %v1831 = vrot.slane %v1826, %v1830
      %v1833 = vadd.f32 %v1825, %v1831
      %1834 = vst.msk [vmem:[%s506] sm:$0xff] %vm513, %v1833
      %p1835 = scmp.lt.s32.totalorder %s26, 1
      %s1836 = scalar_select %p1835, %s26, 1
      %s1837 = smul.addr %s1836, 8
      %s1838 = scalar_lea.vmem %s15, %s1837
      // Predicated region
      $region81: #{transformer_forward.3} parent=79 // pred_check
        %p1839 = pneg %p369
      $region82: #{transformer_forward.3} parent=79 // pred_check_branch
        %1841 = sbr.rel (%p1839) target = $region84
      $region83: #{transformer_forward.3} parent=79 // pred_region
        _
      $region84: #{transformer_forward.3} parent=79 // pred_fallthru
        _
    $region80: #{transformer_forward.3} parent=5 // pred_fallthru
      _
    %p1842 = scmp.le.s32.totalorder 2, %s21
    // Predicated region
    $region85: #{transformer_forward.3} parent=5 // pred_check
      %p1843 = pneg %p1842
    $region86: #{transformer_forward.3} parent=5 // pred_check_branch
      %1845 = sbr.rel (%p1843) target = $region88
    $region87: #{transformer_forward.3} parent=5 // pred_region
      %s1846 = ssub.s32 %s21, 2
      // Predicated region
      $region89: #{transformer_forward.3} parent=87 // pred_check
        %p1847 = pneg %p375
      $region90: #{transformer_forward.3} parent=87 // pred_check_branch
        %1849 = sbr.rel (%p1847) target = $region92
      $region91: #{transformer_forward.3} parent=87 // pred_region
        %p1850 = scmp.lt.s32.totalorder %s27, 1
        %s1851 = scalar_select %p1850, %s27, 1
        %s1852 = smul.addr %s1851, 8
        %s1853 = scalar_lea.vmem %s15, %s1852
      $region92: #{transformer_forward.3} parent=87 // pred_fallthru
        _
    $region88: #{transformer_forward.3} parent=5 // pred_fallthru
      _
  $region6: #{transformer_forward.3} parent=0 // loop_footer
    %s25 = sadd.s32 1, %s21
  $region7: #{transformer_forward.3} parent=0 // loop_footer_branch
    %20 = sbr.rel target = $region3
  $region8: #{transformer_forward.3} parent=0 // loop_exit
    _

// kernel: transformer_forward.4
$region0: #{transformer_forward.4}
  #allocation0 [shape = 'u32[]', space=smem, size = 0x4, offset = 0x4, fixed_abs, tag = 'smem constant byte address 0x4 - core index']
  #allocation1 [shape = 'u32[144,128]{1,0:T(1,128)}', space=vmem, size = 0x12000, scoped, tag = 'internal scratch']
  %s0 = inlined_call_operand.vmem [shape: f32[2,8,32], index: 0, kind: input, shape index: {}]
  %s1 = inlined_call_operand.vmem [shape: f32[8,32], index: 1, kind: input, shape index: {}]
  %s2 = inlined_call_operand.vmem [shape: f32[2,8,8], index: 2, kind: input, shape index: {}]
  %s3 = inlined_call_operand.vmem [shape: f32[1,32], index: 3, kind: input, shape index: {}]
  %s4 = inlined_call_operand.vmem [shape: f32[1,32], index: 4, kind: input, shape index: {}]
  %s5 = inlined_call_operand.vmem [shape: f32[32,96], index: 5, kind: input, shape index: {}]
  %s6 = inlined_call_operand.vmem [shape: f32[1,96], index: 6, kind: input, shape index: {}]
  %s7 = inlined_call_operand.vmem [shape: f32[32,32], index: 7, kind: input, shape index: {}]
  %s8 = inlined_call_operand.vmem [shape: f32[1,32], index: 8, kind: input, shape index: {}]
  %s9 = inlined_call_operand.vmem [shape: f32[1,32], index: 9, kind: input, shape index: {}]
  %s10 = inlined_call_operand.vmem [shape: f32[1,32], index: 10, kind: input, shape index: {}]
  %s11 = inlined_call_operand.vmem [shape: f32[32,64], index: 11, kind: input, shape index: {}]
  %s12 = inlined_call_operand.vmem [shape: f32[1,64], index: 12, kind: input, shape index: {}]
  %s13 = inlined_call_operand.vmem [shape: f32[64,32], index: 13, kind: input, shape index: {}]
  %s14 = inlined_call_operand.vmem [shape: f32[1,32], index: 14, kind: input, shape index: {}]
  %s15 = inlined_call_operand.vmem [shape: f32[2,8,32], index: 15, kind: output, shape index: {}]
  %s16 = sld [smem:[#allocation0]]
  $region93: #{transformer_forward.4} parent=0
    _
  %s18 = ssub.s32 1, %s16
  %s19 = scalar_select 0, %s18, %s16
  loop: start=0, step=1, limit=4
  $region2: #{transformer_forward.4} parent=0 // loop_pre_header
    _
  $region3: #{transformer_forward.4} parent=0 // loop_header
    %s21 = sphi 0, %s25
    %p22 = scmp.ge.s32.totalorder %s21, 4
    %s31 = sphi 0, %s33
    %s34 = sphi 0, %s31
    %s35 = sphi 0, %s34
    %s51 = sphi 0, %s35
    %s55 = sphi 0, %s55
    %s57 = sphi 0, %s55
    %s58 = sphi 0, %s57
    %s72 = sphi 0, %s58
    %s78 = sphi 0, %s80
    %s81 = sphi 0, %s78
    %s82 = sphi 0, %s81
    %s98 = sphi 0, %s82
    %s102 = sphi 0, %s102
    %s104 = sphi 0, %s102
    %s105 = sphi 0, %s104
    %s119 = sphi 0, %s105
    %s123 = sphi 0, %s123
    %s125 = sphi 0, %s123
    %s126 = sphi 0, %s125
    %s140 = sphi 0, %s126
    %s144 = sphi 0, %s144
    %s146 = sphi 0, %s144
    %s147 = sphi 0, %s146
    %s161 = sphi 0, %s147
    %s165 = sphi 0, %s165
    %s167 = sphi 0, %s165
    %s168 = sphi 0, %s167
    %s182 = sphi 0, %s168
    %s186 = sphi 0, %s186
    %s188 = sphi 0, %s186
    %s189 = sphi 0, %s188
    %s203 = sphi 0, %s189
    %s207 = sphi 0, %s207
    %s209 = sphi 0, %s207
    %s210 = sphi 0, %s209
    %s224 = sphi 0, %s210
    %s228 = sphi 0, %s228
    %s230 = sphi 0, %s228
    %s231 = sphi 0, %s230
    %s245 = sphi 0, %s231
    %s249 = sphi 0, %s249
    %s251 = sphi 0, %s249
    %s252 = sphi 0, %s251
    %s266 = sphi 0, %s252
    %s270 = sphi 0, %s270
    %s272 = sphi 0, %s270
    %s273 = sphi 0, %s272
    %s287 = sphi 0, %s273
    %s291 = sphi 0, %s291
    %s293 = sphi 0, %s291
    %s294 = sphi 0, %s293
    %s308 = sphi 0, %s294
    %s312 = sphi 0, %s312
    %s314 = sphi 0, %s312
    %s315 = sphi 0, %s314
    %s329 = sphi 0, %s315
    %s333 = sphi 0, %s333
    %s335 = sphi 0, %s333
    %s336 = sphi 0, %s335
    %s350 = sphi 0, %s336
    %s356 = sphi 0, %s358
    %s359 = sphi 0, %s356
    %s360 = sphi 0, %s359
    %s376 = sphi 0, %s360
  $region4: #{transformer_forward.4} parent=0 // loop_header_branch
    %24 = sbr.rel (%p22) target = $region8
  $region5: #{transformer_forward.4} parent=0 // loop_body
    %s26 = ssub.s32 %s21, 1
    %s27 = ssub.s32 %s21, 2
    %s28 = sadd.s32 %s21, 1
    %s29 = ssub.s32 %s21, %s28
    %p30 = scmp.eq.s32.totalorder %s29, 0
    %s32 = sadd.s32 %s31, 1
    %s33 = scalar_select %p30, %s31, %s32
    %p36 = pneg %p30
    %p37 = scmp.eq.s32.totalorder %s21, 1
    %p38 = por %p36, %p37
    %p39 = scmp.ne.s32.totalorder %s31, %s34
    %p40 = scmp.eq.s32.totalorder %s21, 0
    %p41 = por %p39, %p40
    %p42 = scmp.ne.s32.totalorder %s31, %s34
    %p43 = scmp.eq.s32.totalorder %s26, 1
    %p44 = por %p42, %p43
    %p45 = scmp.ne.s32.totalorder %s34, %s35
    %p46 = scmp.eq.s32.totalorder %s26, 0
    %p47 = por %p45, %p46
    %p48 = scmp.ne.s32.totalorder %s34, %s35
    %p49 = scmp.eq.s32.totalorder %s27, 1
    %p50 = por %p48, %p49
    %p52 = scmp.ne.s32.totalorder %s35, %s51
    %p53 = scmp.eq.s32.totalorder %s27, 0
    %p54 = por %p52, %p53
    %s56 = sadd.s32 %s55, 1
    %p59 = scmp.eq.s32.totalorder %s21, 1
    %p60 = scmp.ne.s32.totalorder %s55, %s57
    %p61 = scmp.eq.s32.totalorder %s21, 0
    %p62 = por %p60, %p61
    %p63 = scmp.ne.s32.totalorder %s55, %s57
    %p64 = scmp.eq.s32.totalorder %s26, 1
    %p65 = por %p63, %p64
    %p66 = scmp.ne.s32.totalorder %s57, %s58
    %p67 = scmp.eq.s32.totalorder %s26, 0
    %p68 = por %p66, %p67
    %p69 = scmp.ne.s32.totalorder %s57, %s58
    %p70 = scmp.eq.s32.totalorder %s27, 1
    %p71 = por %p69, %p70
    %p73 = scmp.ne.s32.totalorder %s58, %s72
    %p74 = scmp.eq.s32.totalorder %s27, 0
    %p75 = por %p73, %p74
    %s76 = ssub.s32 %s21, %s28
    %p77 = scmp.eq.s32.totalorder %s76, 0
    %s79 = sadd.s32 %s78, 1
    %s80 = scalar_select %p77, %s78, %s79
    %p83 = pneg %p77
    %p84 = scmp.eq.s32.totalorder %s21, 1
    %p85 = por %p83, %p84
    %p86 = scmp.ne.s32.totalorder %s78, %s81
    %p87 = scmp.eq.s32.totalorder %s21, 0
    %p88 = por %p86, %p87
    %p89 = scmp.ne.s32.totalorder %s78, %s81
    %p90 = scmp.eq.s32.totalorder %s26, 1
    %p91 = por %p89, %p90
    %p92 = scmp.ne.s32.totalorder %s81, %s82
    %p93 = scmp.eq.s32.totalorder %s26, 0
    %p94 = por %p92, %p93
    %p95 = scmp.ne.s32.totalorder %s81, %s82
    %p96 = scmp.eq.s32.totalorder %s27, 1
    %p97 = por %p95, %p96
    %p99 = scmp.ne.s32.totalorder %s82, %s98
    %p100 = scmp.eq.s32.totalorder %s27, 0
    %p101 = por %p99, %p100
    %s103 = sadd.s32 %s102, 1
    %p106 = scmp.eq.s32.totalorder %s21, 1
    %p107 = scmp.ne.s32.totalorder %s102, %s104
    %p108 = scmp.eq.s32.totalorder %s21, 0
    %p109 = por %p107, %p108
    %p110 = scmp.ne.s32.totalorder %s102, %s104
    %p111 = scmp.eq.s32.totalorder %s26, 1
    %p112 = por %p110, %p111
    %p113 = scmp.ne.s32.totalorder %s104, %s105
    %p114 = scmp.eq.s32.totalorder %s26, 0
    %p115 = por %p113, %p114
    %p116 = scmp.ne.s32.totalorder %s104, %s105
    %p117 = scmp.eq.s32.totalorder %s27, 1
    %p118 = por %p116, %p117
    %p120 = scmp.ne.s32.totalorder %s105, %s119
    %p121 = scmp.eq.s32.totalorder %s27, 0
    %p122 = por %p120, %p121
    %s124 = sadd.s32 %s123, 1
    %p127 = scmp.eq.s32.totalorder %s21, 1
    %p128 = scmp.ne.s32.totalorder %s123, %s125
    %p129 = scmp.eq.s32.totalorder %s21, 0
    %p130 = por %p128, %p129
    %p131 = scmp.ne.s32.totalorder %s123, %s125
    %p132 = scmp.eq.s32.totalorder %s26, 1
    %p133 = por %p131, %p132
    %p134 = scmp.ne.s32.totalorder %s125, %s126
    %p135 = scmp.eq.s32.totalorder %s26, 0
    %p136 = por %p134, %p135
    %p137 = scmp.ne.s32.totalorder %s125, %s126
    %p138 = scmp.eq.s32.totalorder %s27, 1
    %p139 = por %p137, %p138
    %p141 = scmp.ne.s32.totalorder %s126, %s140
    %p142 = scmp.eq.s32.totalorder %s27, 0
    %p143 = por %p141, %p142
    %s145 = sadd.s32 %s144, 1
    %p148 = scmp.eq.s32.totalorder %s21, 1
    %p149 = scmp.ne.s32.totalorder %s144, %s146
    %p150 = scmp.eq.s32.totalorder %s21, 0
    %p151 = por %p149, %p150
    %p152 = scmp.ne.s32.totalorder %s144, %s146
    %p153 = scmp.eq.s32.totalorder %s26, 1
    %p154 = por %p152, %p153
    %p155 = scmp.ne.s32.totalorder %s146, %s147
    %p156 = scmp.eq.s32.totalorder %s26, 0
    %p157 = por %p155, %p156
    %p158 = scmp.ne.s32.totalorder %s146, %s147
    %p159 = scmp.eq.s32.totalorder %s27, 1
    %p160 = por %p158, %p159
    %p162 = scmp.ne.s32.totalorder %s147, %s161
    %p163 = scmp.eq.s32.totalorder %s27, 0
    %p164 = por %p162, %p163
    %s166 = sadd.s32 %s165, 1
    %p169 = scmp.eq.s32.totalorder %s21, 1
    %p170 = scmp.ne.s32.totalorder %s165, %s167
    %p171 = scmp.eq.s32.totalorder %s21, 0
    %p172 = por %p170, %p171
    %p173 = scmp.ne.s32.totalorder %s165, %s167
    %p174 = scmp.eq.s32.totalorder %s26, 1
    %p175 = por %p173, %p174
    %p176 = scmp.ne.s32.totalorder %s167, %s168
    %p177 = scmp.eq.s32.totalorder %s26, 0
    %p178 = por %p176, %p177
    %p179 = scmp.ne.s32.totalorder %s167, %s168
    %p180 = scmp.eq.s32.totalorder %s27, 1
    %p181 = por %p179, %p180
    %p183 = scmp.ne.s32.totalorder %s168, %s182
    %p184 = scmp.eq.s32.totalorder %s27, 0
    %p185 = por %p183, %p184
    %s187 = sadd.s32 %s186, 1
    %p190 = scmp.eq.s32.totalorder %s21, 1
    %p191 = scmp.ne.s32.totalorder %s186, %s188
    %p192 = scmp.eq.s32.totalorder %s21, 0
    %p193 = por %p191, %p192
    %p194 = scmp.ne.s32.totalorder %s186, %s188
    %p195 = scmp.eq.s32.totalorder %s26, 1
    %p196 = por %p194, %p195
    %p197 = scmp.ne.s32.totalorder %s188, %s189
    %p198 = scmp.eq.s32.totalorder %s26, 0
    %p199 = por %p197, %p198
    %p200 = scmp.ne.s32.totalorder %s188, %s189
    %p201 = scmp.eq.s32.totalorder %s27, 1
    %p202 = por %p200, %p201
    %p204 = scmp.ne.s32.totalorder %s189, %s203
    %p205 = scmp.eq.s32.totalorder %s27, 0
    %p206 = por %p204, %p205
    %s208 = sadd.s32 %s207, 1
    %p211 = scmp.eq.s32.totalorder %s21, 1
    %p212 = scmp.ne.s32.totalorder %s207, %s209
    %p213 = scmp.eq.s32.totalorder %s21, 0
    %p214 = por %p212, %p213
    %p215 = scmp.ne.s32.totalorder %s207, %s209
    %p216 = scmp.eq.s32.totalorder %s26, 1
    %p217 = por %p215, %p216
    %p218 = scmp.ne.s32.totalorder %s209, %s210
    %p219 = scmp.eq.s32.totalorder %s26, 0
    %p220 = por %p218, %p219
    %p221 = scmp.ne.s32.totalorder %s209, %s210
    %p222 = scmp.eq.s32.totalorder %s27, 1
    %p223 = por %p221, %p222
    %p225 = scmp.ne.s32.totalorder %s210, %s224
    %p226 = scmp.eq.s32.totalorder %s27, 0
    %p227 = por %p225, %p226
    %s229 = sadd.s32 %s228, 1
    %p232 = scmp.eq.s32.totalorder %s21, 1
    %p233 = scmp.ne.s32.totalorder %s228, %s230
    %p234 = scmp.eq.s32.totalorder %s21, 0
    %p235 = por %p233, %p234
    %p236 = scmp.ne.s32.totalorder %s228, %s230
    %p237 = scmp.eq.s32.totalorder %s26, 1
    %p238 = por %p236, %p237
    %p239 = scmp.ne.s32.totalorder %s230, %s231
    %p240 = scmp.eq.s32.totalorder %s26, 0
    %p241 = por %p239, %p240
    %p242 = scmp.ne.s32.totalorder %s230, %s231
    %p243 = scmp.eq.s32.totalorder %s27, 1
    %p244 = por %p242, %p243
    %p246 = scmp.ne.s32.totalorder %s231, %s245
    %p247 = scmp.eq.s32.totalorder %s27, 0
    %p248 = por %p246, %p247
    %s250 = sadd.s32 %s249, 1
    %p253 = scmp.eq.s32.totalorder %s21, 1
    %p254 = scmp.ne.s32.totalorder %s249, %s251
    %p255 = scmp.eq.s32.totalorder %s21, 0
    %p256 = por %p254, %p255
    %p257 = scmp.ne.s32.totalorder %s249, %s251
    %p258 = scmp.eq.s32.totalorder %s26, 1
    %p259 = por %p257, %p258
    %p260 = scmp.ne.s32.totalorder %s251, %s252
    %p261 = scmp.eq.s32.totalorder %s26, 0
    %p262 = por %p260, %p261
    %p263 = scmp.ne.s32.totalorder %s251, %s252
    %p264 = scmp.eq.s32.totalorder %s27, 1
    %p265 = por %p263, %p264
    %p267 = scmp.ne.s32.totalorder %s252, %s266
    %p268 = scmp.eq.s32.totalorder %s27, 0
    %p269 = por %p267, %p268
    %s271 = sadd.s32 %s270, 1
    %p274 = scmp.eq.s32.totalorder %s21, 1
    %p275 = scmp.ne.s32.totalorder %s270, %s272
    %p276 = scmp.eq.s32.totalorder %s21, 0
    %p277 = por %p275, %p276
    %p278 = scmp.ne.s32.totalorder %s270, %s272
    %p279 = scmp.eq.s32.totalorder %s26, 1
    %p280 = por %p278, %p279
    %p281 = scmp.ne.s32.totalorder %s272, %s273
    %p282 = scmp.eq.s32.totalorder %s26, 0
    %p283 = por %p281, %p282
    %p284 = scmp.ne.s32.totalorder %s272, %s273
    %p285 = scmp.eq.s32.totalorder %s27, 1
    %p286 = por %p284, %p285
    %p288 = scmp.ne.s32.totalorder %s273, %s287
    %p289 = scmp.eq.s32.totalorder %s27, 0
    %p290 = por %p288, %p289
    %s292 = sadd.s32 %s291, 1
    %p295 = scmp.eq.s32.totalorder %s21, 1
    %p296 = scmp.ne.s32.totalorder %s291, %s293
    %p297 = scmp.eq.s32.totalorder %s21, 0
    %p298 = por %p296, %p297
    %p299 = scmp.ne.s32.totalorder %s291, %s293
    %p300 = scmp.eq.s32.totalorder %s26, 1
    %p301 = por %p299, %p300
    %p302 = scmp.ne.s32.totalorder %s293, %s294
    %p303 = scmp.eq.s32.totalorder %s26, 0
    %p304 = por %p302, %p303
    %p305 = scmp.ne.s32.totalorder %s293, %s294
    %p306 = scmp.eq.s32.totalorder %s27, 1
    %p307 = por %p305, %p306
    %p309 = scmp.ne.s32.totalorder %s294, %s308
    %p310 = scmp.eq.s32.totalorder %s27, 0
    %p311 = por %p309, %p310
    %s313 = sadd.s32 %s312, 1
    %p316 = scmp.eq.s32.totalorder %s21, 1
    %p317 = scmp.ne.s32.totalorder %s312, %s314
    %p318 = scmp.eq.s32.totalorder %s21, 0
    %p319 = por %p317, %p318
    %p320 = scmp.ne.s32.totalorder %s312, %s314
    %p321 = scmp.eq.s32.totalorder %s26, 1
    %p322 = por %p320, %p321
    %p323 = scmp.ne.s32.totalorder %s314, %s315
    %p324 = scmp.eq.s32.totalorder %s26, 0
    %p325 = por %p323, %p324
    %p326 = scmp.ne.s32.totalorder %s314, %s315
    %p327 = scmp.eq.s32.totalorder %s27, 1
    %p328 = por %p326, %p327
    %p330 = scmp.ne.s32.totalorder %s315, %s329
    %p331 = scmp.eq.s32.totalorder %s27, 0
    %p332 = por %p330, %p331
    %s334 = sadd.s32 %s333, 1
    %p337 = scmp.eq.s32.totalorder %s21, 1
    %p338 = scmp.ne.s32.totalorder %s333, %s335
    %p339 = scmp.eq.s32.totalorder %s21, 0
    %p340 = por %p338, %p339
    %p341 = scmp.ne.s32.totalorder %s333, %s335
    %p342 = scmp.eq.s32.totalorder %s26, 1
    %p343 = por %p341, %p342
    %p344 = scmp.ne.s32.totalorder %s335, %s336
    %p345 = scmp.eq.s32.totalorder %s26, 0
    %p346 = por %p344, %p345
    %p347 = scmp.ne.s32.totalorder %s335, %s336
    %p348 = scmp.eq.s32.totalorder %s27, 1
    %p349 = por %p347, %p348
    %p351 = scmp.ne.s32.totalorder %s336, %s350
    %p352 = scmp.eq.s32.totalorder %s27, 0
    %p353 = por %p351, %p352
    %s354 = ssub.s32 %s21, %s28
    %p355 = scmp.eq.s32.totalorder %s354, 0
    %s357 = sadd.s32 %s356, 1
    %s358 = scalar_select %p355, %s356, %s357
    %p361 = pneg %p355
    %p362 = scmp.eq.s32.totalorder %s21, 1
    %p363 = por %p361, %p362
    %p364 = scmp.ne.s32.totalorder %s356, %s359
    %p365 = scmp.eq.s32.totalorder %s21, 0
    %p366 = por %p364, %p365
    %p367 = scmp.ne.s32.totalorder %s356, %s359
    %p368 = scmp.eq.s32.totalorder %s26, 1
    %p369 = por %p367, %p368
    %p370 = scmp.ne.s32.totalorder %s359, %s360
    %p371 = scmp.eq.s32.totalorder %s26, 0
    %p372 = por %p370, %p371
    %p373 = scmp.ne.s32.totalorder %s359, %s360
    %p374 = scmp.eq.s32.totalorder %s27, 1
    %p375 = por %p373, %p374
    %p377 = scmp.ne.s32.totalorder %s360, %s376
    %p378 = scmp.eq.s32.totalorder %s27, 0
    %p379 = por %p377, %p378
    %p380 = scmp.le.s32.totalorder 1, %s21
    %p381 = scmp.lt.s32.totalorder %s21, 3
    %p382 = pnand %p380, %p381
    %p383 = pneg %p382
    // Predicated region
    $region9: #{transformer_forward.4} parent=5 // pred_check
      _
    $region10: #{transformer_forward.4} parent=5 // pred_check_branch
      %385 = sbr.rel (%p382) target = $region12
    $region11: #{transformer_forward.4} parent=5 // pred_region
      %s386 = ssub.s32 %s21, 1
      // Predicated region
      $region13: #{transformer_forward.4} parent=11 // pred_check
        %p387 = pneg %p68
      $region14: #{transformer_forward.4} parent=11 // pred_check_branch
        %389 = sbr.rel (%p387) target = $region16
      $region15: #{transformer_forward.4} parent=11 // pred_region
        _
      $region16: #{transformer_forward.4} parent=11 // pred_fallthru
        _
      // Predicated region
      $region17: #{transformer_forward.4} parent=11 // pred_check
        %p390 = pneg %p115
      $region18: #{transformer_forward.4} parent=11 // pred_check_branch
        %392 = sbr.rel (%p390) target = $region20
      $region19: #{transformer_forward.4} parent=11 // pred_region
        _
      $region20: #{transformer_forward.4} parent=11 // pred_fallthru
        _
      // Predicated region
      $region21: #{transformer_forward.4} parent=11 // pred_check
        %p393 = pneg %p136
      $region22: #{transformer_forward.4} parent=11 // pred_check_branch
        %395 = sbr.rel (%p393) target = $region24
      $region23: #{transformer_forward.4} parent=11 // pred_region
        _
      $region24: #{transformer_forward.4} parent=11 // pred_fallthru
        _
      // Predicated region
      $region25: #{transformer_forward.4} parent=11 // pred_check
        %p396 = pneg %p157
      $region26: #{transformer_forward.4} parent=11 // pred_check_branch
        %398 = sbr.rel (%p396) target = $region28
      $region27: #{transformer_forward.4} parent=11 // pred_region
        _
      $region28: #{transformer_forward.4} parent=11 // pred_fallthru
        _
      // Predicated region
      $region29: #{transformer_forward.4} parent=11 // pred_check
        %p399 = pneg %p178
      $region30: #{transformer_forward.4} parent=11 // pred_check_branch
        %401 = sbr.rel (%p399) target = $region32
      $region31: #{transformer_forward.4} parent=11 // pred_region
        _
      $region32: #{transformer_forward.4} parent=11 // pred_fallthru
        _
      // Predicated region
      $region33: #{transformer_forward.4} parent=11 // pred_check
        %p402 = pneg %p199
      $region34: #{transformer_forward.4} parent=11 // pred_check_branch
        %404 = sbr.rel (%p402) target = $region36
      $region35: #{transformer_forward.4} parent=11 // pred_region
        _
      $region36: #{transformer_forward.4} parent=11 // pred_fallthru
        _
      // Predicated region
      $region37: #{transformer_forward.4} parent=11 // pred_check
        %p405 = pneg %p220
      $region38: #{transformer_forward.4} parent=11 // pred_check_branch
        %407 = sbr.rel (%p405) target = $region40
      $region39: #{transformer_forward.4} parent=11 // pred_region
        _
      $region40: #{transformer_forward.4} parent=11 // pred_fallthru
        _
      // Predicated region
      $region41: #{transformer_forward.4} parent=11 // pred_check
        %p408 = pneg %p241
      $region42: #{transformer_forward.4} parent=11 // pred_check_branch
        %410 = sbr.rel (%p408) target = $region44
      $region43: #{transformer_forward.4} parent=11 // pred_region
        _
      $region44: #{transformer_forward.4} parent=11 // pred_fallthru
        _
      // Predicated region
      $region45: #{transformer_forward.4} parent=11 // pred_check
        %p411 = pneg %p262
      $region46: #{transformer_forward.4} parent=11 // pred_check_branch
        %413 = sbr.rel (%p411) target = $region48
      $region47: #{transformer_forward.4} parent=11 // pred_region
        _
      $region48: #{transformer_forward.4} parent=11 // pred_fallthru
        _
      // Predicated region
      $region49: #{transformer_forward.4} parent=11 // pred_check
        %p414 = pneg %p283
      $region50: #{transformer_forward.4} parent=11 // pred_check_branch
        %416 = sbr.rel (%p414) target = $region52
      $region51: #{transformer_forward.4} parent=11 // pred_region
        _
      $region52: #{transformer_forward.4} parent=11 // pred_fallthru
        _
      // Predicated region
      $region53: #{transformer_forward.4} parent=11 // pred_check
        %p417 = pneg %p304
      $region54: #{transformer_forward.4} parent=11 // pred_check_branch
        %419 = sbr.rel (%p417) target = $region56
      $region55: #{transformer_forward.4} parent=11 // pred_region
        _
      $region56: #{transformer_forward.4} parent=11 // pred_fallthru
        _
      // Predicated region
      $region57: #{transformer_forward.4} parent=11 // pred_check
        %p420 = pneg %p325
      $region58: #{transformer_forward.4} parent=11 // pred_check_branch
        %422 = sbr.rel (%p420) target = $region60
      $region59: #{transformer_forward.4} parent=11 // pred_region
        _
      $region60: #{transformer_forward.4} parent=11 // pred_fallthru
        _
      // Predicated region
      $region61: #{transformer_forward.4} parent=11 // pred_check
        %p423 = pneg %p346
      $region62: #{transformer_forward.4} parent=11 // pred_check_branch
        %425 = sbr.rel (%p423) target = $region64
      $region63: #{transformer_forward.4} parent=11 // pred_region
        _
      $region64: #{transformer_forward.4} parent=11 // pred_fallthru
        _
    $region12: #{transformer_forward.4} parent=5 // pred_fallthru
      _
    %p426 = scmp.lt.s32.totalorder %s21, 2
    // Predicated region
    $region65: #{transformer_forward.4} parent=5 // pred_check
      %p427 = pneg %p426
    $region66: #{transformer_forward.4} parent=5 // pred_check_branch
      %429 = sbr.rel (%p427) target = $region68
    $region67: #{transformer_forward.4} parent=5 // pred_region
      // Predicated region
      $region69: #{transformer_forward.4} parent=67 // pred_check
        %p430 = pneg %p41
      $region70: #{transformer_forward.4} parent=67 // pred_check_branch
        %432 = sbr.rel (%p430) target = $region72
      $region71: #{transformer_forward.4} parent=67 // pred_region
        %p433 = scmp.lt.s32.totalorder %s21, 1
        %s434 = scalar_select %p433, %s21, 1
        %s435 = smul.addr %s434, 8
        %s436 = scalar_lea.vmem %s0, %s435
      $region72: #{transformer_forward.4} parent=67 // pred_fallthru
        _
      // Predicated region
      $region73: #{transformer_forward.4} parent=67 // pred_check
        %p437 = pneg %p88
      $region74: #{transformer_forward.4} parent=67 // pred_check_branch
        %439 = sbr.rel (%p437) target = $region76
      $region75: #{transformer_forward.4} parent=67 // pred_region
        %p440 = scmp.lt.s32.totalorder %s21, 1
        %s441 = scalar_select %p440, %s21, 1
        %s442 = smul.addr %s441, 8
        %s443 = scalar_lea.vmem %s2, %s442
      $region76: #{transformer_forward.4} parent=67 // pred_fallthru
        _
    $region68: #{transformer_forward.4} parent=5 // pred_fallthru
      _
    %p444 = scmp.le.s32.totalorder 1, %s21
    %p445 = scmp.lt.s32.totalorder %s21, 3
    %p446 = pnand %p444, %p445
    %p447 = pneg %p446
    // Predicated region
    $region77: #{transformer_forward.4} parent=5 // pred_check
      _
    $region78: #{transformer_forward.4} parent=5 // pred_check_branch
      %449 = sbr.rel (%p446) target = $region80
    $region79: #{transformer_forward.4} parent=5 // pred_region
      %s450 = ssub.s32 %s21, 1
      %p451 = scmp.lt.s32.totalorder %s26, 1
      %s452 = scalar_select %p451, %s26, 1
      %s453 = smul.addr %s452, 8
      %s454 = scalar_lea.vmem %s0, %s453
      %p455 = pneg %p47
      %p456 = pneg %p44
      %p457 = pneg %p68
      %p458 = pneg %p65
      %p459 = scmp.lt.s32.totalorder %s26, 1
      %s460 = scalar_select %p459, %s26, 1
      %s461 = smul.addr %s460, 8
      %s462 = scalar_lea.vmem %s2, %s461
      %p463 = pneg %p94
      %p464 = pneg %p91
      %p465 = pneg %p115
      %p466 = pneg %p112
      %p467 = pneg %p136
      %p468 = pneg %p133
      %p469 = pneg %p157
      %p470 = pneg %p154
      %p471 = pneg %p178
      %p472 = pneg %p175
      %p473 = pneg %p199
      %p474 = pneg %p196
      %p475 = pneg %p220
      %p476 = pneg %p217
      %p477 = pneg %p241
      %p478 = pneg %p238
      %p479 = pneg %p262
      %p480 = pneg %p259
      %p481 = pneg %p283
      %p482 = pneg %p280
      %p483 = pneg %p304
      %p484 = pneg %p301
      %p485 = pneg %p325
      %p486 = pneg %p322
      %p487 = pneg %p346
      %p488 = pneg %p343
      %p489 = pneg %p372
      %p490 = pneg %p369
      %p491 = scmp.lt.s32.totalorder %s26, 1
      %s492 = scalar_select %p491, %s26, 1
      %s493 = smul.addr %s492, 8
      %s494 = scalar_lea.vmem %s15, %s493
      %p495 = scmp.lt.s32.totalorder %s26, 1
      %s496 = scalar_select %p495, %s26, 1
      %s497 = smul.addr %s496, 8
      %s498 = scalar_lea.vmem %s0, %s497
      %p499 = scmp.lt.s32.totalorder %s26, 1
      %s500 = scalar_select %p499, %s26, 1
      %s501 = smul.addr %s500, 8
      %s502 = scalar_lea.vmem %s2, %s501
      %p503 = scmp.lt.s32.totalorder %s26, 1
      %s504 = scalar_select %p503, %s26, 1
      %s505 = smul.addr %s504, 8
      %s506 = scalar_lea.vmem %s15, %s505
      %v507 = vld [vmem:[%s498] sm:$0xff]
      %v508 = vld [vmem:[%s502] sm:$0xff]
      %v509 = vld [vmem:[%s3] sm:$0x1]
      %v510 = vld [vmem:[%s4] sm:$0x1]
      %vm511 = vcmask 261120
      %v512 = vsel %vm511, %v507, 0.0
      %513 = vadd.xlane.f32.xlu0 %v512
      %v514 = vpop.xlane.xlu0 %513
      %v515 = vrcp.pop 32.0
      %v516 = vmul.f32 %v514, %v515
      %v517 = vsub.f32 %v507, %v516
      %v518 = vmul.f32 %v517, %v517
      %v519 = vsel %vm511, %v518, 0.0
      %520 = vadd.xlane.f32.xlu0 %v519
      %v521 = vpop.xlane.xlu0 %520
      %v522 = vmul.f32 %v521, %v515
      %v523 = vadd.f32 %v522, 1e-05
      %v524 = vrsqrt.pop %v523
      %v525 = vmul.f32 %v517, %v524
      %v527 = vlaneseq
      %v528 = vshrl.u32 %v527, 7
      %v529 = vsub.s32 0, %v528
      %v530 = vrot.slane %v509, %v529
      %v532 = vmul.f32 %v525, %v530
      %v534 = vlaneseq
      %v535 = vshrl.u32 %v534, 7
      %v536 = vsub.s32 0, %v535
      %v537 = vrot.slane %v510, %v536
      %v539 = vadd.f32 %v532, %v537
      %v540 = vld [vmem:[%s5] sm:$0xff]
      %v541 = vld [vmem:[%s5 + $0x8] sm:$0xff]
      %v542 = vld [vmem:[%s5 + $0x10] sm:$0xff]
      %v543 = vld [vmem:[%s5 + $0x18] sm:$0xff]
      %v544 = vld [vmem:[%s6] sm:$0x1]
      %v546 = vlaneseq
      %v547 = vshrl.u32 %v546, 7
      %v548 = vsub.s32 0, %v547
      %v549 = vrot.slane %v544, %v548
      %v552 = vsel %vm511, %v539, 0
      %554 = vmatprep.subr.mxu0 0.0
      %555 = vmatpush1.msra.mxu0 0.0
      %556 = vmatprep.subr.mxu0 0.0
      %557 = vmatpush1.msra.mxu0 0.0
      %558 = vmatprep.subr.mxu0 0.0
      %559 = vmatpush1.msra.mxu0 0.0
      %560 = vmatprep.subr.mxu0 0.0
      %561 = vmatpush1.msra.mxu0 0.0
      %562 = vmatprep.subr.mxu0 0.0
      %563 = vmatpush1.msra.mxu0 0.0
      %564 = vmatprep.subr.mxu0 0.0
      %565 = vmatpush1.msra.mxu0 0.0
      %566 = vmatprep.subr.mxu0 0.0
      %567 = vmatpush1.msra.mxu0 0.0
      %568 = vmatprep.subr.mxu0 0.0
      %569 = vmatpush1.msra.mxu0 0.0
      %570 = vmatprep.subr.mxu0 0.0
      %571 = vmatpush1.msra.mxu0 0.0
      %572 = vmatprep.subr.mxu0 0.0
      %573 = vmatpush1.msra.mxu0 0.0
      %574 = vmatprep.subr.mxu0 0.0
      %575 = vmatpush1.msra.mxu0 0.0
      %576 = vmatprep.subr.mxu0 0.0
      %577 = vmatpush1.msra.mxu0 0.0
      %578 = vmatprep.subr.mxu0 0.0
      %579 = vmatpush1.msra.mxu0 %v543
      %580 = vmatprep.subr.mxu0 0.0
      %581 = vmatpush1.msra.mxu0 %v542
      %582 = vmatprep.subr.mxu0 0.0
      %583 = vmatpush1.msra.mxu0 %v541
      %584 = vmatprep.subr.mxu0 0.0
      %585 = vmatpush1.msra.mxu0 %v540
      %586 = vmatprep.subr.mxu0 0.0
      %587 = vmatpush2.msra.mxu0 0.0
      %588 = vmatprep.subr.mxu0 0.0
      %589 = vmatpush2.msra.mxu0 0.0
      %590 = vmatprep.subr.mxu0 0.0
      %591 = vmatpush2.msra.mxu0 0.0
      %592 = vmatprep.subr.mxu0 0.0
      %593 = vmatpush2.msra.mxu0 0.0
      %594 = vmatprep.subr.mxu0 0.0
      %595 = vmatpush2.msra.mxu0 0.0
      %596 = vmatprep.subr.mxu0 0.0
      %597 = vmatpush2.msra.mxu0 0.0
      %598 = vmatprep.subr.mxu0 0.0
      %599 = vmatpush2.msra.mxu0 0.0
      %600 = vmatprep.subr.mxu0 0.0
      %601 = vmatpush2.msra.mxu0 0.0
      %602 = vmatprep.subr.mxu0 0.0
      %603 = vmatpush2.msra.mxu0 0.0
      %604 = vmatprep.subr.mxu0 0.0
      %605 = vmatpush2.msra.mxu0 0.0
      %606 = vmatprep.subr.mxu0 0.0
      %607 = vmatpush2.msra.mxu0 0.0
      %608 = vmatprep.subr.mxu0 0.0
      %609 = vmatpush2.msra.mxu0 0.0
      %610 = vmatprep.subr.mxu0 0.0
      %611 = vmatpush2.msra.mxu0 0.0
      %612 = vmatprep.subr.mxu0 0.0
      %613 = vmatpush2.msra.mxu0 0.0
      %614 = vmatprep.subr.mxu0 0.0
      %615 = vmatpush2.msra.mxu0 0.0
      %616 = vmatprep.subr.mxu0 0.0
      %617 = vmatpush2.msra.mxu0 0.0
      %618 = vmatprep.mubr.f32.mxu0 0.0
      %619 = vmatmul.mubr.f32.gmra.mxu0 %v552
      %v620 = vpop.f32.mrf.mxu0
      %v621 = vadd.f32 %v549, %v620
      %v622 = vpop.f32.mrf.mxu0
      %623 = vdwg.mxu0
      %v624 = vld [vmem:[%s7] sm:$0xff]
      %v625 = vld [vmem:[%s7 + $0x8] sm:$0xff]
      %v626 = vld [vmem:[%s7 + $0x10] sm:$0xff]
      %v627 = vld [vmem:[%s7 + $0x18] sm:$0xff]
      %v628 = vmul.f32 %v621, 0.35355338
      %630 = vrot.lane.b32.xlu0 %v621, 96
      %v631 = vpop.permute.xlu0 %630
      %vm632 = vcmask 64512
      %v634 = vsel %vm632, %v628, 0
      %v636 = vsel %vm632, %v631, 0
      %638 = vmatprep.subr.mxu0 0.0
      %639 = vmatpush1.xpose.msra.mxu0 0.0
      %640 = vmatprep.subr.mxu0 0.0
      %641 = vmatpush1.xpose.msra.mxu0 0.0
      %642 = vmatprep.subr.mxu0 0.0
      %643 = vmatpush1.xpose.msra.mxu0 0.0
      %644 = vmatprep.subr.mxu0 0.0
      %645 = vmatpush1.xpose.msra.mxu0 0.0
      %646 = vmatprep.subr.mxu0 0.0
      %647 = vmatpush1.xpose.msra.mxu0 0.0
      %648 = vmatprep.subr.mxu0 0.0
      %649 = vmatpush1.xpose.msra.mxu0 0.0
      %650 = vmatprep.subr.mxu0 0.0
      %651 = vmatpush1.xpose.msra.mxu0 0.0
      %652 = vmatprep.subr.mxu0 0.0
      %653 = vmatpush1.xpose.msra.mxu0 0.0
      %654 = vmatprep.subr.mxu0 0.0
      %655 = vmatpush1.xpose.msra.mxu0 0.0
      %656 = vmatprep.subr.mxu0 0.0
      %657 = vmatpush1.xpose.msra.mxu0 0.0
      %658 = vmatprep.subr.mxu0 0.0
      %659 = vmatpush1.xpose.msra.mxu0 0.0
      %660 = vmatprep.subr.mxu0 0.0
      %661 = vmatpush1.xpose.msra.mxu0 0.0
      %662 = vmatprep.subr.mxu0 0.0
      %663 = vmatpush1.xpose.msra.mxu0 0.0
      %664 = vmatprep.subr.mxu0 0.0
      %665 = vmatpush1.xpose.msra.mxu0 0.0
      %666 = vmatprep.subr.mxu0 0.0
      %667 = vmatpush1.xpose.msra.mxu0 0.0
      %668 = vmatprep.subr.mxu0 0.0
      %669 = vmatpush1.xpose.msra.mxu0 %v636
      %670 = vmatprep.subr.mxu0 0.0
      %671 = vmatpush2.xpose.msra.mxu0 0.0
      %672 = vmatprep.subr.mxu0 0.0
      %673 = vmatpush2.xpose.msra.mxu0 0.0
      %674 = vmatprep.subr.mxu0 0.0
      %675 = vmatpush2.xpose.msra.mxu0 0.0
      %676 = vmatprep.subr.mxu0 0.0
      %677 = vmatpush2.xpose.msra.mxu0 0.0
      %678 = vmatprep.subr.mxu0 0.0
      %679 = vmatpush2.xpose.msra.mxu0 0.0
      %680 = vmatprep.subr.mxu0 0.0
      %681 = vmatpush2.xpose.msra.mxu0 0.0
      %682 = vmatprep.subr.mxu0 0.0
      %683 = vmatpush2.xpose.msra.mxu0 0.0
      %684 = vmatprep.subr.mxu0 0.0
      %685 = vmatpush2.xpose.msra.mxu0 0.0
      %686 = vmatprep.subr.mxu0 0.0
      %687 = vmatpush2.xpose.msra.mxu0 0.0
      %688 = vmatprep.subr.mxu0 0.0
      %689 = vmatpush2.xpose.msra.mxu0 0.0
      %690 = vmatprep.subr.mxu0 0.0
      %691 = vmatpush2.xpose.msra.mxu0 0.0
      %692 = vmatprep.subr.mxu0 0.0
      %693 = vmatpush2.xpose.msra.mxu0 0.0
      %694 = vmatprep.subr.mxu0 0.0
      %695 = vmatpush2.xpose.msra.mxu0 0.0
      %696 = vmatprep.subr.mxu0 0.0
      %697 = vmatpush2.xpose.msra.mxu0 0.0
      %698 = vmatprep.subr.mxu0 0.0
      %699 = vmatpush2.xpose.msra.mxu0 0.0
      %700 = vmatprep.subr.mxu0 0.0
      %701 = vmatpush2.xpose.msra.mxu0 0.0
      %702 = vmatprep.mubr.f32.mxu0 0.0
      %703 = vmatmul.mubr.f32.gmra.mxu0 %v634
      %v704 = vpop.f32.mrf.mxu0
      %v705 = vadd.f32 %v508, %v704
      %v706 = vpop.f32.mrf.mxu0
      %707 = vdwg.mxu0
      %v708 = vsel %vm632, %v705, -inf
      %709 = vmax.xlane.f32.xlu0 %v708
      %v710 = vpop.xlane.xlu0 %709
      %v711 = vmax.f32 %v710, -1e+30
      %v712 = vsub.f32 %v705, %v711
      %v713 = vmul.f32 %v712, 1.442695
      %v714 = vpow.pop %v713
      %v715 = vsel %vm632, %v714, 0.0
      %716 = vadd.xlane.f32.xlu0 %v715
      %v717 = vpop.xlane.xlu0 %716
      %v718 = vmax.f32 %v717, 1e-30
      %v719 = vrcp.pop %v718
      %720 = vrot.lane.b32.xlu0 %v621, 64
      %v721 = vpop.permute.xlu0 %720
      %v724 = vsel %vm632, %v714, 0
      %726 = vmatprep.subr.mxu0 0.0
      %727 = vmatpush1.msra.mxu0 0.0
      %728 = vmatprep.subr.mxu0 0.0
      %729 = vmatpush1.msra.mxu0 0.0
      %730 = vmatprep.subr.mxu0 0.0
      %731 = vmatpush1.msra.mxu0 0.0
      %732 = vmatprep.subr.mxu0 0.0
      %733 = vmatpush1.msra.mxu0 0.0
      %734 = vmatprep.subr.mxu0 0.0
      %735 = vmatpush1.msra.mxu0 0.0
      %736 = vmatprep.subr.mxu0 0.0
      %737 = vmatpush1.msra.mxu0 0.0
      %738 = vmatprep.subr.mxu0 0.0
      %739 = vmatpush1.msra.mxu0 0.0
      %740 = vmatprep.subr.mxu0 0.0
      %741 = vmatpush1.msra.mxu0 0.0
      %742 = vmatprep.subr.mxu0 0.0
      %743 = vmatpush1.msra.mxu0 0.0
      %744 = vmatprep.subr.mxu0 0.0
      %745 = vmatpush1.msra.mxu0 0.0
      %746 = vmatprep.subr.mxu0 0.0
      %747 = vmatpush1.msra.mxu0 0.0
      %748 = vmatprep.subr.mxu0 0.0
      %749 = vmatpush1.msra.mxu0 0.0
      %750 = vmatprep.subr.mxu0 0.0
      %751 = vmatpush1.msra.mxu0 0.0
      %752 = vmatprep.subr.mxu0 0.0
      %753 = vmatpush1.msra.mxu0 0.0
      %754 = vmatprep.subr.mxu0 0.0
      %755 = vmatpush1.msra.mxu0 0.0
      %756 = vmatprep.subr.mxu0 0.0
      %757 = vmatpush1.msra.mxu0 %v721
      %758 = vmatprep.subr.mxu0 0.0
      %759 = vmatpush2.msra.mxu0 0.0
      %760 = vmatprep.subr.mxu0 0.0
      %761 = vmatpush2.msra.mxu0 0.0
      %762 = vmatprep.subr.mxu0 0.0
      %763 = vmatpush2.msra.mxu0 0.0
      %764 = vmatprep.subr.mxu0 0.0
      %765 = vmatpush2.msra.mxu0 0.0
      %766 = vmatprep.subr.mxu0 0.0
      %767 = vmatpush2.msra.mxu0 0.0
      %768 = vmatprep.subr.mxu0 0.0
      %769 = vmatpush2.msra.mxu0 0.0
      %770 = vmatprep.subr.mxu0 0.0
      %771 = vmatpush2.msra.mxu0 0.0
      %772 = vmatprep.subr.mxu0 0.0
      %773 = vmatpush2.msra.mxu0 0.0
      %774 = vmatprep.subr.mxu0 0.0
      %775 = vmatpush2.msra.mxu0 0.0
      %776 = vmatprep.subr.mxu0 0.0
      %777 = vmatpush2.msra.mxu0 0.0
      %778 = vmatprep.subr.mxu0 0.0
      %779 = vmatpush2.msra.mxu0 0.0
      %780 = vmatprep.subr.mxu0 0.0
      %781 = vmatpush2.msra.mxu0 0.0
      %782 = vmatprep.subr.mxu0 0.0
      %783 = vmatpush2.msra.mxu0 0.0
      %784 = vmatprep.subr.mxu0 0.0
      %785 = vmatpush2.msra.mxu0 0.0
      %786 = vmatprep.subr.mxu0 0.0
      %787 = vmatpush2.msra.mxu0 0.0
      %788 = vmatprep.subr.mxu0 0.0
      %789 = vmatpush2.msra.mxu0 0.0
      %790 = vmatprep.mubr.f32.mxu0 0.0
      %791 = vmatmul.mubr.f32.gmra.mxu0 %v724
      %v792 = vpop.f32.mrf.mxu0
      %v793 = vadd.f32 0.0, %v792
      %v794 = vpop.f32.mrf.mxu0
      %795 = vdwg.mxu0
      %v796 = vmul.f32 %v793, %v719
      %797 = vrot.lane.b32.xlu0 %v628, 120
      %v798 = vpop.permute.xlu0 %797
      %799 = vrot.lane.b32.xlu0 %v621, 88
      %v800 = vpop.permute.xlu0 %799
      %v801 = vsel %vm632, %v798, 0
      %v803 = vsel %vm632, %v800, 0
      %805 = vmatprep.subr.mxu0 0.0
      %806 = vmatpush1.xpose.msra.mxu0 0.0
      %807 = vmatprep.subr.mxu0 0.0
      %808 = vmatpush1.xpose.msra.mxu0 0.0
      %809 = vmatprep.subr.mxu0 0.0
      %810 = vmatpush1.xpose.msra.mxu0 0.0
      %811 = vmatprep.subr.mxu0 0.0
      %812 = vmatpush1.xpose.msra.mxu0 0.0
      %813 = vmatprep.subr.mxu0 0.0
      %814 = vmatpush1.xpose.msra.mxu0 0.0
      %815 = vmatprep.subr.mxu0 0.0
      %816 = vmatpush1.xpose.msra.mxu0 0.0
      %817 = vmatprep.subr.mxu0 0.0
      %818 = vmatpush1.xpose.msra.mxu0 0.0
      %819 = vmatprep.subr.mxu0 0.0
      %820 = vmatpush1.xpose.msra.mxu0 0.0
      %821 = vmatprep.subr.mxu0 0.0
      %822 = vmatpush1.xpose.msra.mxu0 0.0
      %823 = vmatprep.subr.mxu0 0.0
      %824 = vmatpush1.xpose.msra.mxu0 0.0
      %825 = vmatprep.subr.mxu0 0.0
      %826 = vmatpush1.xpose.msra.mxu0 0.0
      %827 = vmatprep.subr.mxu0 0.0
      %828 = vmatpush1.xpose.msra.mxu0 0.0
      %829 = vmatprep.subr.mxu0 0.0
      %830 = vmatpush1.xpose.msra.mxu0 0.0
      %831 = vmatprep.subr.mxu0 0.0
      %832 = vmatpush1.xpose.msra.mxu0 0.0
      %833 = vmatprep.subr.mxu0 0.0
      %834 = vmatpush1.xpose.msra.mxu0 0.0
      %835 = vmatprep.subr.mxu0 0.0
      %836 = vmatpush1.xpose.msra.mxu0 %v803
      %837 = vmatprep.subr.mxu0 0.0
      %838 = vmatpush2.xpose.msra.mxu0 0.0
      %839 = vmatprep.subr.mxu0 0.0
      %840 = vmatpush2.xpose.msra.mxu0 0.0
      %841 = vmatprep.subr.mxu0 0.0
      %842 = vmatpush2.xpose.msra.mxu0 0.0
      %843 = vmatprep.subr.mxu0 0.0
      %844 = vmatpush2.xpose.msra.mxu0 0.0
      %845 = vmatprep.subr.mxu0 0.0
      %846 = vmatpush2.xpose.msra.mxu0 0.0
      %847 = vmatprep.subr.mxu0 0.0
      %848 = vmatpush2.xpose.msra.mxu0 0.0
      %849 = vmatprep.subr.mxu0 0.0
      %850 = vmatpush2.xpose.msra.mxu0 0.0
      %851 = vmatprep.subr.mxu0 0.0
      %852 = vmatpush2.xpose.msra.mxu0 0.0
      %853 = vmatprep.subr.mxu0 0.0
      %854 = vmatpush2.xpose.msra.mxu0 0.0
      %855 = vmatprep.subr.mxu0 0.0
      %856 = vmatpush2.xpose.msra.mxu0 0.0
      %857 = vmatprep.subr.mxu0 0.0
      %858 = vmatpush2.xpose.msra.mxu0 0.0
      %859 = vmatprep.subr.mxu0 0.0
      %860 = vmatpush2.xpose.msra.mxu0 0.0
      %861 = vmatprep.subr.mxu0 0.0
      %862 = vmatpush2.xpose.msra.mxu0 0.0
      %863 = vmatprep.subr.mxu0 0.0
      %864 = vmatpush2.xpose.msra.mxu0 0.0
      %865 = vmatprep.subr.mxu0 0.0
      %866 = vmatpush2.xpose.msra.mxu0 0.0
      %867 = vmatprep.subr.mxu0 0.0
      %868 = vmatpush2.xpose.msra.mxu0 0.0
      %869 = vmatprep.mubr.f32.mxu0 0.0
      %870 = vmatmul.mubr.f32.gmra.mxu0 %v801
      %v871 = vpop.f32.mrf.mxu0
      %v872 = vadd.f32 %v508, %v871
      %v873 = vpop.f32.mrf.mxu0
      %874 = vdwg.mxu0
      %v875 = vsel %vm632, %v872, -inf
      %876 = vmax.xlane.f32.xlu0 %v875
      %v877 = vpop.xlane.xlu0 %876
      %v878 = vmax.f32 %v877, -1e+30
      %v879 = vsub.f32 %v872, %v878
      %v880 = vmul.f32 %v879, 1.442695
      %v881 = vpow.pop %v880
      %v882 = vsel %vm632, %v881, 0.0
      %883 = vadd.xlane.f32.xlu0 %v882
      %v884 = vpop.xlane.xlu0 %883
      %v885 = vmax.f32 %v884, 1e-30
      %v886 = vrcp.pop %v885
      %887 = vrot.lane.b32.xlu0 %v621, 56
      %v888 = vpop.permute.xlu0 %887
      %v891 = vsel %vm632, %v881, 0
      %893 = vmatprep.subr.mxu0 0.0
      %894 = vmatpush1.msra.mxu0 0.0
      %895 = vmatprep.subr.mxu0 0.0
      %896 = vmatpush1.msra.mxu0 0.0
      %897 = vmatprep.subr.mxu0 0.0
      %898 = vmatpush1.msra.mxu0 0.0
      %899 = vmatprep.subr.mxu0 0.0
      %900 = vmatpush1.msra.mxu0 0.0
      %901 = vmatprep.subr.mxu0 0.0
      %902 = vmatpush1.msra.mxu0 0.0
      %903 = vmatprep.subr.mxu0 0.0
      %904 = vmatpush1.msra.mxu0 0.0
      %905 = vmatprep.subr.mxu0 0.0
      %906 = vmatpush1.msra.mxu0 0.0
      %907 = vmatprep.subr.mxu0 0.0
      %908 = vmatpush1.msra.mxu0 0.0
      %909 = vmatprep.subr.mxu0 0.0
      %910 = vmatpush1.msra.mxu0 0.0
      %911 = vmatprep.subr.mxu0 0.0
      %912 = vmatpush1.msra.mxu0 0.0
      %913 = vmatprep.subr.mxu0 0.0
      %914 = vmatpush1.msra.mxu0 0.0
      %915 = vmatprep.subr.mxu0 0.0
      %916 = vmatpush1.msra.mxu0 0.0
      %917 = vmatprep.subr.mxu0 0.0
      %918 = vmatpush1.msra.mxu0 0.0
      %919 = vmatprep.subr.mxu0 0.0
      %920 = vmatpush1.msra.mxu0 0.0
      %921 = vmatprep.subr.mxu0 0.0
      %922 = vmatpush1.msra.mxu0 0.0
      %923 = vmatprep.subr.mxu0 0.0
      %924 = vmatpush1.msra.mxu0 %v888
      %925 = vmatprep.subr.mxu0 0.0
      %926 = vmatpush2.msra.mxu0 0.0
      %927 = vmatprep.subr.mxu0 0.0
      %928 = vmatpush2.msra.mxu0 0.0
      %929 = vmatprep.subr.mxu0 0.0
      %930 = vmatpush2.msra.mxu0 0.0
      %931 = vmatprep.subr.mxu0 0.0
      %932 = vmatpush2.msra.mxu0 0.0
      %933 = vmatprep.subr.mxu0 0.0
      %934 = vmatpush2.msra.mxu0 0.0
      %935 = vmatprep.subr.mxu0 0.0
      %936 = vmatpush2.msra.mxu0 0.0
      %937 = vmatprep.subr.mxu0 0.0
      %938 = vmatpush2.msra.mxu0 0.0
      %939 = vmatprep.subr.mxu0 0.0
      %940 = vmatpush2.msra.mxu0 0.0
      %941 = vmatprep.subr.mxu0 0.0
      %942 = vmatpush2.msra.mxu0 0.0
      %943 = vmatprep.subr.mxu0 0.0
      %944 = vmatpush2.msra.mxu0 0.0
      %945 = vmatprep.subr.mxu0 0.0
      %946 = vmatpush2.msra.mxu0 0.0
      %947 = vmatprep.subr.mxu0 0.0
      %948 = vmatpush2.msra.mxu0 0.0
      %949 = vmatprep.subr.mxu0 0.0
      %950 = vmatpush2.msra.mxu0 0.0
      %951 = vmatprep.subr.mxu0 0.0
      %952 = vmatpush2.msra.mxu0 0.0
      %953 = vmatprep.subr.mxu0 0.0
      %954 = vmatpush2.msra.mxu0 0.0
      %955 = vmatprep.subr.mxu0 0.0
      %956 = vmatpush2.msra.mxu0 0.0
      %957 = vmatprep.mubr.f32.mxu0 0.0
      %958 = vmatmul.mubr.f32.gmra.mxu0 %v891
      %v959 = vpop.f32.mrf.mxu0
      %v960 = vadd.f32 0.0, %v959
      %v961 = vpop.f32.mrf.mxu0
      %962 = vdwg.mxu0
      %v963 = vmul.f32 %v960, %v886
      %v965 = vsel %vm632, %v963, 0
      %967 = vmatprep.subr.mxu0 0.0
      %968 = vmatpush1.msra.mxu0 0.0
      %969 = vmatprep.subr.mxu0 0.0
      %970 = vmatpush1.msra.mxu0 0.0
      %971 = vmatprep.subr.mxu0 0.0
      %972 = vmatpush1.msra.mxu0 0.0
      %973 = vmatprep.subr.mxu0 0.0
      %974 = vmatpush1.msra.mxu0 0.0
      %975 = vmatprep.subr.mxu0 0.0
      %976 = vmatpush1.msra.mxu0 0.0
      %977 = vmatprep.subr.mxu0 0.0
      %978 = vmatpush1.msra.mxu0 0.0
      %979 = vmatprep.subr.mxu0 0.0
      %980 = vmatpush1.msra.mxu0 0.0
      %981 = vmatprep.subr.mxu0 0.0
      %982 = vmatpush1.msra.mxu0 0.0
      %983 = vmatprep.subr.mxu0 0.0
      %984 = vmatpush1.msra.mxu0 0.0
      %985 = vmatprep.subr.mxu0 0.0
      %986 = vmatpush1.msra.mxu0 0.0
      %987 = vmatprep.subr.mxu0 0.0
      %988 = vmatpush1.msra.mxu0 0.0
      %989 = vmatprep.subr.mxu0 0.0
      %990 = vmatpush1.msra.mxu0 0.0
      %991 = vmatprep.subr.mxu0 0.0
      %992 = vmatpush1.msra.mxu0 0.0
      %993 = vmatprep.subr.mxu0 0.0
      %994 = vmatpush1.msra.mxu0 0.0
      %995 = vmatprep.subr.mxu0 0.0
      %996 = vmatpush1.msra.mxu0 0.0
      %997 = vmatprep.subr.mxu0 0.0
      %998 = vmatpush1.msra.mxu0 %v625
      %999 = vmatprep.subr.mxu0 0.0
      %1000 = vmatpush2.msra.mxu0 0.0
      %1001 = vmatprep.subr.mxu0 0.0
      %1002 = vmatpush2.msra.mxu0 0.0
      %1003 = vmatprep.subr.mxu0 0.0
      %1004 = vmatpush2.msra.mxu0 0.0
      %1005 = vmatprep.subr.mxu0 0.0
      %1006 = vmatpush2.msra.mxu0 0.0
      %1007 = vmatprep.subr.mxu0 0.0
      %1008 = vmatpush2.msra.mxu0 0.0
      %1009 = vmatprep.subr.mxu0 0.0
      %1010 = vmatpush2.msra.mxu0 0.0
      %1011 = vmatprep.subr.mxu0 0.0
      %1012 = vmatpush2.msra.mxu0 0.0
      %1013 = vmatprep.subr.mxu0 0.0
      %1014 = vmatpush2.msra.mxu0 0.0
      %1015 = vmatprep.subr.mxu0 0.0
      %1016 = vmatpush2.msra.mxu0 0.0
      %1017 = vmatprep.subr.mxu0 0.0
      %1018 = vmatpush2.msra.mxu0 0.0
      %1019 = vmatprep.subr.mxu0 0.0
      %1020 = vmatpush2.msra.mxu0 0.0
      %1021 = vmatprep.subr.mxu0 0.0
      %1022 = vmatpush2.msra.mxu0 0.0
      %1023 = vmatprep.subr.mxu0 0.0
      %1024 = vmatpush2.msra.mxu0 0.0
      %1025 = vmatprep.subr.mxu0 0.0
      %1026 = vmatpush2.msra.mxu0 0.0
      %1027 = vmatprep.subr.mxu0 0.0
      %1028 = vmatpush2.msra.mxu0 0.0
      %1029 = vmatprep.subr.mxu0 0.0
      %1030 = vmatpush2.msra.mxu0 0.0
      %1031 = vmatprep.mubr.f32.mxu0 0.0
      %1032 = vmatmul.mubr.f32.gmra.mxu0 %v965
      %v1033 = vpop.f32.mrf.mxu0
      %v1034 = vadd.f32 0.0, %v1033
      %v1035 = vpop.f32.mrf.mxu0
      %1036 = vdwg.mxu0
      %v1038 = vsel %vm632, %v796, 0
      %1040 = vmatprep.subr.mxu0 0.0
      %1041 = vmatpush1.msra.mxu0 0.0
      %1042 = vmatprep.subr.mxu0 0.0
      %1043 = vmatpush1.msra.mxu0 0.0
      %1044 = vmatprep.subr.mxu0 0.0
      %1045 = vmatpush1.msra.mxu0 0.0
      %1046 = vmatprep.subr.mxu0 0.0
      %1047 = vmatpush1.msra.mxu0 0.0
      %1048 = vmatprep.subr.mxu0 0.0
      %1049 = vmatpush1.msra.mxu0 0.0
      %1050 = vmatprep.subr.mxu0 0.0
      %1051 = vmatpush1.msra.mxu0 0.0
      %1052 = vmatprep.subr.mxu0 0.0
      %1053 = vmatpush1.msra.mxu0 0.0
      %1054 = vmatprep.subr.mxu0 0.0
      %1055 = vmatpush1.msra.mxu0 0.0
      %1056 = vmatprep.subr.mxu0 0.0
      %1057 = vmatpush1.msra.mxu0 0.0
      %1058 = vmatprep.subr.mxu0 0.0
      %1059 = vmatpush1.msra.mxu0 0.0
      %1060 = vmatprep.subr.mxu0 0.0
      %1061 = vmatpush1.msra.mxu0 0.0
      %1062 = vmatprep.subr.mxu0 0.0
      %1063 = vmatpush1.msra.mxu0 0.0
      %1064 = vmatprep.subr.mxu0 0.0
      %1065 = vmatpush1.msra.mxu0 0.0
      %1066 = vmatprep.subr.mxu0 0.0
      %1067 = vmatpush1.msra.mxu0 0.0
      %1068 = vmatprep.subr.mxu0 0.0
      %1069 = vmatpush1.msra.mxu0 0.0
      %1070 = vmatprep.subr.mxu0 0.0
      %1071 = vmatpush1.msra.mxu0 %v624
      %1072 = vmatprep.subr.mxu0 0.0
      %1073 = vmatpush2.msra.mxu0 0.0
      %1074 = vmatprep.subr.mxu0 0.0
      %1075 = vmatpush2.msra.mxu0 0.0
      %1076 = vmatprep.subr.mxu0 0.0
      %1077 = vmatpush2.msra.mxu0 0.0
      %1078 = vmatprep.subr.mxu0 0.0
      %1079 = vmatpush2.msra.mxu0 0.0
      %1080 = vmatprep.subr.mxu0 0.0
      %1081 = vmatpush2.msra.mxu0 0.0
      %1082 = vmatprep.subr.mxu0 0.0
      %1083 = vmatpush2.msra.mxu0 0.0
      %1084 = vmatprep.subr.mxu0 0.0
      %1085 = vmatpush2.msra.mxu0 0.0
      %1086 = vmatprep.subr.mxu0 0.0
      %1087 = vmatpush2.msra.mxu0 0.0
      %1088 = vmatprep.subr.mxu0 0.0
      %1089 = vmatpush2.msra.mxu0 0.0
      %1090 = vmatprep.subr.mxu0 0.0
      %1091 = vmatpush2.msra.mxu0 0.0
      %1092 = vmatprep.subr.mxu0 0.0
      %1093 = vmatpush2.msra.mxu0 0.0
      %1094 = vmatprep.subr.mxu0 0.0
      %1095 = vmatpush2.msra.mxu0 0.0
      %1096 = vmatprep.subr.mxu0 0.0
      %1097 = vmatpush2.msra.mxu0 0.0
      %1098 = vmatprep.subr.mxu0 0.0
      %1099 = vmatpush2.msra.mxu0 0.0
      %1100 = vmatprep.subr.mxu0 0.0
      %1101 = vmatpush2.msra.mxu0 0.0
      %1102 = vmatprep.subr.mxu0 0.0
      %1103 = vmatpush2.msra.mxu0 0.0
      %1104 = vmatprep.mubr.f32.mxu0 0.0
      %1105 = vmatmul.mubr.f32.gmra.mxu0 %v1038
      %v1106 = vpop.f32.mrf.mxu0
      %v1107 = vadd.f32 %v1034, %v1106
      %v1108 = vpop.f32.mrf.mxu0
      %1109 = vdwg.mxu0
      %1110 = vrot.lane.b32.xlu0 %v628, 112
      %v1111 = vpop.permute.xlu0 %1110
      %1112 = vrot.lane.b32.xlu0 %v621, 80
      %v1113 = vpop.permute.xlu0 %1112
      %v1114 = vsel %vm632, %v1111, 0
      %v1116 = vsel %vm632, %v1113, 0
      %1118 = vmatprep.subr.mxu0 0.0
      %1119 = vmatpush1.xpose.msra.mxu0 0.0
      %1120 = vmatprep.subr.mxu0 0.0
      %1121 = vmatpush1.xpose.msra.mxu0 0.0
      %1122 = vmatprep.subr.mxu0 0.0
      %1123 = vmatpush1.xpose.msra.mxu0 0.0
      %1124 = vmatprep.subr.mxu0 0.0
      %1125 = vmatpush1.xpose.msra.mxu0 0.0
      %1126 = vmatprep.subr.mxu0 0.0
      %1127 = vmatpush1.xpose.msra.mxu0 0.0
      %1128 = vmatprep.subr.mxu0 0.0
      %1129 = vmatpush1.xpose.msra.mxu0 0.0
      %1130 = vmatprep.subr.mxu0 0.0
      %1131 = vmatpush1.xpose.msra.mxu0 0.0
      %1132 = vmatprep.subr.mxu0 0.0
      %1133 = vmatpush1.xpose.msra.mxu0 0.0
      %1134 = vmatprep.subr.mxu0 0.0
      %1135 = vmatpush1.xpose.msra.mxu0 0.0
      %1136 = vmatprep.subr.mxu0 0.0
      %1137 = vmatpush1.xpose.msra.mxu0 0.0
      %1138 = vmatprep.subr.mxu0 0.0
      %1139 = vmatpush1.xpose.msra.mxu0 0.0
      %1140 = vmatprep.subr.mxu0 0.0
      %1141 = vmatpush1.xpose.msra.mxu0 0.0
      %1142 = vmatprep.subr.mxu0 0.0
      %1143 = vmatpush1.xpose.msra.mxu0 0.0
      %1144 = vmatprep.subr.mxu0 0.0
      %1145 = vmatpush1.xpose.msra.mxu0 0.0
      %1146 = vmatprep.subr.mxu0 0.0
      %1147 = vmatpush1.xpose.msra.mxu0 0.0
      %1148 = vmatprep.subr.mxu0 0.0
      %1149 = vmatpush1.xpose.msra.mxu0 %v1116
      %1150 = vmatprep.subr.mxu0 0.0
      %1151 = vmatpush2.xpose.msra.mxu0 0.0
      %1152 = vmatprep.subr.mxu0 0.0
      %1153 = vmatpush2.xpose.msra.mxu0 0.0
      %1154 = vmatprep.subr.mxu0 0.0
      %1155 = vmatpush2.xpose.msra.mxu0 0.0
      %1156 = vmatprep.subr.mxu0 0.0
      %1157 = vmatpush2.xpose.msra.mxu0 0.0
      %1158 = vmatprep.subr.mxu0 0.0
      %1159 = vmatpush2.xpose.msra.mxu0 0.0
      %1160 = vmatprep.subr.mxu0 0.0
      %1161 = vmatpush2.xpose.msra.mxu0 0.0
      %1162 = vmatprep.subr.mxu0 0.0
      %1163 = vmatpush2.xpose.msra.mxu0 0.0
      %1164 = vmatprep.subr.mxu0 0.0
      %1165 = vmatpush2.xpose.msra.mxu0 0.0
      %1166 = vmatprep.subr.mxu0 0.0
      %1167 = vmatpush2.xpose.msra.mxu0 0.0
      %1168 = vmatprep.subr.mxu0 0.0
      %1169 = vmatpush2.xpose.msra.mxu0 0.0
      %1170 = vmatprep.subr.mxu0 0.0
      %1171 = vmatpush2.xpose.msra.mxu0 0.0
      %1172 = vmatprep.subr.mxu0 0.0
      %1173 = vmatpush2.xpose.msra.mxu0 0.0
      %1174 = vmatprep.subr.mxu0 0.0
      %1175 = vmatpush2.xpose.msra.mxu0 0.0
      %1176 = vmatprep.subr.mxu0 0.0
      %1177 = vmatpush2.xpose.msra.mxu0 0.0
      %1178 = vmatprep.subr.mxu0 0.0
      %1179 = vmatpush2.xpose.msra.mxu0 0.0
      %1180 = vmatprep.subr.mxu0 0.0
      %1181 = vmatpush2.xpose.msra.mxu0 0.0
      %1182 = vmatprep.mubr.f32.mxu0 0.0
      %1183 = vmatmul.mubr.f32.gmra.mxu0 %v1114
      %v1184 = vpop.f32.mrf.mxu0
      %v1185 = vadd.f32 %v508, %v1184
      %v1186 = vpop.f32.mrf.mxu0
      %1187 = vdwg.mxu0
      %v1188 = vsel %vm632, %v1185, -inf
      %1189 = vmax.xlane.f32.xlu0 %v1188
      %v1190 = vpop.xlane.xlu0 %1189
      %v1191 = vmax.f32 %v1190, -1e+30
      %v1192 = vsub.f32 %v1185, %v1191
      %v1193 = vmul.f32 %v1192, 1.442695
      %v1194 = vpow.pop %v1193
      %v1195 = vsel %vm632, %v1194, 0.0
      %1196 = vadd.xlane.f32.xlu0 %v1195
      %v1197 = vpop.xlane.xlu0 %1196
      %v1198 = vmax.f32 %v1197, 1e-30
      %v1199 = vrcp.pop %v1198
      %1200 = vrot.lane.b32.xlu0 %v621, 48
      %v1201 = vpop.permute.xlu0 %1200
      %v1204 = vsel %vm632, %v1194, 0
      %1206 = vmatprep.subr.mxu0 0.0
      %1207 = vmatpush1.msra.mxu0 0.0
      %1208 = vmatprep.subr.mxu0 0.0
      %1209 = vmatpush1.msra.mxu0 0.0
      %1210 = vmatprep.subr.mxu0 0.0
      %1211 = vmatpush1.msra.mxu0 0.0
      %1212 = vmatprep.subr.mxu0 0.0
      %1213 = vmatpush1.msra.mxu0 0.0
      %1214 = vmatprep.subr.mxu0 0.0
      %1215 = vmatpush1.msra.mxu0 0.0
      %1216 = vmatprep.subr.mxu0 0.0
      %1217 = vmatpush1.msra.mxu0 0.0
      %1218 = vmatprep.subr.mxu0 0.0
      %1219 = vmatpush1.msra.mxu0 0.0
      %1220 = vmatprep.subr.mxu0 0.0
      %1221 = vmatpush1.msra.mxu0 0.0
      %1222 = vmatprep.subr.mxu0 0.0
      %1223 = vmatpush1.msra.mxu0 0.0
      %1224 = vmatprep.subr.mxu0 0.0
      %1225 = vmatpush1.msra.mxu0 0.0
      %1226 = vmatprep.subr.mxu0 0.0
      %1227 = vmatpush1.msra.mxu0 0.0
      %1228 = vmatprep.subr.mxu0 0.0
      %1229 = vmatpush1.msra.mxu0 0.0
      %1230 = vmatprep.subr.mxu0 0.0
      %1231 = vmatpush1.msra.mxu0 0.0
      %1232 = vmatprep.subr.mxu0 0.0
      %1233 = vmatpush1.msra.mxu0 0.0
      %1234 = vmatprep.subr.mxu0 0.0
      %1235 = vmatpush1.msra.mxu0 0.0
      %1236 = vmatprep.subr.mxu0 0.0
      %1237 = vmatpush1.msra.mxu0 %v1201
      %1238 = vmatprep.subr.mxu0 0.0
      %1239 = vmatpush2.msra.mxu0 0.0
      %1240 = vmatprep.subr.mxu0 0.0
      %1241 = vmatpush2.msra.mxu0 0.0
      %1242 = vmatprep.subr.mxu0 0.0
      %1243 = vmatpush2.msra.mxu0 0.0
      %1244 = vmatprep.subr.mxu0 0.0
      %1245 = vmatpush2.msra.mxu0 0.0
      %1246 = vmatprep.subr.mxu0 0.0
      %1247 = vmatpush2.msra.mxu0 0.0
      %1248 = vmatprep.subr.mxu0 0.0
      %1249 = vmatpush2.msra.mxu0 0.0
      %1250 = vmatprep.subr.mxu0 0.0
      %1251 = vmatpush2.msra.mxu0 0.0
      %1252 = vmatprep.subr.mxu0 0.0
      %1253 = vmatpush2.msra.mxu0 0.0
      %1254 = vmatprep.subr.mxu0 0.0
      %1255 = vmatpush2.msra.mxu0 0.0
      %1256 = vmatprep.subr.mxu0 0.0
      %1257 = vmatpush2.msra.mxu0 0.0
      %1258 = vmatprep.subr.mxu0 0.0
      %1259 = vmatpush2.msra.mxu0 0.0
      %1260 = vmatprep.subr.mxu0 0.0
      %1261 = vmatpush2.msra.mxu0 0.0
      %1262 = vmatprep.subr.mxu0 0.0
      %1263 = vmatpush2.msra.mxu0 0.0
      %1264 = vmatprep.subr.mxu0 0.0
      %1265 = vmatpush2.msra.mxu0 0.0
      %1266 = vmatprep.subr.mxu0 0.0
      %1267 = vmatpush2.msra.mxu0 0.0
      %1268 = vmatprep.subr.mxu0 0.0
      %1269 = vmatpush2.msra.mxu0 0.0
      %1270 = vmatprep.mubr.f32.mxu0 0.0
      %1271 = vmatmul.mubr.f32.gmra.mxu0 %v1204
      %v1272 = vpop.f32.mrf.mxu0
      %v1273 = vadd.f32 0.0, %v1272
      %v1274 = vpop.f32.mrf.mxu0
      %1275 = vdwg.mxu0
      %v1276 = vmul.f32 %v1273, %v1199
      %v1278 = vsel %vm632, %v1276, 0
      %1280 = vmatprep.subr.mxu0 0.0
      %1281 = vmatpush1.msra.mxu0 0.0
      %1282 = vmatprep.subr.mxu0 0.0
      %1283 = vmatpush1.msra.mxu0 0.0
      %1284 = vmatprep.subr.mxu0 0.0
      %1285 = vmatpush1.msra.mxu0 0.0
      %1286 = vmatprep.subr.mxu0 0.0
      %1287 = vmatpush1.msra.mxu0 0.0
      %1288 = vmatprep.subr.mxu0 0.0
      %1289 = vmatpush1.msra.mxu0 0.0
      %1290 = vmatprep.subr.mxu0 0.0
      %1291 = vmatpush1.msra.mxu0 0.0
      %1292 = vmatprep.subr.mxu0 0.0
      %1293 = vmatpush1.msra.mxu0 0.0
      %1294 = vmatprep.subr.mxu0 0.0
      %1295 = vmatpush1.msra.mxu0 0.0
      %1296 = vmatprep.subr.mxu0 0.0
      %1297 = vmatpush1.msra.mxu0 0.0
      %1298 = vmatprep.subr.mxu0 0.0
      %1299 = vmatpush1.msra.mxu0 0.0
      %1300 = vmatprep.subr.mxu0 0.0
      %1301 = vmatpush1.msra.mxu0 0.0
      %1302 = vmatprep.subr.mxu0 0.0
      %1303 = vmatpush1.msra.mxu0 0.0
      %1304 = vmatprep.subr.mxu0 0.0
      %1305 = vmatpush1.msra.mxu0 0.0
      %1306 = vmatprep.subr.mxu0 0.0
      %1307 = vmatpush1.msra.mxu0 0.0
      %1308 = vmatprep.subr.mxu0 0.0
      %1309 = vmatpush1.msra.mxu0 0.0
      %1310 = vmatprep.subr.mxu0 0.0
      %1311 = vmatpush1.msra.mxu0 %v626
      %1312 = vmatprep.subr.mxu0 0.0
      %1313 = vmatpush2.msra.mxu0 0.0
      %1314 = vmatprep.subr.mxu0 0.0
      %1315 = vmatpush2.msra.mxu0 0.0
      %1316 = vmatprep.subr.mxu0 0.0
      %1317 = vmatpush2.msra.mxu0 0.0
      %1318 = vmatprep.subr.mxu0 0.0
      %1319 = vmatpush2.msra.mxu0 0.0
      %1320 = vmatprep.subr.mxu0 0.0
      %1321 = vmatpush2.msra.mxu0 0.0
      %1322 = vmatprep.subr.mxu0 0.0
      %1323 = vmatpush2.msra.mxu0 0.0
      %1324 = vmatprep.subr.mxu0 0.0
      %1325 = vmatpush2.msra.mxu0 0.0
      %1326 = vmatprep.subr.mxu0 0.0
      %1327 = vmatpush2.msra.mxu0 0.0
      %1328 = vmatprep.subr.mxu0 0.0
      %1329 = vmatpush2.msra.mxu0 0.0
      %1330 = vmatprep.subr.mxu0 0.0
      %1331 = vmatpush2.msra.mxu0 0.0
      %1332 = vmatprep.subr.mxu0 0.0
      %1333 = vmatpush2.msra.mxu0 0.0
      %1334 = vmatprep.subr.mxu0 0.0
      %1335 = vmatpush2.msra.mxu0 0.0
      %1336 = vmatprep.subr.mxu0 0.0
      %1337 = vmatpush2.msra.mxu0 0.0
      %1338 = vmatprep.subr.mxu0 0.0
      %1339 = vmatpush2.msra.mxu0 0.0
      %1340 = vmatprep.subr.mxu0 0.0
      %1341 = vmatpush2.msra.mxu0 0.0
      %1342 = vmatprep.subr.mxu0 0.0
      %1343 = vmatpush2.msra.mxu0 0.0
      %1344 = vmatprep.mubr.f32.mxu0 0.0
      %1345 = vmatmul.mubr.f32.gmra.mxu0 %v1278
      %v1346 = vpop.f32.mrf.mxu0
      %v1347 = vadd.f32 0.0, %v1346
      %v1348 = vpop.f32.mrf.mxu0
      %1349 = vdwg.mxu0
      %v1350 = vadd.f32 %v1107, %v1347
      %1351 = vrot.lane.b32.xlu0 %v628, 104
      %v1352 = vpop.permute.xlu0 %1351
      %1353 = vrot.lane.b32.xlu0 %v621, 72
      %v1354 = vpop.permute.xlu0 %1353
      %v1355 = vsel %vm632, %v1352, 0
      %v1357 = vsel %vm632, %v1354, 0
      %1359 = vmatprep.subr.mxu0 0.0
      %1360 = vmatpush1.xpose.msra.mxu0 0.0
      %1361 = vmatprep.subr.mxu0 0.0
      %1362 = vmatpush1.xpose.msra.mxu0 0.0
      %1363 = vmatprep.subr.mxu0 0.0
      %1364 = vmatpush1.xpose.msra.mxu0 0.0
      %1365 = vmatprep.subr.mxu0 0.0
      %1366 = vmatpush1.xpose.msra.mxu0 0.0
      %1367 = vmatprep.subr.mxu0 0.0
      %1368 = vmatpush1.xpose.msra.mxu0 0.0
      %1369 = vmatprep.subr.mxu0 0.0
      %1370 = vmatpush1.xpose.msra.mxu0 0.0
      %1371 = vmatprep.subr.mxu0 0.0
      %1372 = vmatpush1.xpose.msra.mxu0 0.0
      %1373 = vmatprep.subr.mxu0 0.0
      %1374 = vmatpush1.xpose.msra.mxu0 0.0
      %1375 = vmatprep.subr.mxu0 0.0
      %1376 = vmatpush1.xpose.msra.mxu0 0.0
      %1377 = vmatprep.subr.mxu0 0.0
      %1378 = vmatpush1.xpose.msra.mxu0 0.0
      %1379 = vmatprep.subr.mxu0 0.0
      %1380 = vmatpush1.xpose.msra.mxu0 0.0
      %1381 = vmatprep.subr.mxu0 0.0
      %1382 = vmatpush1.xpose.msra.mxu0 0.0
      %1383 = vmatprep.subr.mxu0 0.0
      %1384 = vmatpush1.xpose.msra.mxu0 0.0
      %1385 = vmatprep.subr.mxu0 0.0
      %1386 = vmatpush1.xpose.msra.mxu0 0.0
      %1387 = vmatprep.subr.mxu0 0.0
      %1388 = vmatpush1.xpose.msra.mxu0 0.0
      %1389 = vmatprep.subr.mxu0 0.0
      %1390 = vmatpush1.xpose.msra.mxu0 %v1357
      %1391 = vmatprep.subr.mxu0 0.0
      %1392 = vmatpush2.xpose.msra.mxu0 0.0
      %1393 = vmatprep.subr.mxu0 0.0
      %1394 = vmatpush2.xpose.msra.mxu0 0.0
      %1395 = vmatprep.subr.mxu0 0.0
      %1396 = vmatpush2.xpose.msra.mxu0 0.0
      %1397 = vmatprep.subr.mxu0 0.0
      %1398 = vmatpush2.xpose.msra.mxu0 0.0
      %1399 = vmatprep.subr.mxu0 0.0
      %1400 = vmatpush2.xpose.msra.mxu0 0.0
      %1401 = vmatprep.subr.mxu0 0.0
      %1402 = vmatpush2.xpose.msra.mxu0 0.0
      %1403 = vmatprep.subr.mxu0 0.0
      %1404 = vmatpush2.xpose.msra.mxu0 0.0
      %1405 = vmatprep.subr.mxu0 0.0
      %1406 = vmatpush2.xpose.msra.mxu0 0.0
      %1407 = vmatprep.subr.mxu0 0.0
      %1408 = vmatpush2.xpose.msra.mxu0 0.0
      %1409 = vmatprep.subr.mxu0 0.0
      %1410 = vmatpush2.xpose.msra.mxu0 0.0
      %1411 = vmatprep.subr.mxu0 0.0
      %1412 = vmatpush2.xpose.msra.mxu0 0.0
      %1413 = vmatprep.subr.mxu0 0.0
      %1414 = vmatpush2.xpose.msra.mxu0 0.0
      %1415 = vmatprep.subr.mxu0 0.0
      %1416 = vmatpush2.xpose.msra.mxu0 0.0
      %1417 = vmatprep.subr.mxu0 0.0
      %1418 = vmatpush2.xpose.msra.mxu0 0.0
      %1419 = vmatprep.subr.mxu0 0.0
      %1420 = vmatpush2.xpose.msra.mxu0 0.0
      %1421 = vmatprep.subr.mxu0 0.0
      %1422 = vmatpush2.xpose.msra.mxu0 0.0
      %1423 = vmatprep.mubr.f32.mxu0 0.0
      %1424 = vmatmul.mubr.f32.gmra.mxu0 %v1355
      %v1425 = vpop.f32.mrf.mxu0
      %v1426 = vadd.f32 %v508, %v1425
      %v1427 = vpop.f32.mrf.mxu0
      %1428 = vdwg.mxu0
      %v1429 = vsel %vm632, %v1426, -inf
      %1430 = vmax.xlane.f32.xlu0 %v1429
      %v1431 = vpop.xlane.xlu0 %1430
      %v1432 = vmax.f32 %v1431, -1e+30
      %v1433 = vsub.f32 %v1426, %v1432
      %v1434 = vmul.f32 %v1433, 1.442695
      %v1435 = vpow.pop %v1434
      %v1436 = vsel %vm632, %v1435, 0.0
      %1437 = vadd.xlane.f32.xlu0 %v1436
      %v1438 = vpop.xlane.xlu0 %1437
      %v1439 = vmax.f32 %v1438, 1e-30
      %v1440 = vrcp.pop %v1439
      %1441 = vrot.lane.b32.xlu0 %v621, 40
      %v1442 = vpop.permute.xlu0 %1441
      %v1445 = vsel %vm632, %v1435, 0
      %1447 = vmatprep.subr.mxu0 0.0
      %1448 = vmatpush1.msra.mxu0 0.0
      %1449 = vmatprep.subr.mxu0 0.0
      %1450 = vmatpush1.msra.mxu0 0.0
      %1451 = vmatprep.subr.mxu0 0.0
      %1452 = vmatpush1.msra.mxu0 0.0
      %1453 = vmatprep.subr.mxu0 0.0
      %1454 = vmatpush1.msra.mxu0 0.0
      %1455 = vmatprep.subr.mxu0 0.0
      %1456 = vmatpush1.msra.mxu0 0.0
      %1457 = vmatprep.subr.mxu0 0.0
      %1458 = vmatpush1.msra.mxu0 0.0
      %1459 = vmatprep.subr.mxu0 0.0
      %1460 = vmatpush1.msra.mxu0 0.0
      %1461 = vmatprep.subr.mxu0 0.0
      %1462 = vmatpush1.msra.mxu0 0.0
      %1463 = vmatprep.subr.mxu0 0.0
      %1464 = vmatpush1.msra.mxu0 0.0
      %1465 = vmatprep.subr.mxu0 0.0
      %1466 = vmatpush1.msra.mxu0 0.0
      %1467 = vmatprep.subr.mxu0 0.0
      %1468 = vmatpush1.msra.mxu0 0.0
      %1469 = vmatprep.subr.mxu0 0.0
      %1470 = vmatpush1.msra.mxu0 0.0
      %1471 = vmatprep.subr.mxu0 0.0
      %1472 = vmatpush1.msra.mxu0 0.0
      %1473 = vmatprep.subr.mxu0 0.0
      %1474 = vmatpush1.msra.mxu0 0.0
      %1475 = vmatprep.subr.mxu0 0.0
      %1476 = vmatpush1.msra.mxu0 0.0
      %1477 = vmatprep.subr.mxu0 0.0
      %1478 = vmatpush1.msra.mxu0 %v1442
      %1479 = vmatprep.subr.mxu0 0.0
      %1480 = vmatpush2.msra.mxu0 0.0
      %1481 = vmatprep.subr.mxu0 0.0
      %1482 = vmatpush2.msra.mxu0 0.0
      %1483 = vmatprep.subr.mxu0 0.0
      %1484 = vmatpush2.msra.mxu0 0.0
      %1485 = vmatprep.subr.mxu0 0.0
      %1486 = vmatpush2.msra.mxu0 0.0
      %1487 = vmatprep.subr.mxu0 0.0
      %1488 = vmatpush2.msra.mxu0 0.0
      %1489 = vmatprep.subr.mxu0 0.0
      %1490 = vmatpush2.msra.mxu0 0.0
      %1491 = vmatprep.subr.mxu0 0.0
      %1492 = vmatpush2.msra.mxu0 0.0
      %1493 = vmatprep.subr.mxu0 0.0
      %1494 = vmatpush2.msra.mxu0 0.0
      %1495 = vmatprep.subr.mxu0 0.0
      %1496 = vmatpush2.msra.mxu0 0.0
      %1497 = vmatprep.subr.mxu0 0.0
      %1498 = vmatpush2.msra.mxu0 0.0
      %1499 = vmatprep.subr.mxu0 0.0
      %1500 = vmatpush2.msra.mxu0 0.0
      %1501 = vmatprep.subr.mxu0 0.0
      %1502 = vmatpush2.msra.mxu0 0.0
      %1503 = vmatprep.subr.mxu0 0.0
      %1504 = vmatpush2.msra.mxu0 0.0
      %1505 = vmatprep.subr.mxu0 0.0
      %1506 = vmatpush2.msra.mxu0 0.0
      %1507 = vmatprep.subr.mxu0 0.0
      %1508 = vmatpush2.msra.mxu0 0.0
      %1509 = vmatprep.subr.mxu0 0.0
      %1510 = vmatpush2.msra.mxu0 0.0
      %1511 = vmatprep.mubr.f32.mxu0 0.0
      %1512 = vmatmul.mubr.f32.gmra.mxu0 %v1445
      %v1513 = vpop.f32.mrf.mxu0
      %v1514 = vadd.f32 0.0, %v1513
      %v1515 = vpop.f32.mrf.mxu0
      %1516 = vdwg.mxu0
      %v1517 = vmul.f32 %v1514, %v1440
      %v1519 = vsel %vm632, %v1517, 0
      %1521 = vmatprep.subr.mxu0 0.0
      %1522 = vmatpush1.msra.mxu0 0.0
      %1523 = vmatprep.subr.mxu0 0.0
      %1524 = vmatpush1.msra.mxu0 0.0
      %1525 = vmatprep.subr.mxu0 0.0
      %1526 = vmatpush1.msra.mxu0 0.0
      %1527 = vmatprep.subr.mxu0 0.0
      %1528 = vmatpush1.msra.mxu0 0.0
      %1529 = vmatprep.subr.mxu0 0.0
      %1530 = vmatpush1.msra.mxu0 0.0
      %1531 = vmatprep.subr.mxu0 0.0
      %1532 = vmatpush1.msra.mxu0 0.0
      %1533 = vmatprep.subr.mxu0 0.0
      %1534 = vmatpush1.msra.mxu0 0.0
      %1535 = vmatprep.subr.mxu0 0.0
      %1536 = vmatpush1.msra.mxu0 0.0
      %1537 = vmatprep.subr.mxu0 0.0
      %1538 = vmatpush1.msra.mxu0 0.0
      %1539 = vmatprep.subr.mxu0 0.0
      %1540 = vmatpush1.msra.mxu0 0.0
      %1541 = vmatprep.subr.mxu0 0.0
      %1542 = vmatpush1.msra.mxu0 0.0
      %1543 = vmatprep.subr.mxu0 0.0
      %1544 = vmatpush1.msra.mxu0 0.0
      %1545 = vmatprep.subr.mxu0 0.0
      %1546 = vmatpush1.msra.mxu0 0.0
      %1547 = vmatprep.subr.mxu0 0.0
      %1548 = vmatpush1.msra.mxu0 0.0
      %1549 = vmatprep.subr.mxu0 0.0
      %1550 = vmatpush1.msra.mxu0 0.0
      %1551 = vmatprep.subr.mxu0 0.0
      %1552 = vmatpush1.msra.mxu0 %v627
      %1553 = vmatprep.subr.mxu0 0.0
      %1554 = vmatpush2.msra.mxu0 0.0
      %1555 = vmatprep.subr.mxu0 0.0
      %1556 = vmatpush2.msra.mxu0 0.0
      %1557 = vmatprep.subr.mxu0 0.0
      %1558 = vmatpush2.msra.mxu0 0.0
      %1559 = vmatprep.subr.mxu0 0.0
      %1560 = vmatpush2.msra.mxu0 0.0
      %1561 = vmatprep.subr.mxu0 0.0
      %1562 = vmatpush2.msra.mxu0 0.0
      %1563 = vmatprep.subr.mxu0 0.0
      %1564 = vmatpush2.msra.mxu0 0.0
      %1565 = vmatprep.subr.mxu0 0.0
      %1566 = vmatpush2.msra.mxu0 0.0
      %1567 = vmatprep.subr.mxu0 0.0
      %1568 = vmatpush2.msra.mxu0 0.0
      %1569 = vmatprep.subr.mxu0 0.0
      %1570 = vmatpush2.msra.mxu0 0.0
      %1571 = vmatprep.subr.mxu0 0.0
      %1572 = vmatpush2.msra.mxu0 0.0
      %1573 = vmatprep.subr.mxu0 0.0
      %1574 = vmatpush2.msra.mxu0 0.0
      %1575 = vmatprep.subr.mxu0 0.0
      %1576 = vmatpush2.msra.mxu0 0.0
      %1577 = vmatprep.subr.mxu0 0.0
      %1578 = vmatpush2.msra.mxu0 0.0
      %1579 = vmatprep.subr.mxu0 0.0
      %1580 = vmatpush2.msra.mxu0 0.0
      %1581 = vmatprep.subr.mxu0 0.0
      %1582 = vmatpush2.msra.mxu0 0.0
      %1583 = vmatprep.subr.mxu0 0.0
      %1584 = vmatpush2.msra.mxu0 0.0
      %1585 = vmatprep.mubr.f32.mxu0 0.0
      %1586 = vmatmul.mubr.f32.gmra.mxu0 %v1519
      %v1587 = vpop.f32.mrf.mxu0
      %v1588 = vadd.f32 0.0, %v1587
      %v1589 = vpop.f32.mrf.mxu0
      %1590 = vdwg.mxu0
      %v1591 = vadd.f32 %v1350, %v1588
      %v1592 = vadd.f32 %v507, %v1591
      %v1593 = vld [vmem:[%s8] sm:$0x1]
      %v1595 = vlaneseq
      %v1596 = vshrl.u32 %v1595, 7
      %v1597 = vsub.s32 0, %v1596
      %v1598 = vrot.slane %v1593, %v1597
      %v1600 = vadd.f32 %v1592, %v1598
      %v1601 = vld [vmem:[%s9] sm:$0x1]
      %v1602 = vld [vmem:[%s10] sm:$0x1]
      %v1603 = vsel %vm511, %v1600, 0.0
      %1604 = vadd.xlane.f32.xlu0 %v1603
      %v1605 = vpop.xlane.xlu0 %1604
      %v1606 = vmul.f32 %v1605, %v515
      %v1607 = vsub.f32 %v1600, %v1606
      %v1608 = vmul.f32 %v1607, %v1607
      %v1609 = vsel %vm511, %v1608, 0.0
      %1610 = vadd.xlane.f32.xlu0 %v1609
      %v1611 = vpop.xlane.xlu0 %1610
      %v1612 = vmul.f32 %v1611, %v515
      %v1613 = vadd.f32 %v1612, 1e-05
      %v1614 = vrsqrt.pop %v1613
      %v1615 = vmul.f32 %v1607, %v1614
      %v1617 = vlaneseq
      %v1618 = vshrl.u32 %v1617, 7
      %v1619 = vsub.s32 0, %v1618
      %v1620 = vrot.slane %v1601, %v1619
      %v1622 = vmul.f32 %v1615, %v1620
      %v1624 = vlaneseq
      %v1625 = vshrl.u32 %v1624, 7
      %v1626 = vsub.s32 0, %v1625
      %v1627 = vrot.slane %v1602, %v1626
      %v1629 = vadd.f32 %v1622, %v1627
      %v1630 = vld [vmem:[%s11] sm:$0xff]
      %v1631 = vld [vmem:[%s11 + $0x8] sm:$0xff]
      %v1632 = vld [vmem:[%s11 + $0x10] sm:$0xff]
      %v1633 = vld [vmem:[%s11 + $0x18] sm:$0xff]
      %v1634 = vld [vmem:[%s12] sm:$0x1]
      %v1636 = vlaneseq
      %v1637 = vshrl.u32 %v1636, 7
      %v1638 = vsub.s32 0, %v1637
      %v1639 = vrot.slane %v1634, %v1638
      %v1642 = vsel %vm511, %v1629, 0
      %1644 = vmatprep.subr.mxu0 0.0
      %1645 = vmatpush1.msra.mxu0 0.0
      %1646 = vmatprep.subr.mxu0 0.0
      %1647 = vmatpush1.msra.mxu0 0.0
      %1648 = vmatprep.subr.mxu0 0.0
      %1649 = vmatpush1.msra.mxu0 0.0
      %1650 = vmatprep.subr.mxu0 0.0
      %1651 = vmatpush1.msra.mxu0 0.0
      %1652 = vmatprep.subr.mxu0 0.0
      %1653 = vmatpush1.msra.mxu0 0.0
      %1654 = vmatprep.subr.mxu0 0.0
      %1655 = vmatpush1.msra.mxu0 0.0
      %1656 = vmatprep.subr.mxu0 0.0
      %1657 = vmatpush1.msra.mxu0 0.0
      %1658 = vmatprep.subr.mxu0 0.0
      %1659 = vmatpush1.msra.mxu0 0.0
      %1660 = vmatprep.subr.mxu0 0.0
      %1661 = vmatpush1.msra.mxu0 0.0
      %1662 = vmatprep.subr.mxu0 0.0
      %1663 = vmatpush1.msra.mxu0 0.0
      %1664 = vmatprep.subr.mxu0 0.0
      %1665 = vmatpush1.msra.mxu0 0.0
      %1666 = vmatprep.subr.mxu0 0.0
      %1667 = vmatpush1.msra.mxu0 0.0
      %1668 = vmatprep.subr.mxu0 0.0
      %1669 = vmatpush1.msra.mxu0 %v1633
      %1670 = vmatprep.subr.mxu0 0.0
      %1671 = vmatpush1.msra.mxu0 %v1632
      %1672 = vmatprep.subr.mxu0 0.0
      %1673 = vmatpush1.msra.mxu0 %v1631
      %1674 = vmatprep.subr.mxu0 0.0
      %1675 = vmatpush1.msra.mxu0 %v1630
      %1676 = vmatprep.subr.mxu0 0.0
      %1677 = vmatpush2.msra.mxu0 0.0
      %1678 = vmatprep.subr.mxu0 0.0
      %1679 = vmatpush2.msra.mxu0 0.0
      %1680 = vmatprep.subr.mxu0 0.0
      %1681 = vmatpush2.msra.mxu0 0.0
      %1682 = vmatprep.subr.mxu0 0.0
      %1683 = vmatpush2.msra.mxu0 0.0
      %1684 = vmatprep.subr.mxu0 0.0
      %1685 = vmatpush2.msra.mxu0 0.0
      %1686 = vmatprep.subr.mxu0 0.0
      %1687 = vmatpush2.msra.mxu0 0.0
      %1688 = vmatprep.subr.mxu0 0.0
      %1689 = vmatpush2.msra.mxu0 0.0
      %1690 = vmatprep.subr.mxu0 0.0
      %1691 = vmatpush2.msra.mxu0 0.0
      %1692 = vmatprep.subr.mxu0 0.0
      %1693 = vmatpush2.msra.mxu0 0.0
      %1694 = vmatprep.subr.mxu0 0.0
      %1695 = vmatpush2.msra.mxu0 0.0
      %1696 = vmatprep.subr.mxu0 0.0
      %1697 = vmatpush2.msra.mxu0 0.0
      %1698 = vmatprep.subr.mxu0 0.0
      %1699 = vmatpush2.msra.mxu0 0.0
      %1700 = vmatprep.subr.mxu0 0.0
      %1701 = vmatpush2.msra.mxu0 0.0
      %1702 = vmatprep.subr.mxu0 0.0
      %1703 = vmatpush2.msra.mxu0 0.0
      %1704 = vmatprep.subr.mxu0 0.0
      %1705 = vmatpush2.msra.mxu0 0.0
      %1706 = vmatprep.subr.mxu0 0.0
      %1707 = vmatpush2.msra.mxu0 0.0
      %1708 = vmatprep.mubr.f32.mxu0 0.0
      %1709 = vmatmul.mubr.f32.gmra.mxu0 %v1642
      %v1710 = vpop.f32.mrf.mxu0
      %v1711 = vadd.f32 %v1639, %v1710
      %v1712 = vpop.f32.mrf.mxu0
      %1713 = vdwg.mxu0
      %v1714 = vmul.f32 %v1711, 0.5
      %v1715 = vmul.f32 %v1711, 0.70710677
      %vm1716 = vcmp.ge.f32.partialorder %v1715, 0.0
      %v1717 = vsel %vm1716, 1.0, -1.0
      %v1718 = vand.u32 2147483647, %v1715
      %v1719 = vmul.f32 %v1718, 0.3275911
      %v1720 = vadd.f32 %v1719, 1.0
      %v1721 = vrcp.pop %v1720
      %v1722 = vmul.f32 1.0, %v1721
      %v1723 = vmul.f32 %v1722, 1.0614054
      %v1724 = vadd.f32 %v1723, -1.4531521
      %v1725 = vmul.f32 %v1724, %v1722
      %v1726 = vadd.f32 %v1725, 1.4214138
      %v1727 = vmul.f32 %v1726, %v1722
      %v1728 = vadd.f32 %v1727, -0.28449672
      %v1729 = vmul.f32 %v1728, %v1722
      %v1730 = vadd.f32 %v1729, 0.2548296
      %v1731 = vmul.f32 %v1730, %v1722
      %v1732 = vsub.f32 0.0, %v1718
      %v1733 = vmul.f32 %v1732, %v1718
      %v1734 = vmul.f32 %v1733, 1.442695
      %v1735 = vpow.pop %v1734
      %v1736 = vmul.f32 %v1731, %v1735
      %v1737 = vsub.f32 1.0, %v1736
      %v1738 = vmul.f32 %v1717, %v1737
      %v1739 = vadd.f32 %v1738, 1.0
      %v1740 = vmul.f32 %v1714, %v1739
      %v1741 = vld [vmem:[%s13] sm:$0xff]
      %v1742 = vld [vmem:[%s13 + $0x8] sm:$0xff]
      %v1743 = vld [vmem:[%s13 + $0x10] sm:$0xff]
      %v1744 = vld [vmem:[%s13 + $0x18] sm:$0xff]
      %v1745 = vld [vmem:[%s13 + $0x20] sm:$0xff]
      %v1746 = vld [vmem:[%s13 + $0x28] sm:$0xff]
      %v1747 = vld [vmem:[%s13 + $0x30] sm:$0xff]
      %v1748 = vld [vmem:[%s13 + $0x38] sm:$0xff]
      %vm1749 = vcmask 523264
      %v1751 = vsel %vm1749, %v1740, 0
      %1753 = vmatprep.subr.mxu0 0.0
      %1754 = vmatpush1.msra.mxu0 0.0
      %1755 = vmatprep.subr.mxu0 0.0
      %1756 = vmatpush1.msra.mxu0 0.0
      %1757 = vmatprep.subr.mxu0 0.0
      %1758 = vmatpush1.msra.mxu0 0.0
      %1759 = vmatprep.subr.mxu0 0.0
      %1760 = vmatpush1.msra.mxu0 0.0
      %1761 = vmatprep.subr.mxu0 0.0
      %1762 = vmatpush1.msra.mxu0 0.0
      %1763 = vmatprep.subr.mxu0 0.0
      %1764 = vmatpush1.msra.mxu0 0.0
      %1765 = vmatprep.subr.mxu0 0.0
      %1766 = vmatpush1.msra.mxu0 0.0
      %1767 = vmatprep.subr.mxu0 0.0
      %1768 = vmatpush1.msra.mxu0 0.0
      %1769 = vmatprep.subr.mxu0 0.0
      %1770 = vmatpush1.msra.mxu0 %v1748
      %1771 = vmatprep.subr.mxu0 0.0
      %1772 = vmatpush1.msra.mxu0 %v1747
      %1773 = vmatprep.subr.mxu0 0.0
      %1774 = vmatpush1.msra.mxu0 %v1746
      %1775 = vmatprep.subr.mxu0 0.0
      %1776 = vmatpush1.msra.mxu0 %v1745
      %1777 = vmatprep.subr.mxu0 0.0
      %1778 = vmatpush1.msra.mxu0 %v1744
      %1779 = vmatprep.subr.mxu0 0.0
      %1780 = vmatpush1.msra.mxu0 %v1743
      %1781 = vmatprep.subr.mxu0 0.0
      %1782 = vmatpush1.msra.mxu0 %v1742
      %1783 = vmatprep.subr.mxu0 0.0
      %1784 = vmatpush1.msra.mxu0 %v1741
      %1785 = vmatprep.subr.mxu0 0.0
      %1786 = vmatpush2.msra.mxu0 0.0
      %1787 = vmatprep.subr.mxu0 0.0
      %1788 = vmatpush2.msra.mxu0 0.0
      %1789 = vmatprep.subr.mxu0 0.0
      %1790 = vmatpush2.msra.mxu0 0.0
      %1791 = vmatprep.subr.mxu0 0.0
      %1792 = vmatpush2.msra.mxu0 0.0
      %1793 = vmatprep.subr.mxu0 0.0
      %1794 = vmatpush2.msra.mxu0 0.0
      %1795 = vmatprep.subr.mxu0 0.0
      %1796 = vmatpush2.msra.mxu0 0.0
      %1797 = vmatprep.subr.mxu0 0.0
      %1798 = vmatpush2.msra.mxu0 0.0
      %1799 = vmatprep.subr.mxu0 0.0
      %1800 = vmatpush2.msra.mxu0 0.0
      %1801 = vmatprep.subr.mxu0 0.0
      %1802 = vmatpush2.msra.mxu0 0.0
      %1803 = vmatprep.subr.mxu0 0.0
      %1804 = vmatpush2.msra.mxu0 0.0
      %1805 = vmatprep.subr.mxu0 0.0
      %1806 = vmatpush2.msra.mxu0 0.0
      %1807 = vmatprep.subr.mxu0 0.0
      %1808 = vmatpush2.msra.mxu0 0.0
      %1809 = vmatprep.subr.mxu0 0.0
      %1810 = vmatpush2.msra.mxu0 0.0
      %1811 = vmatprep.subr.mxu0 0.0
      %1812 = vmatpush2.msra.mxu0 0.0
      %1813 = vmatprep.subr.mxu0 0.0
      %1814 = vmatpush2.msra.mxu0 0.0
      %1815 = vmatprep.subr.mxu0 0.0
      %1816 = vmatpush2.msra.mxu0 0.0
      %1817 = vmatprep.mubr.f32.mxu0 0.0
      %1818 = vmatmul.mubr.f32.gmra.mxu0 %v1751
      %v1819 = vpop.f32.mrf.mxu0
      %v1820 = vadd.f32 0.0, %v1819
      %v1821 = vpop.f32.mrf.mxu0
      %1822 = vdwg.mxu0
      %v1823 = vadd.f32 %v1600, %v1820
      %v1824 = vld [vmem:[%s14] sm:$0x1]
      %v1826 = vlaneseq
      %v1827 = vshrl.u32 %v1826, 7
      %v1828 = vsub.s32 0, %v1827
      %v1829 = vrot.slane %v1824, %v1828
      %v1831 = vadd.f32 %v1823, %v1829
      %1832 = vst.msk [vmem:[%s506] sm:$0xff] %vm511, %v1831
      %p1833 = scmp.lt.s32.totalorder %s26, 1
      %s1834 = scalar_select %p1833, %s26, 1
      %s1835 = smul.addr %s1834, 8
      %s1836 = scalar_lea.vmem %s15, %s1835
      // Predicated region
      $region81: #{transformer_forward.4} parent=79 // pred_check
        %p1837 = pneg %p369
      $region82: #{transformer_forward.4} parent=79 // pred_check_branch
        %1839 = sbr.rel (%p1837) target = $region84
      $region83: #{transformer_forward.4} parent=79 // pred_region
        _
      $region84: #{transformer_forward.4} parent=79 // pred_fallthru
        _
    $region80: #{transformer_forward.4} parent=5 // pred_fallthru
      _
    %p1840 = scmp.le.s32.totalorder 2, %s21
    // Predicated region
    $region85: #{transformer_forward.4} parent=5 // pred_check
      %p1841 = pneg %p1840
    $region86: #{transformer_forward.4} parent=5 // pred_check_branch
      %1843 = sbr.rel (%p1841) target = $region88
    $region87: #{transformer_forward.4} parent=5 // pred_region
      %s1844 = ssub.s32 %s21, 2
      // Predicated region
      $region89: #{transformer_forward.4} parent=87 // pred_check
        %p1845 = pneg %p375
      $region90: #{transformer_forward.4} parent=87 // pred_check_branch
        %1847 = sbr.rel (%p1845) target = $region92
      $region91: #{transformer_forward.4} parent=87 // pred_region
        %p1848 = scmp.lt.s32.totalorder %s27, 1
        %s1849 = scalar_select %p1848, %s27, 1
        %s1850 = smul.addr %s1849, 8
        %s1851 = scalar_lea.vmem %s15, %s1850
      $region92: #{transformer_forward.4} parent=87 // pred_fallthru
        _
    $region88: #{transformer_forward.4} parent=5 // pred_fallthru
      _
  $region6: #{transformer_forward.4} parent=0 // loop_footer
    %s25 = sadd.s32 1, %s21
  $region7: #{transformer_forward.4} parent=0 // loop_footer_branch
    %20 = sbr.rel target = $region3
  $region8: #{transformer_forward.4} parent=0 // loop_exit
    _

</llo_original>
